<compile_context>
chip_gen: v7x
topology: tpu7x:2x2x1
jax: 0.10.0
libtpu: 0.0.40
codegen_flags: <defaults>
</compile_context>

<pallas_src>
import functools

import jax
import jax.numpy as jnp
from jax import lax
from jax.experimental import pallas as pl
from jax.experimental.pallas import tpu as pltpu

IMAGE_SIZE = 128          # (module uses 256; small shape chosen per instructions)
N_TILES = 2               # 2 parallel grid steps -> both TCs on v7x, ~free on v5e/v6e
LANES = 128               # lane-dense padding for the per-row loss output


# ----------------------------------------------------------------------------
# Shared rasterization helper (traced inline; loop fully unrolled, n_faces is
# a static Python int so all SMEM indices are constants)
# ----------------------------------------------------------------------------
def _rasterize(coef_ref, px, py, n_faces):
  inside = jnp.zeros(px.shape, dtype=jnp.bool_)
  for f in range(n_faces):
    b = 9 * f
    a0 = coef_ref[b + 0]; b0 = coef_ref[b + 1]; c0 = coef_ref[b + 2]
    a1 = coef_ref[b + 3]; b1 = coef_ref[b + 4]; c1 = coef_ref[b + 5]
    a2 = coef_ref[b + 6]; b2 = coef_ref[b + 7]; c2 = coef_ref[b + 8]
    e0 = a0 * px + b0 * py + c0
    e1 = a1 * px + b1 * py + c1
    e2 = a2 * px + b2 * py + c2
    # sign-consistent edge test covers both windings
    pos = (e0 >= 0.0) & (e1 >= 0.0) & (e2 >= 0.0)
    neg = (e0 <= 0.0) & (e1 <= 0.0) & (e2 <= 0.0)
    inside = inside | pos | neg
  return inside.astype(jnp.float32)


def _pixel_grid(tile_h, width):
  i = pl.program_id(0)
  py = (lax.broadcasted_iota(jnp.int32, (tile_h, width), 0)
        + i * tile_h).astype(jnp.float32) + 0.5
  px = lax.broadcasted_iota(jnp.int32, (tile_h, width), 1).astype(
      jnp.float32) + 0.5
  return px, py


# ----------------------------------------------------------------------------
# Kernels
# ----------------------------------------------------------------------------
def silhouette_kernel(coef_ref, img_ref, *, n_faces, tile_h, width):
  """Image-only render (used once to build the reference silhouette)."""
  px, py = _pixel_grid(tile_h, width)
  img_ref[...] = _rasterize(coef_ref, px, py, n_faces)


def silhouette_loss_kernel(coef_ref, ref_img_ref, loss_ref, *,
                           n_faces, tile_h, width):
  """Forward hot path: rasterize + fused MSE + per-row mean (loss only)."""
  px, py = _pixel_grid(tile_h, width)
  inside = _rasterize(coef_ref, px, py, n_faces)
  # MSELoss(reduce=False) followed by loss.view(H, -1).mean(1)
  diff = inside - ref_img_ref[...]
  row_mse = jnp.sum(diff * diff, axis=1, keepdims=True) * (1.0 / width)
  loss_ref[...] = jnp.broadcast_to(row_mse, (tile_h, LANES))


# ----------------------------------------------------------------------------
# Wrappers
# ----------------------------------------------------------------------------
def render_silhouette(face_coef, height, width):
  """Returns the silhouette image [H, W] (reference construction only)."""
  assert height % N_TILES == 0
  tile_h = height // N_TILES
  assert tile_h % 8 == 0 and width % 128 == 0
  n_faces = face_coef.shape[0] // 9
  kernel = functools.partial(silhouette_kernel, n_faces=n_faces,
                             tile_h=tile_h, width=width)
  return pl.pallas_call(
      kernel,
      out_shape=jax.ShapeDtypeStruct((height, width), jnp.float32),
      grid=(N_TILES,),
      in_specs=[
          # tiny per-face edge-coefficient table -> 1D SMEM, scalar reads
          pl.BlockSpec(memory_space=pltpu.MemorySpace.SMEM),
      ],
      out_specs=pl.BlockSpec((tile_h, width), lambda i: (i, 0)),
      compiler_params=pltpu.CompilerParams(
          dimension_semantics=("parallel",)),
  )(face_coef)


def silhouette_loss(face_coef, image_ref):
  """forward(): returns the per-row MSE loss [H] (no image writeback)."""
  H, W = image_ref.shape
  assert H % N_TILES == 0
  tile_h = H // N_TILES
  assert tile_h % 8 == 0 and W % 128 == 0
  n_faces = face_coef.shape[0] // 9
  kernel = functools.partial(silhouette_loss_kernel, n_faces=n_faces,
                             tile_h=tile_h, width=W)
  loss_pad = pl.pallas_call(
      kernel,
      out_shape=jax.ShapeDtypeStruct((H, LANES), jnp.float32),
      grid=(N_TILES,),
      in_specs=[
          pl.BlockSpec(memory_space=pltpu.MemorySpace.SMEM),
          pl.BlockSpec((tile_h, W), lambda i: (i, 0)),
      ],
      out_specs=pl.BlockSpec((tile_h, LANES), lambda i: (i, 0)),
      compiler_params=pltpu.CompilerParams(
          dimension_semantics=("parallel",)),
  )(face_coef, image_ref)
  return loss_pad[:, 0]


# ----------------------------------------------------------------------------
# Plain-JAX glue: mesh, quaternion rotation, projection, edge coefficients
# ----------------------------------------------------------------------------
def make_cube():
  verts = jnp.array(
      [[x, y, z] for x in (-0.5, 0.5) for y in (-0.5, 0.5) for z in (-0.5, 0.5)],
      dtype=jnp.float32)
  faces = jnp.array(
      [[0, 1, 3], [0, 3, 2],      # -x
       [4, 6, 7], [4, 7, 5],      # +x
       [0, 4, 5], [0, 5, 1],      # -y
       [2, 3, 7], [2, 7, 6],      # +y
       [0, 2, 6], [0, 6, 4],      # -z
       [1, 5, 7], [1, 7, 3]],     # +z
      dtype=jnp.int32)
  return verts, faces


def quat_to_rotmat(q):
  q = q / jnp.linalg.norm(q)
  w, x, y, z = q[0], q[1], q[2], q[3]
  return jnp.array(
      [[1 - 2 * (y * y + z * z), 2 * (x * y - w * z), 2 * (x * z + w * y)],
       [2 * (x * y + w * z), 1 - 2 * (x * x + z * z), 2 * (y * z - w * x)],
       [2 * (x * z - w * y), 2 * (y * z + w * x), 1 - 2 * (x * x + y * y)]],
      dtype=jnp.float32)


def project_face_coefs(vertices, faces, q, t, K, eps=1e-6):
  """Projects vertices with (q, t, K) and returns flattened per-face edge
  coefficients [F*9] = (A0,B0,C0, A1,B1,C1, A2,B2,C2) so each edge function
  inside the kernel is just e = A*px + B*py + C."""
  R = quat_to_rotmat(q)
  v_cam = vertices @ R.T + t[None, :]
  h = v_cam @ K.T                           # (fx*x + cx*z, fy*y + cy*z, z)
  z = jnp.maximum(h[:, 2:3], eps)           # near-plane guard (no inf/NaN)
  uv = h[:, :2] / z                         # pixel coordinates
  tri = uv[faces]                           # [F, 3, 2]
  x0, y0 = tri[:, 0, 0], tri[:, 0, 1]
  x1, y1 = tri[:, 1, 0], tri[:, 1, 1]
  x2, y2 = tri[:, 2, 0], tri[:, 2, 1]

  def edge(xa, ya, xb, yb):
    a = -(yb - ya)
    b = xb - xa
    c = (yb - ya) * xa - (xb - xa) * ya
    return a, b, c

  a0, b0, c0 = edge(x0, y0, x1, y1)
  a1, b1, c1 = edge(x1, y1, x2, y2)
  a2, b2, c2 = edge(x2, y2, x0, y0)
  coefs = jnp.stack([a0, b0, c0, a1, b1, c1, a2, b2, c2], axis=1)  # [F, 9]

  # degenerate (zero-area) triangles: substitute "never hit" coefficients
  area = (x1 - x0) * (y2 - y0) - (y1 - y0) * (x2 - x0)
  never = jnp.array([0., 0., 1., 0., 0., -1., 0., 0., 1.], dtype=jnp.float32)
  coefs = jnp.where((jnp.abs(area) < eps)[:, None], never[None, :], coefs)
  return coefs.reshape(-1).astype(jnp.float32)


# ----------------------------------------------------------------------------
if __name__ == "__main__":
  key = jax.random.PRNGKey(0)
  kq, kt = jax.random.split(key)

  vertices, faces = make_cube()

  # intrinsics (scaled from the module's 280 / 128 values for image_size=128)
  K = jnp.array([[140.0, 0.0, 64.0],
                 [0.0, 140.0, 64.0],
                 [0.0, 0.0, 1.0]], dtype=jnp.float32)

  # reference pose -> reference silhouette (stands in for the imread() buffer)
  q_ref = jnp.array([1.0, 0.0, 0.0, 0.0], dtype=jnp.float32)
  t_ref = jnp.array([0.0, 0.0, 2.5], dtype=jnp.float32)
  coef_ref = project_face_coefs(vertices, faces, q_ref, t_ref, K)
  image_ref = render_silhouette(coef_ref, IMAGE_SIZE, IMAGE_SIZE)

  # perturbed pose parameters, mirroring  q *= (0.6 + rand*0.8),
  # t *= (rand*0.8 + 0.6)  in the PyTorch __init__
  q = q_ref * (0.6 + jax.random.uniform(kq, (4,), dtype=jnp.float32) * 0.8)
  t = t_ref * (jax.random.uniform(kt, (3,), dtype=jnp.float32) * 0.8 + 0.6)
  face_coef = project_face_coefs(vertices, faces, q, t, K)

  # forward(): render silhouette + per-row MSE against image_ref (loss only)
  loss = silhouette_loss(face_coef, image_ref)
  loss = jax.block_until_ready(loss)

  assert image_ref.shape == (IMAGE_SIZE, IMAGE_SIZE)
  assert loss.shape == (IMAGE_SIZE,)
  assert bool(jnp.all(jnp.isfinite(loss)))
  print("KERNEL_OK")
</pallas_src>

<mosaic_0001>
module attributes {stable_mosaic.version = 11 : i64} {
  func.func @silhouette_kernel(%arg0: i32, %arg1: memref<108xf32, #tpu.memory_space<smem>>, %arg2: memref<64x128xf32, #tpu.memory_space<vmem>>) attributes {dimension_semantics = [#tpu.dimension_semantics<parallel>], iteration_bounds = array<i64: 2>, scalar_prefetch = 0 : i64, scratch_operands = 0 : i64, tpu.core_type = #tpu.core_type<tc>, window_params = [{transform_indices = @transform_0, window_bounds = array<i64: 108>}, {transform_indices = @transform_1, window_bounds = array<i64: 64, 128>}]} {
    %0 = tpu.iota {dimensions = array<i32: 0>} : vector<64x128xi32>
    %c64_i32 = arith.constant 64 : i32
    %1 = arith.muli %arg0, %c64_i32 : i32
    %2 = vector.broadcast %1 : i32 to vector<64x128xi32>
    %3 = arith.addi %0, %2 : vector<64x128xi32>
    %4 = arith.sitofp %3 : vector<64x128xi32> to vector<64x128xf32>
    %cst = arith.constant 5.000000e-01 : f32
    %5 = vector.broadcast %cst : f32 to vector<64x128xf32>
    %6 = arith.addf %4, %5 : vector<64x128xf32>
    %7 = tpu.iota {dimensions = array<i32: 1>} : vector<64x128xi32>
    %8 = arith.sitofp %7 : vector<64x128xi32> to vector<64x128xf32>
    %cst_0 = arith.constant 5.000000e-01 : f32
    %9 = vector.broadcast %cst_0 : f32 to vector<64x128xf32>
    %10 = arith.addf %8, %9 : vector<64x128xf32>
    %false = arith.constant false
    %11 = vector.broadcast %false : i1 to vector<64x128xi1>
    %c0 = arith.constant 0 : index
    %12 = memref.load %arg1[%c0] : memref<108xf32, #tpu.memory_space<smem>>
    %c1 = arith.constant 1 : index
    %13 = memref.load %arg1[%c1] : memref<108xf32, #tpu.memory_space<smem>>
    %c2 = arith.constant 2 : index
    %14 = memref.load %arg1[%c2] : memref<108xf32, #tpu.memory_space<smem>>
    %c3 = arith.constant 3 : index
    %15 = memref.load %arg1[%c3] : memref<108xf32, #tpu.memory_space<smem>>
    %c4 = arith.constant 4 : index
    %16 = memref.load %arg1[%c4] : memref<108xf32, #tpu.memory_space<smem>>
    %c5 = arith.constant 5 : index
    %17 = memref.load %arg1[%c5] : memref<108xf32, #tpu.memory_space<smem>>
    %c6 = arith.constant 6 : index
    %18 = memref.load %arg1[%c6] : memref<108xf32, #tpu.memory_space<smem>>
    %c7 = arith.constant 7 : index
    %19 = memref.load %arg1[%c7] : memref<108xf32, #tpu.memory_space<smem>>
    %c8 = arith.constant 8 : index
    %20 = memref.load %arg1[%c8] : memref<108xf32, #tpu.memory_space<smem>>
    %21 = vector.broadcast %12 : f32 to vector<64x128xf32>
    %22 = arith.mulf %21, %10 : vector<64x128xf32>
    %23 = vector.broadcast %13 : f32 to vector<64x128xf32>
    %24 = arith.mulf %23, %6 : vector<64x128xf32>
    %25 = arith.addf %22, %24 : vector<64x128xf32>
    %26 = vector.broadcast %14 : f32 to vector<64x128xf32>
    %27 = arith.addf %25, %26 : vector<64x128xf32>
    %28 = vector.broadcast %15 : f32 to vector<64x128xf32>
    %29 = arith.mulf %28, %10 : vector<64x128xf32>
    %30 = vector.broadcast %16 : f32 to vector<64x128xf32>
    %31 = arith.mulf %30, %6 : vector<64x128xf32>
    %32 = arith.addf %29, %31 : vector<64x128xf32>
    %33 = vector.broadcast %17 : f32 to vector<64x128xf32>
    %34 = arith.addf %32, %33 : vector<64x128xf32>
    %35 = vector.broadcast %18 : f32 to vector<64x128xf32>
    %36 = arith.mulf %35, %10 : vector<64x128xf32>
    %37 = vector.broadcast %19 : f32 to vector<64x128xf32>
    %38 = arith.mulf %37, %6 : vector<64x128xf32>
    %39 = arith.addf %36, %38 : vector<64x128xf32>
    %40 = vector.broadcast %20 : f32 to vector<64x128xf32>
    %41 = arith.addf %39, %40 : vector<64x128xf32>
    %cst_1 = arith.constant 0.000000e+00 : f32
    %42 = vector.broadcast %cst_1 : f32 to vector<64x128xf32>
    %43 = arith.cmpf oge, %27, %42 : vector<64x128xf32>
    %cst_2 = arith.constant 0.000000e+00 : f32
    %44 = vector.broadcast %cst_2 : f32 to vector<64x128xf32>
    %45 = arith.cmpf oge, %34, %44 : vector<64x128xf32>
    %46 = arith.andi %43, %45 : vector<64x128xi1>
    %cst_3 = arith.constant 0.000000e+00 : f32
    %47 = vector.broadcast %cst_3 : f32 to vector<64x128xf32>
    %48 = arith.cmpf oge, %41, %47 : vector<64x128xf32>
    %49 = arith.andi %46, %48 : vector<64x128xi1>
    %cst_4 = arith.constant 0.000000e+00 : f32
    %50 = vector.broadcast %cst_4 : f32 to vector<64x128xf32>
    %51 = arith.cmpf ole, %27, %50 : vector<64x128xf32>
    %cst_5 = arith.constant 0.000000e+00 : f32
    %52 = vector.broadcast %cst_5 : f32 to vector<64x128xf32>
    %53 = arith.cmpf ole, %34, %52 : vector<64x128xf32>
    %54 = arith.andi %51, %53 : vector<64x128xi1>
    %cst_6 = arith.constant 0.000000e+00 : f32
    %55 = vector.broadcast %cst_6 : f32 to vector<64x128xf32>
    %56 = arith.cmpf ole, %41, %55 : vector<64x128xf32>
    %57 = arith.andi %54, %56 : vector<64x128xi1>
    %58 = arith.ori %11, %49 : vector<64x128xi1>
    %59 = arith.ori %58, %57 : vector<64x128xi1>
    %c9 = arith.constant 9 : index
    %60 = memref.load %arg1[%c9] : memref<108xf32, #tpu.memory_space<smem>>
    %c10 = arith.constant 10 : index
    %61 = memref.load %arg1[%c10] : memref<108xf32, #tpu.memory_space<smem>>
    %c11 = arith.constant 11 : index
    %62 = memref.load %arg1[%c11] : memref<108xf32, #tpu.memory_space<smem>>
    %c12 = arith.constant 12 : index
    %63 = memref.load %arg1[%c12] : memref<108xf32, #tpu.memory_space<smem>>
    %c13 = arith.constant 13 : index
    %64 = memref.load %arg1[%c13] : memref<108xf32, #tpu.memory_space<smem>>
    %c14 = arith.constant 14 : index
    %65 = memref.load %arg1[%c14] : memref<108xf32, #tpu.memory_space<smem>>
    %c15 = arith.constant 15 : index
    %66 = memref.load %arg1[%c15] : memref<108xf32, #tpu.memory_space<smem>>
    %c16 = arith.constant 16 : index
    %67 = memref.load %arg1[%c16] : memref<108xf32, #tpu.memory_space<smem>>
    %c17 = arith.constant 17 : index
    %68 = memref.load %arg1[%c17] : memref<108xf32, #tpu.memory_space<smem>>
    %69 = vector.broadcast %60 : f32 to vector<64x128xf32>
    %70 = arith.mulf %69, %10 : vector<64x128xf32>
    %71 = vector.broadcast %61 : f32 to vector<64x128xf32>
    %72 = arith.mulf %71, %6 : vector<64x128xf32>
    %73 = arith.addf %70, %72 : vector<64x128xf32>
    %74 = vector.broadcast %62 : f32 to vector<64x128xf32>
    %75 = arith.addf %73, %74 : vector<64x128xf32>
    %76 = vector.broadcast %63 : f32 to vector<64x128xf32>
    %77 = arith.mulf %76, %10 : vector<64x128xf32>
    %78 = vector.broadcast %64 : f32 to vector<64x128xf32>
    %79 = arith.mulf %78, %6 : vector<64x128xf32>
    %80 = arith.addf %77, %79 : vector<64x128xf32>
    %81 = vector.broadcast %65 : f32 to vector<64x128xf32>
    %82 = arith.addf %80, %81 : vector<64x128xf32>
    %83 = vector.broadcast %66 : f32 to vector<64x128xf32>
    %84 = arith.mulf %83, %10 : vector<64x128xf32>
    %85 = vector.broadcast %67 : f32 to vector<64x128xf32>
    %86 = arith.mulf %85, %6 : vector<64x128xf32>
    %87 = arith.addf %84, %86 : vector<64x128xf32>
    %88 = vector.broadcast %68 : f32 to vector<64x128xf32>
    %89 = arith.addf %87, %88 : vector<64x128xf32>
    %cst_7 = arith.constant 0.000000e+00 : f32
    %90 = vector.broadcast %cst_7 : f32 to vector<64x128xf32>
    %91 = arith.cmpf oge, %75, %90 : vector<64x128xf32>
    %cst_8 = arith.constant 0.000000e+00 : f32
    %92 = vector.broadcast %cst_8 : f32 to vector<64x128xf32>
    %93 = arith.cmpf oge, %82, %92 : vector<64x128xf32>
    %94 = arith.andi %91, %93 : vector<64x128xi1>
    %cst_9 = arith.constant 0.000000e+00 : f32
    %95 = vector.broadcast %cst_9 : f32 to vector<64x128xf32>
    %96 = arith.cmpf oge, %89, %95 : vector<64x128xf32>
    %97 = arith.andi %94, %96 : vector<64x128xi1>
    %cst_10 = arith.constant 0.000000e+00 : f32
    %98 = vector.broadcast %cst_10 : f32 to vector<64x128xf32>
    %99 = arith.cmpf ole, %75, %98 : vector<64x128xf32>
    %cst_11 = arith.constant 0.000000e+00 : f32
    %100 = vector.broadcast %cst_11 : f32 to vector<64x128xf32>
    %101 = arith.cmpf ole, %82, %100 : vector<64x128xf32>
    %102 = arith.andi %99, %101 : vector<64x128xi1>
    %cst_12 = arith.constant 0.000000e+00 : f32
    %103 = vector.broadcast %cst_12 : f32 to vector<64x128xf32>
    %104 = arith.cmpf ole, %89, %103 : vector<64x128xf32>
    %105 = arith.andi %102, %104 : vector<64x128xi1>
    %106 = arith.ori %59, %97 : vector<64x128xi1>
    %107 = arith.ori %106, %105 : vector<64x128xi1>
    %c18 = arith.constant 18 : index
    %108 = memref.load %arg1[%c18] : memref<108xf32, #tpu.memory_space<smem>>
    %c19 = arith.constant 19 : index
    %109 = memref.load %arg1[%c19] : memref<108xf32, #tpu.memory_space<smem>>
    %c20 = arith.constant 20 : index
    %110 = memref.load %arg1[%c20] : memref<108xf32, #tpu.memory_space<smem>>
    %c21 = arith.constant 21 : index
    %111 = memref.load %arg1[%c21] : memref<108xf32, #tpu.memory_space<smem>>
    %c22 = arith.constant 22 : index
    %112 = memref.load %arg1[%c22] : memref<108xf32, #tpu.memory_space<smem>>
    %c23 = arith.constant 23 : index
    %113 = memref.load %arg1[%c23] : memref<108xf32, #tpu.memory_space<smem>>
    %c24 = arith.constant 24 : index
    %114 = memref.load %arg1[%c24] : memref<108xf32, #tpu.memory_space<smem>>
    %c25 = arith.constant 25 : index
    %115 = memref.load %arg1[%c25] : memref<108xf32, #tpu.memory_space<smem>>
    %c26 = arith.constant 26 : index
    %116 = memref.load %arg1[%c26] : memref<108xf32, #tpu.memory_space<smem>>
    %117 = vector.broadcast %108 : f32 to vector<64x128xf32>
    %118 = arith.mulf %117, %10 : vector<64x128xf32>
    %119 = vector.broadcast %109 : f32 to vector<64x128xf32>
    %120 = arith.mulf %119, %6 : vector<64x128xf32>
    %121 = arith.addf %118, %120 : vector<64x128xf32>
    %122 = vector.broadcast %110 : f32 to vector<64x128xf32>
    %123 = arith.addf %121, %122 : vector<64x128xf32>
    %124 = vector.broadcast %111 : f32 to vector<64x128xf32>
    %125 = arith.mulf %124, %10 : vector<64x128xf32>
    %126 = vector.broadcast %112 : f32 to vector<64x128xf32>
    %127 = arith.mulf %126, %6 : vector<64x128xf32>
    %128 = arith.addf %125, %127 : vector<64x128xf32>
    %129 = vector.broadcast %113 : f32 to vector<64x128xf32>
    %130 = arith.addf %128, %129 : vector<64x128xf32>
    %131 = vector.broadcast %114 : f32 to vector<64x128xf32>
    %132 = arith.mulf %131, %10 : vector<64x128xf32>
    %133 = vector.broadcast %115 : f32 to vector<64x128xf32>
    %134 = arith.mulf %133, %6 : vector<64x128xf32>
    %135 = arith.addf %132, %134 : vector<64x128xf32>
    %136 = vector.broadcast %116 : f32 to vector<64x128xf32>
    %137 = arith.addf %135, %136 : vector<64x128xf32>
    %cst_13 = arith.constant 0.000000e+00 : f32
    %138 = vector.broadcast %cst_13 : f32 to vector<64x128xf32>
    %139 = arith.cmpf oge, %123, %138 : vector<64x128xf32>
    %cst_14 = arith.constant 0.000000e+00 : f32
    %140 = vector.broadcast %cst_14 : f32 to vector<64x128xf32>
    %141 = arith.cmpf oge, %130, %140 : vector<64x128xf32>
    %142 = arith.andi %139, %141 : vector<64x128xi1>
    %cst_15 = arith.constant 0.000000e+00 : f32
    %143 = vector.broadcast %cst_15 : f32 to vector<64x128xf32>
    %144 = arith.cmpf oge, %137, %143 : vector<64x128xf32>
    %145 = arith.andi %142, %144 : vector<64x128xi1>
    %cst_16 = arith.constant 0.000000e+00 : f32
    %146 = vector.broadcast %cst_16 : f32 to vector<64x128xf32>
    %147 = arith.cmpf ole, %123, %146 : vector<64x128xf32>
    %cst_17 = arith.constant 0.000000e+00 : f32
    %148 = vector.broadcast %cst_17 : f32 to vector<64x128xf32>
    %149 = arith.cmpf ole, %130, %148 : vector<64x128xf32>
    %150 = arith.andi %147, %149 : vector<64x128xi1>
    %cst_18 = arith.constant 0.000000e+00 : f32
    %151 = vector.broadcast %cst_18 : f32 to vector<64x128xf32>
    %152 = arith.cmpf ole, %137, %151 : vector<64x128xf32>
    %153 = arith.andi %150, %152 : vector<64x128xi1>
    %154 = arith.ori %107, %145 : vector<64x128xi1>
    %155 = arith.ori %154, %153 : vector<64x128xi1>
    %c27 = arith.constant 27 : index
    %156 = memref.load %arg1[%c27] : memref<108xf32, #tpu.memory_space<smem>>
    %c28 = arith.constant 28 : index
    %157 = memref.load %arg1[%c28] : memref<108xf32, #tpu.memory_space<smem>>
    %c29 = arith.constant 29 : index
    %158 = memref.load %arg1[%c29] : memref<108xf32, #tpu.memory_space<smem>>
    %c30 = arith.constant 30 : index
    %159 = memref.load %arg1[%c30] : memref<108xf32, #tpu.memory_space<smem>>
    %c31 = arith.constant 31 : index
    %160 = memref.load %arg1[%c31] : memref<108xf32, #tpu.memory_space<smem>>
    %c32 = arith.constant 32 : index
    %161 = memref.load %arg1[%c32] : memref<108xf32, #tpu.memory_space<smem>>
    %c33 = arith.constant 33 : index
    %162 = memref.load %arg1[%c33] : memref<108xf32, #tpu.memory_space<smem>>
    %c34 = arith.constant 34 : index
    %163 = memref.load %arg1[%c34] : memref<108xf32, #tpu.memory_space<smem>>
    %c35 = arith.constant 35 : index
    %164 = memref.load %arg1[%c35] : memref<108xf32, #tpu.memory_space<smem>>
    %165 = vector.broadcast %156 : f32 to vector<64x128xf32>
    %166 = arith.mulf %165, %10 : vector<64x128xf32>
    %167 = vector.broadcast %157 : f32 to vector<64x128xf32>
    %168 = arith.mulf %167, %6 : vector<64x128xf32>
    %169 = arith.addf %166, %168 : vector<64x128xf32>
    %170 = vector.broadcast %158 : f32 to vector<64x128xf32>
    %171 = arith.addf %169, %170 : vector<64x128xf32>
    %172 = vector.broadcast %159 : f32 to vector<64x128xf32>
    %173 = arith.mulf %172, %10 : vector<64x128xf32>
    %174 = vector.broadcast %160 : f32 to vector<64x128xf32>
    %175 = arith.mulf %174, %6 : vector<64x128xf32>
    %176 = arith.addf %173, %175 : vector<64x128xf32>
    %177 = vector.broadcast %161 : f32 to vector<64x128xf32>
    %178 = arith.addf %176, %177 : vector<64x128xf32>
    %179 = vector.broadcast %162 : f32 to vector<64x128xf32>
    %180 = arith.mulf %179, %10 : vector<64x128xf32>
    %181 = vector.broadcast %163 : f32 to vector<64x128xf32>
    %182 = arith.mulf %181, %6 : vector<64x128xf32>
    %183 = arith.addf %180, %182 : vector<64x128xf32>
    %184 = vector.broadcast %164 : f32 to vector<64x128xf32>
    %185 = arith.addf %183, %184 : vector<64x128xf32>
    %cst_19 = arith.constant 0.000000e+00 : f32
    %186 = vector.broadcast %cst_19 : f32 to vector<64x128xf32>
    %187 = arith.cmpf oge, %171, %186 : vector<64x128xf32>
    %cst_20 = arith.constant 0.000000e+00 : f32
    %188 = vector.broadcast %cst_20 : f32 to vector<64x128xf32>
    %189 = arith.cmpf oge, %178, %188 : vector<64x128xf32>
    %190 = arith.andi %187, %189 : vector<64x128xi1>
    %cst_21 = arith.constant 0.000000e+00 : f32
    %191 = vector.broadcast %cst_21 : f32 to vector<64x128xf32>
    %192 = arith.cmpf oge, %185, %191 : vector<64x128xf32>
    %193 = arith.andi %190, %192 : vector<64x128xi1>
    %cst_22 = arith.constant 0.000000e+00 : f32
    %194 = vector.broadcast %cst_22 : f32 to vector<64x128xf32>
    %195 = arith.cmpf ole, %171, %194 : vector<64x128xf32>
    %cst_23 = arith.constant 0.000000e+00 : f32
    %196 = vector.broadcast %cst_23 : f32 to vector<64x128xf32>
    %197 = arith.cmpf ole, %178, %196 : vector<64x128xf32>
    %198 = arith.andi %195, %197 : vector<64x128xi1>
    %cst_24 = arith.constant 0.000000e+00 : f32
    %199 = vector.broadcast %cst_24 : f32 to vector<64x128xf32>
    %200 = arith.cmpf ole, %185, %199 : vector<64x128xf32>
    %201 = arith.andi %198, %200 : vector<64x128xi1>
    %202 = arith.ori %155, %193 : vector<64x128xi1>
    %203 = arith.ori %202, %201 : vector<64x128xi1>
    %c36 = arith.constant 36 : index
    %204 = memref.load %arg1[%c36] : memref<108xf32, #tpu.memory_space<smem>>
    %c37 = arith.constant 37 : index
    %205 = memref.load %arg1[%c37] : memref<108xf32, #tpu.memory_space<smem>>
    %c38 = arith.constant 38 : index
    %206 = memref.load %arg1[%c38] : memref<108xf32, #tpu.memory_space<smem>>
    %c39 = arith.constant 39 : index
    %207 = memref.load %arg1[%c39] : memref<108xf32, #tpu.memory_space<smem>>
    %c40 = arith.constant 40 : index
    %208 = memref.load %arg1[%c40] : memref<108xf32, #tpu.memory_space<smem>>
    %c41 = arith.constant 41 : index
    %209 = memref.load %arg1[%c41] : memref<108xf32, #tpu.memory_space<smem>>
    %c42 = arith.constant 42 : index
    %210 = memref.load %arg1[%c42] : memref<108xf32, #tpu.memory_space<smem>>
    %c43 = arith.constant 43 : index
    %211 = memref.load %arg1[%c43] : memref<108xf32, #tpu.memory_space<smem>>
    %c44 = arith.constant 44 : index
    %212 = memref.load %arg1[%c44] : memref<108xf32, #tpu.memory_space<smem>>
    %213 = vector.broadcast %204 : f32 to vector<64x128xf32>
    %214 = arith.mulf %213, %10 : vector<64x128xf32>
    %215 = vector.broadcast %205 : f32 to vector<64x128xf32>
    %216 = arith.mulf %215, %6 : vector<64x128xf32>
    %217 = arith.addf %214, %216 : vector<64x128xf32>
    %218 = vector.broadcast %206 : f32 to vector<64x128xf32>
    %219 = arith.addf %217, %218 : vector<64x128xf32>
    %220 = vector.broadcast %207 : f32 to vector<64x128xf32>
    %221 = arith.mulf %220, %10 : vector<64x128xf32>
    %222 = vector.broadcast %208 : f32 to vector<64x128xf32>
    %223 = arith.mulf %222, %6 : vector<64x128xf32>
    %224 = arith.addf %221, %223 : vector<64x128xf32>
    %225 = vector.broadcast %209 : f32 to vector<64x128xf32>
    %226 = arith.addf %224, %225 : vector<64x128xf32>
    %227 = vector.broadcast %210 : f32 to vector<64x128xf32>
    %228 = arith.mulf %227, %10 : vector<64x128xf32>
    %229 = vector.broadcast %211 : f32 to vector<64x128xf32>
    %230 = arith.mulf %229, %6 : vector<64x128xf32>
    %231 = arith.addf %228, %230 : vector<64x128xf32>
    %232 = vector.broadcast %212 : f32 to vector<64x128xf32>
    %233 = arith.addf %231, %232 : vector<64x128xf32>
    %cst_25 = arith.constant 0.000000e+00 : f32
    %234 = vector.broadcast %cst_25 : f32 to vector<64x128xf32>
    %235 = arith.cmpf oge, %219, %234 : vector<64x128xf32>
    %cst_26 = arith.constant 0.000000e+00 : f32
    %236 = vector.broadcast %cst_26 : f32 to vector<64x128xf32>
    %237 = arith.cmpf oge, %226, %236 : vector<64x128xf32>
    %238 = arith.andi %235, %237 : vector<64x128xi1>
    %cst_27 = arith.constant 0.000000e+00 : f32
    %239 = vector.broadcast %cst_27 : f32 to vector<64x128xf32>
    %240 = arith.cmpf oge, %233, %239 : vector<64x128xf32>
    %241 = arith.andi %238, %240 : vector<64x128xi1>
    %cst_28 = arith.constant 0.000000e+00 : f32
    %242 = vector.broadcast %cst_28 : f32 to vector<64x128xf32>
    %243 = arith.cmpf ole, %219, %242 : vector<64x128xf32>
    %cst_29 = arith.constant 0.000000e+00 : f32
    %244 = vector.broadcast %cst_29 : f32 to vector<64x128xf32>
    %245 = arith.cmpf ole, %226, %244 : vector<64x128xf32>
    %246 = arith.andi %243, %245 : vector<64x128xi1>
    %cst_30 = arith.constant 0.000000e+00 : f32
    %247 = vector.broadcast %cst_30 : f32 to vector<64x128xf32>
    %248 = arith.cmpf ole, %233, %247 : vector<64x128xf32>
    %249 = arith.andi %246, %248 : vector<64x128xi1>
    %250 = arith.ori %203, %241 : vector<64x128xi1>
    %251 = arith.ori %250, %249 : vector<64x128xi1>
    %c45 = arith.constant 45 : index
    %252 = memref.load %arg1[%c45] : memref<108xf32, #tpu.memory_space<smem>>
    %c46 = arith.constant 46 : index
    %253 = memref.load %arg1[%c46] : memref<108xf32, #tpu.memory_space<smem>>
    %c47 = arith.constant 47 : index
    %254 = memref.load %arg1[%c47] : memref<108xf32, #tpu.memory_space<smem>>
    %c48 = arith.constant 48 : index
    %255 = memref.load %arg1[%c48] : memref<108xf32, #tpu.memory_space<smem>>
    %c49 = arith.constant 49 : index
    %256 = memref.load %arg1[%c49] : memref<108xf32, #tpu.memory_space<smem>>
    %c50 = arith.constant 50 : index
    %257 = memref.load %arg1[%c50] : memref<108xf32, #tpu.memory_space<smem>>
    %c51 = arith.constant 51 : index
    %258 = memref.load %arg1[%c51] : memref<108xf32, #tpu.memory_space<smem>>
    %c52 = arith.constant 52 : index
    %259 = memref.load %arg1[%c52] : memref<108xf32, #tpu.memory_space<smem>>
    %c53 = arith.constant 53 : index
    %260 = memref.load %arg1[%c53] : memref<108xf32, #tpu.memory_space<smem>>
    %261 = vector.broadcast %252 : f32 to vector<64x128xf32>
    %262 = arith.mulf %261, %10 : vector<64x128xf32>
    %263 = vector.broadcast %253 : f32 to vector<64x128xf32>
    %264 = arith.mulf %263, %6 : vector<64x128xf32>
    %265 = arith.addf %262, %264 : vector<64x128xf32>
    %266 = vector.broadcast %254 : f32 to vector<64x128xf32>
    %267 = arith.addf %265, %266 : vector<64x128xf32>
    %268 = vector.broadcast %255 : f32 to vector<64x128xf32>
    %269 = arith.mulf %268, %10 : vector<64x128xf32>
    %270 = vector.broadcast %256 : f32 to vector<64x128xf32>
    %271 = arith.mulf %270, %6 : vector<64x128xf32>
    %272 = arith.addf %269, %271 : vector<64x128xf32>
    %273 = vector.broadcast %257 : f32 to vector<64x128xf32>
    %274 = arith.addf %272, %273 : vector<64x128xf32>
    %275 = vector.broadcast %258 : f32 to vector<64x128xf32>
    %276 = arith.mulf %275, %10 : vector<64x128xf32>
    %277 = vector.broadcast %259 : f32 to vector<64x128xf32>
    %278 = arith.mulf %277, %6 : vector<64x128xf32>
    %279 = arith.addf %276, %278 : vector<64x128xf32>
    %280 = vector.broadcast %260 : f32 to vector<64x128xf32>
    %281 = arith.addf %279, %280 : vector<64x128xf32>
    %cst_31 = arith.constant 0.000000e+00 : f32
    %282 = vector.broadcast %cst_31 : f32 to vector<64x128xf32>
    %283 = arith.cmpf oge, %267, %282 : vector<64x128xf32>
    %cst_32 = arith.constant 0.000000e+00 : f32
    %284 = vector.broadcast %cst_32 : f32 to vector<64x128xf32>
    %285 = arith.cmpf oge, %274, %284 : vector<64x128xf32>
    %286 = arith.andi %283, %285 : vector<64x128xi1>
    %cst_33 = arith.constant 0.000000e+00 : f32
    %287 = vector.broadcast %cst_33 : f32 to vector<64x128xf32>
    %288 = arith.cmpf oge, %281, %287 : vector<64x128xf32>
    %289 = arith.andi %286, %288 : vector<64x128xi1>
    %cst_34 = arith.constant 0.000000e+00 : f32
    %290 = vector.broadcast %cst_34 : f32 to vector<64x128xf32>
    %291 = arith.cmpf ole, %267, %290 : vector<64x128xf32>
    %cst_35 = arith.constant 0.000000e+00 : f32
    %292 = vector.broadcast %cst_35 : f32 to vector<64x128xf32>
    %293 = arith.cmpf ole, %274, %292 : vector<64x128xf32>
    %294 = arith.andi %291, %293 : vector<64x128xi1>
    %cst_36 = arith.constant 0.000000e+00 : f32
    %295 = vector.broadcast %cst_36 : f32 to vector<64x128xf32>
    %296 = arith.cmpf ole, %281, %295 : vector<64x128xf32>
    %297 = arith.andi %294, %296 : vector<64x128xi1>
    %298 = arith.ori %251, %289 : vector<64x128xi1>
    %299 = arith.ori %298, %297 : vector<64x128xi1>
    %c54 = arith.constant 54 : index
    %300 = memref.load %arg1[%c54] : memref<108xf32, #tpu.memory_space<smem>>
    %c55 = arith.constant 55 : index
    %301 = memref.load %arg1[%c55] : memref<108xf32, #tpu.memory_space<smem>>
    %c56 = arith.constant 56 : index
    %302 = memref.load %arg1[%c56] : memref<108xf32, #tpu.memory_space<smem>>
    %c57 = arith.constant 57 : index
    %303 = memref.load %arg1[%c57] : memref<108xf32, #tpu.memory_space<smem>>
    %c58 = arith.constant 58 : index
    %304 = memref.load %arg1[%c58] : memref<108xf32, #tpu.memory_space<smem>>
    %c59 = arith.constant 59 : index
    %305 = memref.load %arg1[%c59] : memref<108xf32, #tpu.memory_space<smem>>
    %c60 = arith.constant 60 : index
    %306 = memref.load %arg1[%c60] : memref<108xf32, #tpu.memory_space<smem>>
    %c61 = arith.constant 61 : index
    %307 = memref.load %arg1[%c61] : memref<108xf32, #tpu.memory_space<smem>>
    %c62 = arith.constant 62 : index
    %308 = memref.load %arg1[%c62] : memref<108xf32, #tpu.memory_space<smem>>
    %309 = vector.broadcast %300 : f32 to vector<64x128xf32>
    %310 = arith.mulf %309, %10 : vector<64x128xf32>
    %311 = vector.broadcast %301 : f32 to vector<64x128xf32>
    %312 = arith.mulf %311, %6 : vector<64x128xf32>
    %313 = arith.addf %310, %312 : vector<64x128xf32>
    %314 = vector.broadcast %302 : f32 to vector<64x128xf32>
    %315 = arith.addf %313, %314 : vector<64x128xf32>
    %316 = vector.broadcast %303 : f32 to vector<64x128xf32>
    %317 = arith.mulf %316, %10 : vector<64x128xf32>
    %318 = vector.broadcast %304 : f32 to vector<64x128xf32>
    %319 = arith.mulf %318, %6 : vector<64x128xf32>
    %320 = arith.addf %317, %319 : vector<64x128xf32>
    %321 = vector.broadcast %305 : f32 to vector<64x128xf32>
    %322 = arith.addf %320, %321 : vector<64x128xf32>
    %323 = vector.broadcast %306 : f32 to vector<64x128xf32>
    %324 = arith.mulf %323, %10 : vector<64x128xf32>
    %325 = vector.broadcast %307 : f32 to vector<64x128xf32>
    %326 = arith.mulf %325, %6 : vector<64x128xf32>
    %327 = arith.addf %324, %326 : vector<64x128xf32>
    %328 = vector.broadcast %308 : f32 to vector<64x128xf32>
    %329 = arith.addf %327, %328 : vector<64x128xf32>
    %cst_37 = arith.constant 0.000000e+00 : f32
    %330 = vector.broadcast %cst_37 : f32 to vector<64x128xf32>
    %331 = arith.cmpf oge, %315, %330 : vector<64x128xf32>
    %cst_38 = arith.constant 0.000000e+00 : f32
    %332 = vector.broadcast %cst_38 : f32 to vector<64x128xf32>
    %333 = arith.cmpf oge, %322, %332 : vector<64x128xf32>
    %334 = arith.andi %331, %333 : vector<64x128xi1>
    %cst_39 = arith.constant 0.000000e+00 : f32
    %335 = vector.broadcast %cst_39 : f32 to vector<64x128xf32>
    %336 = arith.cmpf oge, %329, %335 : vector<64x128xf32>
    %337 = arith.andi %334, %336 : vector<64x128xi1>
    %cst_40 = arith.constant 0.000000e+00 : f32
    %338 = vector.broadcast %cst_40 : f32 to vector<64x128xf32>
    %339 = arith.cmpf ole, %315, %338 : vector<64x128xf32>
    %cst_41 = arith.constant 0.000000e+00 : f32
    %340 = vector.broadcast %cst_41 : f32 to vector<64x128xf32>
    %341 = arith.cmpf ole, %322, %340 : vector<64x128xf32>
    %342 = arith.andi %339, %341 : vector<64x128xi1>
    %cst_42 = arith.constant 0.000000e+00 : f32
    %343 = vector.broadcast %cst_42 : f32 to vector<64x128xf32>
    %344 = arith.cmpf ole, %329, %343 : vector<64x128xf32>
    %345 = arith.andi %342, %344 : vector<64x128xi1>
    %346 = arith.ori %299, %337 : vector<64x128xi1>
    %347 = arith.ori %346, %345 : vector<64x128xi1>
    %c63 = arith.constant 63 : index
    %348 = memref.load %arg1[%c63] : memref<108xf32, #tpu.memory_space<smem>>
    %c64 = arith.constant 64 : index
    %349 = memref.load %arg1[%c64] : memref<108xf32, #tpu.memory_space<smem>>
    %c65 = arith.constant 65 : index
    %350 = memref.load %arg1[%c65] : memref<108xf32, #tpu.memory_space<smem>>
    %c66 = arith.constant 66 : index
    %351 = memref.load %arg1[%c66] : memref<108xf32, #tpu.memory_space<smem>>
    %c67 = arith.constant 67 : index
    %352 = memref.load %arg1[%c67] : memref<108xf32, #tpu.memory_space<smem>>
    %c68 = arith.constant 68 : index
    %353 = memref.load %arg1[%c68] : memref<108xf32, #tpu.memory_space<smem>>
    %c69 = arith.constant 69 : index
    %354 = memref.load %arg1[%c69] : memref<108xf32, #tpu.memory_space<smem>>
    %c70 = arith.constant 70 : index
    %355 = memref.load %arg1[%c70] : memref<108xf32, #tpu.memory_space<smem>>
    %c71 = arith.constant 71 : index
    %356 = memref.load %arg1[%c71] : memref<108xf32, #tpu.memory_space<smem>>
    %357 = vector.broadcast %348 : f32 to vector<64x128xf32>
    %358 = arith.mulf %357, %10 : vector<64x128xf32>
    %359 = vector.broadcast %349 : f32 to vector<64x128xf32>
    %360 = arith.mulf %359, %6 : vector<64x128xf32>
    %361 = arith.addf %358, %360 : vector<64x128xf32>
    %362 = vector.broadcast %350 : f32 to vector<64x128xf32>
    %363 = arith.addf %361, %362 : vector<64x128xf32>
    %364 = vector.broadcast %351 : f32 to vector<64x128xf32>
    %365 = arith.mulf %364, %10 : vector<64x128xf32>
    %366 = vector.broadcast %352 : f32 to vector<64x128xf32>
    %367 = arith.mulf %366, %6 : vector<64x128xf32>
    %368 = arith.addf %365, %367 : vector<64x128xf32>
    %369 = vector.broadcast %353 : f32 to vector<64x128xf32>
    %370 = arith.addf %368, %369 : vector<64x128xf32>
    %371 = vector.broadcast %354 : f32 to vector<64x128xf32>
    %372 = arith.mulf %371, %10 : vector<64x128xf32>
    %373 = vector.broadcast %355 : f32 to vector<64x128xf32>
    %374 = arith.mulf %373, %6 : vector<64x128xf32>
    %375 = arith.addf %372, %374 : vector<64x128xf32>
    %376 = vector.broadcast %356 : f32 to vector<64x128xf32>
    %377 = arith.addf %375, %376 : vector<64x128xf32>
    %cst_43 = arith.constant 0.000000e+00 : f32
    %378 = vector.broadcast %cst_43 : f32 to vector<64x128xf32>
    %379 = arith.cmpf oge, %363, %378 : vector<64x128xf32>
    %cst_44 = arith.constant 0.000000e+00 : f32
    %380 = vector.broadcast %cst_44 : f32 to vector<64x128xf32>
    %381 = arith.cmpf oge, %370, %380 : vector<64x128xf32>
    %382 = arith.andi %379, %381 : vector<64x128xi1>
    %cst_45 = arith.constant 0.000000e+00 : f32
    %383 = vector.broadcast %cst_45 : f32 to vector<64x128xf32>
    %384 = arith.cmpf oge, %377, %383 : vector<64x128xf32>
    %385 = arith.andi %382, %384 : vector<64x128xi1>
    %cst_46 = arith.constant 0.000000e+00 : f32
    %386 = vector.broadcast %cst_46 : f32 to vector<64x128xf32>
    %387 = arith.cmpf ole, %363, %386 : vector<64x128xf32>
    %cst_47 = arith.constant 0.000000e+00 : f32
    %388 = vector.broadcast %cst_47 : f32 to vector<64x128xf32>
    %389 = arith.cmpf ole, %370, %388 : vector<64x128xf32>
    %390 = arith.andi %387, %389 : vector<64x128xi1>
    %cst_48 = arith.constant 0.000000e+00 : f32
    %391 = vector.broadcast %cst_48 : f32 to vector<64x128xf32>
    %392 = arith.cmpf ole, %377, %391 : vector<64x128xf32>
    %393 = arith.andi %390, %392 : vector<64x128xi1>
    %394 = arith.ori %347, %385 : vector<64x128xi1>
    %395 = arith.ori %394, %393 : vector<64x128xi1>
    %c72 = arith.constant 72 : index
    %396 = memref.load %arg1[%c72] : memref<108xf32, #tpu.memory_space<smem>>
    %c73 = arith.constant 73 : index
    %397 = memref.load %arg1[%c73] : memref<108xf32, #tpu.memory_space<smem>>
    %c74 = arith.constant 74 : index
    %398 = memref.load %arg1[%c74] : memref<108xf32, #tpu.memory_space<smem>>
    %c75 = arith.constant 75 : index
    %399 = memref.load %arg1[%c75] : memref<108xf32, #tpu.memory_space<smem>>
    %c76 = arith.constant 76 : index
    %400 = memref.load %arg1[%c76] : memref<108xf32, #tpu.memory_space<smem>>
    %c77 = arith.constant 77 : index
    %401 = memref.load %arg1[%c77] : memref<108xf32, #tpu.memory_space<smem>>
    %c78 = arith.constant 78 : index
    %402 = memref.load %arg1[%c78] : memref<108xf32, #tpu.memory_space<smem>>
    %c79 = arith.constant 79 : index
    %403 = memref.load %arg1[%c79] : memref<108xf32, #tpu.memory_space<smem>>
    %c80 = arith.constant 80 : index
    %404 = memref.load %arg1[%c80] : memref<108xf32, #tpu.memory_space<smem>>
    %405 = vector.broadcast %396 : f32 to vector<64x128xf32>
    %406 = arith.mulf %405, %10 : vector<64x128xf32>
    %407 = vector.broadcast %397 : f32 to vector<64x128xf32>
    %408 = arith.mulf %407, %6 : vector<64x128xf32>
    %409 = arith.addf %406, %408 : vector<64x128xf32>
    %410 = vector.broadcast %398 : f32 to vector<64x128xf32>
    %411 = arith.addf %409, %410 : vector<64x128xf32>
    %412 = vector.broadcast %399 : f32 to vector<64x128xf32>
    %413 = arith.mulf %412, %10 : vector<64x128xf32>
    %414 = vector.broadcast %400 : f32 to vector<64x128xf32>
    %415 = arith.mulf %414, %6 : vector<64x128xf32>
    %416 = arith.addf %413, %415 : vector<64x128xf32>
    %417 = vector.broadcast %401 : f32 to vector<64x128xf32>
    %418 = arith.addf %416, %417 : vector<64x128xf32>
    %419 = vector.broadcast %402 : f32 to vector<64x128xf32>
    %420 = arith.mulf %419, %10 : vector<64x128xf32>
    %421 = vector.broadcast %403 : f32 to vector<64x128xf32>
    %422 = arith.mulf %421, %6 : vector<64x128xf32>
    %423 = arith.addf %420, %422 : vector<64x128xf32>
    %424 = vector.broadcast %404 : f32 to vector<64x128xf32>
    %425 = arith.addf %423, %424 : vector<64x128xf32>
    %cst_49 = arith.constant 0.000000e+00 : f32
    %426 = vector.broadcast %cst_49 : f32 to vector<64x128xf32>
    %427 = arith.cmpf oge, %411, %426 : vector<64x128xf32>
    %cst_50 = arith.constant 0.000000e+00 : f32
    %428 = vector.broadcast %cst_50 : f32 to vector<64x128xf32>
    %429 = arith.cmpf oge, %418, %428 : vector<64x128xf32>
    %430 = arith.andi %427, %429 : vector<64x128xi1>
    %cst_51 = arith.constant 0.000000e+00 : f32
    %431 = vector.broadcast %cst_51 : f32 to vector<64x128xf32>
    %432 = arith.cmpf oge, %425, %431 : vector<64x128xf32>
    %433 = arith.andi %430, %432 : vector<64x128xi1>
    %cst_52 = arith.constant 0.000000e+00 : f32
    %434 = vector.broadcast %cst_52 : f32 to vector<64x128xf32>
    %435 = arith.cmpf ole, %411, %434 : vector<64x128xf32>
    %cst_53 = arith.constant 0.000000e+00 : f32
    %436 = vector.broadcast %cst_53 : f32 to vector<64x128xf32>
    %437 = arith.cmpf ole, %418, %436 : vector<64x128xf32>
    %438 = arith.andi %435, %437 : vector<64x128xi1>
    %cst_54 = arith.constant 0.000000e+00 : f32
    %439 = vector.broadcast %cst_54 : f32 to vector<64x128xf32>
    %440 = arith.cmpf ole, %425, %439 : vector<64x128xf32>
    %441 = arith.andi %438, %440 : vector<64x128xi1>
    %442 = arith.ori %395, %433 : vector<64x128xi1>
    %443 = arith.ori %442, %441 : vector<64x128xi1>
    %c81 = arith.constant 81 : index
    %444 = memref.load %arg1[%c81] : memref<108xf32, #tpu.memory_space<smem>>
    %c82 = arith.constant 82 : index
    %445 = memref.load %arg1[%c82] : memref<108xf32, #tpu.memory_space<smem>>
    %c83 = arith.constant 83 : index
    %446 = memref.load %arg1[%c83] : memref<108xf32, #tpu.memory_space<smem>>
    %c84 = arith.constant 84 : index
    %447 = memref.load %arg1[%c84] : memref<108xf32, #tpu.memory_space<smem>>
    %c85 = arith.constant 85 : index
    %448 = memref.load %arg1[%c85] : memref<108xf32, #tpu.memory_space<smem>>
    %c86 = arith.constant 86 : index
    %449 = memref.load %arg1[%c86] : memref<108xf32, #tpu.memory_space<smem>>
    %c87 = arith.constant 87 : index
    %450 = memref.load %arg1[%c87] : memref<108xf32, #tpu.memory_space<smem>>
    %c88 = arith.constant 88 : index
    %451 = memref.load %arg1[%c88] : memref<108xf32, #tpu.memory_space<smem>>
    %c89 = arith.constant 89 : index
    %452 = memref.load %arg1[%c89] : memref<108xf32, #tpu.memory_space<smem>>
    %453 = vector.broadcast %444 : f32 to vector<64x128xf32>
    %454 = arith.mulf %453, %10 : vector<64x128xf32>
    %455 = vector.broadcast %445 : f32 to vector<64x128xf32>
    %456 = arith.mulf %455, %6 : vector<64x128xf32>
    %457 = arith.addf %454, %456 : vector<64x128xf32>
    %458 = vector.broadcast %446 : f32 to vector<64x128xf32>
    %459 = arith.addf %457, %458 : vector<64x128xf32>
    %460 = vector.broadcast %447 : f32 to vector<64x128xf32>
    %461 = arith.mulf %460, %10 : vector<64x128xf32>
    %462 = vector.broadcast %448 : f32 to vector<64x128xf32>
    %463 = arith.mulf %462, %6 : vector<64x128xf32>
    %464 = arith.addf %461, %463 : vector<64x128xf32>
    %465 = vector.broadcast %449 : f32 to vector<64x128xf32>
    %466 = arith.addf %464, %465 : vector<64x128xf32>
    %467 = vector.broadcast %450 : f32 to vector<64x128xf32>
    %468 = arith.mulf %467, %10 : vector<64x128xf32>
    %469 = vector.broadcast %451 : f32 to vector<64x128xf32>
    %470 = arith.mulf %469, %6 : vector<64x128xf32>
    %471 = arith.addf %468, %470 : vector<64x128xf32>
    %472 = vector.broadcast %452 : f32 to vector<64x128xf32>
    %473 = arith.addf %471, %472 : vector<64x128xf32>
    %cst_55 = arith.constant 0.000000e+00 : f32
    %474 = vector.broadcast %cst_55 : f32 to vector<64x128xf32>
    %475 = arith.cmpf oge, %459, %474 : vector<64x128xf32>
    %cst_56 = arith.constant 0.000000e+00 : f32
    %476 = vector.broadcast %cst_56 : f32 to vector<64x128xf32>
    %477 = arith.cmpf oge, %466, %476 : vector<64x128xf32>
    %478 = arith.andi %475, %477 : vector<64x128xi1>
    %cst_57 = arith.constant 0.000000e+00 : f32
    %479 = vector.broadcast %cst_57 : f32 to vector<64x128xf32>
    %480 = arith.cmpf oge, %473, %479 : vector<64x128xf32>
    %481 = arith.andi %478, %480 : vector<64x128xi1>
    %cst_58 = arith.constant 0.000000e+00 : f32
    %482 = vector.broadcast %cst_58 : f32 to vector<64x128xf32>
    %483 = arith.cmpf ole, %459, %482 : vector<64x128xf32>
    %cst_59 = arith.constant 0.000000e+00 : f32
    %484 = vector.broadcast %cst_59 : f32 to vector<64x128xf32>
    %485 = arith.cmpf ole, %466, %484 : vector<64x128xf32>
    %486 = arith.andi %483, %485 : vector<64x128xi1>
    %cst_60 = arith.constant 0.000000e+00 : f32
    %487 = vector.broadcast %cst_60 : f32 to vector<64x128xf32>
    %488 = arith.cmpf ole, %473, %487 : vector<64x128xf32>
    %489 = arith.andi %486, %488 : vector<64x128xi1>
    %490 = arith.ori %443, %481 : vector<64x128xi1>
    %491 = arith.ori %490, %489 : vector<64x128xi1>
    %c90 = arith.constant 90 : index
    %492 = memref.load %arg1[%c90] : memref<108xf32, #tpu.memory_space<smem>>
    %c91 = arith.constant 91 : index
    %493 = memref.load %arg1[%c91] : memref<108xf32, #tpu.memory_space<smem>>
    %c92 = arith.constant 92 : index
    %494 = memref.load %arg1[%c92] : memref<108xf32, #tpu.memory_space<smem>>
    %c93 = arith.constant 93 : index
    %495 = memref.load %arg1[%c93] : memref<108xf32, #tpu.memory_space<smem>>
    %c94 = arith.constant 94 : index
    %496 = memref.load %arg1[%c94] : memref<108xf32, #tpu.memory_space<smem>>
    %c95 = arith.constant 95 : index
    %497 = memref.load %arg1[%c95] : memref<108xf32, #tpu.memory_space<smem>>
    %c96 = arith.constant 96 : index
    %498 = memref.load %arg1[%c96] : memref<108xf32, #tpu.memory_space<smem>>
    %c97 = arith.constant 97 : index
    %499 = memref.load %arg1[%c97] : memref<108xf32, #tpu.memory_space<smem>>
    %c98 = arith.constant 98 : index
    %500 = memref.load %arg1[%c98] : memref<108xf32, #tpu.memory_space<smem>>
    %501 = vector.broadcast %492 : f32 to vector<64x128xf32>
    %502 = arith.mulf %501, %10 : vector<64x128xf32>
    %503 = vector.broadcast %493 : f32 to vector<64x128xf32>
    %504 = arith.mulf %503, %6 : vector<64x128xf32>
    %505 = arith.addf %502, %504 : vector<64x128xf32>
    %506 = vector.broadcast %494 : f32 to vector<64x128xf32>
    %507 = arith.addf %505, %506 : vector<64x128xf32>
    %508 = vector.broadcast %495 : f32 to vector<64x128xf32>
    %509 = arith.mulf %508, %10 : vector<64x128xf32>
    %510 = vector.broadcast %496 : f32 to vector<64x128xf32>
    %511 = arith.mulf %510, %6 : vector<64x128xf32>
    %512 = arith.addf %509, %511 : vector<64x128xf32>
    %513 = vector.broadcast %497 : f32 to vector<64x128xf32>
    %514 = arith.addf %512, %513 : vector<64x128xf32>
    %515 = vector.broadcast %498 : f32 to vector<64x128xf32>
    %516 = arith.mulf %515, %10 : vector<64x128xf32>
    %517 = vector.broadcast %499 : f32 to vector<64x128xf32>
    %518 = arith.mulf %517, %6 : vector<64x128xf32>
    %519 = arith.addf %516, %518 : vector<64x128xf32>
    %520 = vector.broadcast %500 : f32 to vector<64x128xf32>
    %521 = arith.addf %519, %520 : vector<64x128xf32>
    %cst_61 = arith.constant 0.000000e+00 : f32
    %522 = vector.broadcast %cst_61 : f32 to vector<64x128xf32>
    %523 = arith.cmpf oge, %507, %522 : vector<64x128xf32>
    %cst_62 = arith.constant 0.000000e+00 : f32
    %524 = vector.broadcast %cst_62 : f32 to vector<64x128xf32>
    %525 = arith.cmpf oge, %514, %524 : vector<64x128xf32>
    %526 = arith.andi %523, %525 : vector<64x128xi1>
    %cst_63 = arith.constant 0.000000e+00 : f32
    %527 = vector.broadcast %cst_63 : f32 to vector<64x128xf32>
    %528 = arith.cmpf oge, %521, %527 : vector<64x128xf32>
    %529 = arith.andi %526, %528 : vector<64x128xi1>
    %cst_64 = arith.constant 0.000000e+00 : f32
    %530 = vector.broadcast %cst_64 : f32 to vector<64x128xf32>
    %531 = arith.cmpf ole, %507, %530 : vector<64x128xf32>
    %cst_65 = arith.constant 0.000000e+00 : f32
    %532 = vector.broadcast %cst_65 : f32 to vector<64x128xf32>
    %533 = arith.cmpf ole, %514, %532 : vector<64x128xf32>
    %534 = arith.andi %531, %533 : vector<64x128xi1>
    %cst_66 = arith.constant 0.000000e+00 : f32
    %535 = vector.broadcast %cst_66 : f32 to vector<64x128xf32>
    %536 = arith.cmpf ole, %521, %535 : vector<64x128xf32>
    %537 = arith.andi %534, %536 : vector<64x128xi1>
    %538 = arith.ori %491, %529 : vector<64x128xi1>
    %539 = arith.ori %538, %537 : vector<64x128xi1>
    %c99 = arith.constant 99 : index
    %540 = memref.load %arg1[%c99] : memref<108xf32, #tpu.memory_space<smem>>
    %c100 = arith.constant 100 : index
    %541 = memref.load %arg1[%c100] : memref<108xf32, #tpu.memory_space<smem>>
    %c101 = arith.constant 101 : index
    %542 = memref.load %arg1[%c101] : memref<108xf32, #tpu.memory_space<smem>>
    %c102 = arith.constant 102 : index
    %543 = memref.load %arg1[%c102] : memref<108xf32, #tpu.memory_space<smem>>
    %c103 = arith.constant 103 : index
    %544 = memref.load %arg1[%c103] : memref<108xf32, #tpu.memory_space<smem>>
    %c104 = arith.constant 104 : index
    %545 = memref.load %arg1[%c104] : memref<108xf32, #tpu.memory_space<smem>>
    %c105 = arith.constant 105 : index
    %546 = memref.load %arg1[%c105] : memref<108xf32, #tpu.memory_space<smem>>
    %c106 = arith.constant 106 : index
    %547 = memref.load %arg1[%c106] : memref<108xf32, #tpu.memory_space<smem>>
    %c107 = arith.constant 107 : index
    %548 = memref.load %arg1[%c107] : memref<108xf32, #tpu.memory_space<smem>>
    %549 = vector.broadcast %540 : f32 to vector<64x128xf32>
    %550 = arith.mulf %549, %10 : vector<64x128xf32>
    %551 = vector.broadcast %541 : f32 to vector<64x128xf32>
    %552 = arith.mulf %551, %6 : vector<64x128xf32>
    %553 = arith.addf %550, %552 : vector<64x128xf32>
    %554 = vector.broadcast %542 : f32 to vector<64x128xf32>
    %555 = arith.addf %553, %554 : vector<64x128xf32>
    %556 = vector.broadcast %543 : f32 to vector<64x128xf32>
    %557 = arith.mulf %556, %10 : vector<64x128xf32>
    %558 = vector.broadcast %544 : f32 to vector<64x128xf32>
    %559 = arith.mulf %558, %6 : vector<64x128xf32>
    %560 = arith.addf %557, %559 : vector<64x128xf32>
    %561 = vector.broadcast %545 : f32 to vector<64x128xf32>
    %562 = arith.addf %560, %561 : vector<64x128xf32>
    %563 = vector.broadcast %546 : f32 to vector<64x128xf32>
    %564 = arith.mulf %563, %10 : vector<64x128xf32>
    %565 = vector.broadcast %547 : f32 to vector<64x128xf32>
    %566 = arith.mulf %565, %6 : vector<64x128xf32>
    %567 = arith.addf %564, %566 : vector<64x128xf32>
    %568 = vector.broadcast %548 : f32 to vector<64x128xf32>
    %569 = arith.addf %567, %568 : vector<64x128xf32>
    %cst_67 = arith.constant 0.000000e+00 : f32
    %570 = vector.broadcast %cst_67 : f32 to vector<64x128xf32>
    %571 = arith.cmpf oge, %555, %570 : vector<64x128xf32>
    %cst_68 = arith.constant 0.000000e+00 : f32
    %572 = vector.broadcast %cst_68 : f32 to vector<64x128xf32>
    %573 = arith.cmpf oge, %562, %572 : vector<64x128xf32>
    %574 = arith.andi %571, %573 : vector<64x128xi1>
    %cst_69 = arith.constant 0.000000e+00 : f32
    %575 = vector.broadcast %cst_69 : f32 to vector<64x128xf32>
    %576 = arith.cmpf oge, %569, %575 : vector<64x128xf32>
    %577 = arith.andi %574, %576 : vector<64x128xi1>
    %cst_70 = arith.constant 0.000000e+00 : f32
    %578 = vector.broadcast %cst_70 : f32 to vector<64x128xf32>
    %579 = arith.cmpf ole, %555, %578 : vector<64x128xf32>
    %cst_71 = arith.constant 0.000000e+00 : f32
    %580 = vector.broadcast %cst_71 : f32 to vector<64x128xf32>
    %581 = arith.cmpf ole, %562, %580 : vector<64x128xf32>
    %582 = arith.andi %579, %581 : vector<64x128xi1>
    %cst_72 = arith.constant 0.000000e+00 : f32
    %583 = vector.broadcast %cst_72 : f32 to vector<64x128xf32>
    %584 = arith.cmpf ole, %569, %583 : vector<64x128xf32>
    %585 = arith.andi %582, %584 : vector<64x128xi1>
    %586 = arith.ori %539, %577 : vector<64x128xi1>
    %587 = arith.ori %586, %585 : vector<64x128xi1>
    %588 = arith.extui %587 : vector<64x128xi1> to vector<64x128xi32>
    %589 = arith.sitofp %588 : vector<64x128xi32> to vector<64x128xf32>
    %c0_73 = arith.constant 0 : index
    %c0_74 = arith.constant 0 : index
    %590 = vector.load %arg2[%c0_73, %c0_74] : memref<64x128xf32, #tpu.memory_space<vmem>>, vector<64x128xf32>
    tpu.vector_store %arg2[%c0_73, %c0_74], %589 {strides = array<i32>} : memref<64x128xf32, #tpu.memory_space<vmem>>, vector<64x128xf32>,
    return
  }
  func.func @transform_0(%arg0: i32) -> i32 {
    %c0_i32 = arith.constant 0 : i32
    %c0_i32_0 = arith.constant 0 : i32
    return %c0_i32 : i32
  }
  func.func @transform_1(%arg0: i32) -> (i32, i32) {
    %c0_i32 = arith.constant 0 : i32
    %c0_i32_0 = arith.constant 0 : i32
    return %arg0, %c0_i32 : i32, i32
  }
}

</mosaic_0001>

<llo_original>
// kernel: tpu_custom_call.1
$region0: #{tpu_custom_call.1}
  #allocation0 [shape = 'u32[]', space=smem, size = 0x4, offset = 0x4, fixed_abs, tag = 'smem constant byte address 0x4 - core index']
  #allocation1 [shape = 'u32[144,128]{1,0:T(1,128)}', space=vmem, size = 0x12000, scoped, tag = 'internal scratch']
  %s0 = inlined_call_operand.hbm [shape: f32[108], index: 0, kind: input, shape index: {}]
  %s1 = inlined_call_operand.hbm [shape: f32[128,128], index: 1, kind: output, shape index: {}]
  %s2 = sld [smem:[#allocation0]]
  $region41: #{tpu_custom_call.1} parent=0
    _
  %s4 = ssub.s32 1, %s2
  %s5 = scalar_select 0, %s4, %s2
  $region1: #{tpu_custom_call.1} parent=0
    #allocation2 [shape = 'u8[512]{0}', space=smem, size = 0x200, scoped, tag = 'input window, operand 0, single buffered']
    #allocation3 [shape = 's32[2]{0}', space=sflag, size = 0x8, scoped, tag = 'scoped memory for tpu_custom_call.1']
    #allocation4 [shape = 's32[2]{0}', space=sflag, size = 0x8, scoped, tag = 'scoped memory for tpu_custom_call.1']
    #allocation5 [shape = 'u8[65536]{0}', space=vmem, size = 0x10000, scoped, tag = 'output window, operand 0']
    %6 = vsyncpa [#allocation4], 0
    %7 = vsyncpa [#allocation3], 0
    %s8 = scalar_lea.sflag [#allocation3], 1
    %9 = vsyncpa %s8, 0
    loop: start=0, step=1, limit=4
    $region2: #{tpu_custom_call.1} parent=1 // loop_pre_header
      _
    $region3: #{tpu_custom_call.1} parent=1 // loop_header
      %s11 = sphi 0, %s15
      %p12 = scmp.ge.s32.totalorder %s11, 4
      %s19 = sphi 0, %s19
      %s21 = sphi 0, %s19
      %s22 = sphi 0, %s21
      %s36 = sphi 0, %s22
      %s42 = sphi 0, %s44
      %s45 = sphi 0, %s42
      %s46 = sphi 0, %s45
      %s62 = sphi 0, %s46
    $region4: #{tpu_custom_call.1} parent=1 // loop_header_branch
      %14 = sbr.rel (%p12) target = $region8
    $region5: #{tpu_custom_call.1} parent=1 // loop_body
      %s16 = ssub.s32 %s11, 1
      %s17 = ssub.s32 %s11, 2
      %s18 = sadd.s32 %s11, 1
      %s20 = sadd.s32 %s19, 1
      %p23 = scmp.eq.s32.totalorder %s11, 1
      %p24 = scmp.ne.s32.totalorder %s19, %s21
      %p25 = scmp.eq.s32.totalorder %s11, 0
      %p26 = por %p24, %p25
      %p27 = scmp.ne.s32.totalorder %s19, %s21
      %p28 = scmp.eq.s32.totalorder %s16, 1
      %p29 = por %p27, %p28
      %p30 = scmp.ne.s32.totalorder %s21, %s22
      %p31 = scmp.eq.s32.totalorder %s16, 0
      %p32 = por %p30, %p31
      %p33 = scmp.ne.s32.totalorder %s21, %s22
      %p34 = scmp.eq.s32.totalorder %s17, 1
      %p35 = por %p33, %p34
      %p37 = scmp.ne.s32.totalorder %s22, %s36
      %p38 = scmp.eq.s32.totalorder %s17, 0
      %p39 = por %p37, %p38
      %s40 = ssub.s32 %s11, %s18
      %p41 = scmp.eq.s32.totalorder %s40, 0
      %s43 = sadd.s32 %s42, 1
      %s44 = scalar_select %p41, %s42, %s43
      %p47 = pneg %p41
      %p48 = scmp.eq.s32.totalorder %s11, 1
      %p49 = por %p47, %p48
      %p50 = scmp.ne.s32.totalorder %s42, %s45
      %p51 = scmp.eq.s32.totalorder %s11, 0
      %p52 = por %p50, %p51
      %p53 = scmp.ne.s32.totalorder %s42, %s45
      %p54 = scmp.eq.s32.totalorder %s16, 1
      %p55 = por %p53, %p54
      %p56 = scmp.ne.s32.totalorder %s45, %s46
      %p57 = scmp.eq.s32.totalorder %s16, 0
      %p58 = por %p56, %p57
      %p59 = scmp.ne.s32.totalorder %s45, %s46
      %p60 = scmp.eq.s32.totalorder %s17, 1
      %p61 = por %p59, %p60
      %p63 = scmp.ne.s32.totalorder %s46, %s62
      %p64 = scmp.eq.s32.totalorder %s17, 0
      %p65 = por %p63, %p64
      %p66 = scmp.le.s32.totalorder 1, %s11
      %p67 = scmp.lt.s32.totalorder %s11, 3
      %p68 = pnand %p66, %p67
      %p69 = pneg %p68
      // Predicated region
      $region9: #{tpu_custom_call.1} parent=5 // pred_check
        _
      $region10: #{tpu_custom_call.1} parent=5 // pred_check_branch
        %71 = sbr.rel (%p68) target = $region12
      $region11: #{tpu_custom_call.1} parent=5 // pred_region
        %s72 = ssub.s32 %s11, 1
        // Predicated region
        $region13: #{tpu_custom_call.1} parent=11 // pred_check
          %p73 = pneg %p32
        $region14: #{tpu_custom_call.1} parent=11 // pred_check_branch
          %75 = sbr.rel (%p73) target = $region16
        $region15: #{tpu_custom_call.1} parent=11 // pred_region
          %s77 = ssub.s32 16, 16
          %78 = vsyncadd [#allocation4], %s77
          %81 = dma.hbm_to_smem %s0, 16, [#allocation2], [#allocation4]
        $region16: #{tpu_custom_call.1} parent=11 // pred_fallthru
          _
      $region12: #{tpu_custom_call.1} parent=5 // pred_fallthru
        _
      %p82 = scmp.lt.s32.totalorder %s11, 2
      // Predicated region
      $region17: #{tpu_custom_call.1} parent=5 // pred_check
        %p83 = pneg %p82
      $region18: #{tpu_custom_call.1} parent=5 // pred_check_branch
        %85 = sbr.rel (%p83) target = $region20
      $region19: #{tpu_custom_call.1} parent=5 // pred_region
        _
      $region20: #{tpu_custom_call.1} parent=5 // pred_fallthru
        _
      %p86 = scmp.le.s32.totalorder 1, %s11
      %p87 = scmp.lt.s32.totalorder %s11, 3
      %p88 = pnand %p86, %p87
      %p89 = pneg %p88
      // Predicated region
      $region21: #{tpu_custom_call.1} parent=5 // pred_check
        _
      $region22: #{tpu_custom_call.1} parent=5 // pred_check_branch
        %91 = sbr.rel (%p88) target = $region24
      $region23: #{tpu_custom_call.1} parent=5 // pred_region
        %s92 = ssub.s32 %s11, 1
        // Predicated region
        $region25: #{tpu_custom_call.1} parent=23 // pred_check
          %p93 = pneg %p32
        $region26: #{tpu_custom_call.1} parent=23 // pred_check_branch
          %95 = sbr.rel (%p93) target = $region28
        $region27: #{tpu_custom_call.1} parent=23 // pred_region
          %96 = dma.done [#allocation4], 16
        $region28: #{tpu_custom_call.1} parent=23 // pred_fallthru
          _
        %97 = sfence
        %p98 = pneg %p32
        %p99 = pneg %p29
        %p100 = pneg %p58
        %p101 = pneg %p55
        %s102 = sand.u32 %s45, 1
        %s103 = scalar_lea.sflag [#allocation3], %s102
        %s104 = sand.u32 %s45, 1
        %s105 = smul.addr %s104, 64
        %s106 = scalar_lea.vmem [#allocation5], %s105
        %s107 = smul.u32 8, %s16
        %v108 = vlaneseq
        %v109 = vshrl.u32 %v108, 7
        %v110 = vadd.s32 %v109, 8
        %v111 = vadd.s32 %v109, 16
        %v112 = vadd.s32 %v109, 24
        %v113 = vadd.s32 %v109, 32
        %v114 = vadd.s32 %v109, 40
        %v115 = vadd.s32 %v109, 48
        %v116 = vadd.s32 %v109, 56
        %s117 = smul.u32 %s16, 64
        %v118 = vstv %s117
        %v119 = vadd.s32 %v109, %v118
        %v120 = vadd.s32 %v110, %v118
        %v121 = vadd.s32 %v111, %v118
        %v122 = vadd.s32 %v112, %v118
        %v123 = vadd.s32 %v113, %v118
        %v124 = vadd.s32 %v114, %v118
        %v125 = vadd.s32 %v115, %v118
        %v126 = vadd.s32 %v116, %v118
        %v127 = vcvt.s32.f32 %v119
        %v128 = vcvt.s32.f32 %v120
        %v129 = vcvt.s32.f32 %v121
        %v130 = vcvt.s32.f32 %v122
        %v131 = vcvt.s32.f32 %v123
        %v132 = vcvt.s32.f32 %v124
        %v133 = vcvt.s32.f32 %v125
        %v134 = vcvt.s32.f32 %v126
        %v135 = vadd.f32 %v127, 0.5
        %v136 = vadd.f32 %v128, 0.5
        %v137 = vadd.f32 %v129, 0.5
        %v138 = vadd.f32 %v130, 0.5
        %v139 = vadd.f32 %v131, 0.5
        %v140 = vadd.f32 %v132, 0.5
        %v141 = vadd.f32 %v133, 0.5
        %v142 = vadd.f32 %v134, 0.5
        %v143 = vlaneseq
        %v144 = vand.u32 %v143, 127
        %v145 = vcvt.s32.f32 %v144
        %v146 = vadd.f32 %v145, 0.5
        %s147 = sld [smem:[#allocation2]]
        %s148 = sld [smem:[#allocation2 + $0x1]]
        %s149 = sld [smem:[#allocation2 + $0x2]]
        %s150 = sld [smem:[#allocation2 + $0x3]]
        %s151 = sld [smem:[#allocation2 + $0x4]]
        %s152 = sld [smem:[#allocation2 + $0x5]]
        %s153 = sld [smem:[#allocation2 + $0x6]]
        %s154 = sld [smem:[#allocation2 + $0x7]]
        %s155 = sld [smem:[#allocation2 + $0x8]]
        %v156 = vstv %s147
        %v157 = vmul.f32 %v156, %v146
        %v158 = vstv %s148
        %v159 = vmul.f32 %v158, %v135
        %v160 = vmul.f32 %v158, %v136
        %v161 = vmul.f32 %v158, %v137
        %v162 = vmul.f32 %v158, %v138
        %v163 = vmul.f32 %v158, %v139
        %v164 = vmul.f32 %v158, %v140
        %v165 = vmul.f32 %v158, %v141
        %v166 = vmul.f32 %v158, %v142
        %v167 = vadd.f32 %v157, %v159
        %v168 = vadd.f32 %v157, %v160
        %v169 = vadd.f32 %v157, %v161
        %v170 = vadd.f32 %v157, %v162
        %v171 = vadd.f32 %v157, %v163
        %v172 = vadd.f32 %v157, %v164
        %v173 = vadd.f32 %v157, %v165
        %v174 = vadd.f32 %v157, %v166
        %v175 = vstv %s149
        %v176 = vadd.f32 %v167, %v175
        %v177 = vadd.f32 %v168, %v175
        %v178 = vadd.f32 %v169, %v175
        %v179 = vadd.f32 %v170, %v175
        %v180 = vadd.f32 %v171, %v175
        %v181 = vadd.f32 %v172, %v175
        %v182 = vadd.f32 %v173, %v175
        %v183 = vadd.f32 %v174, %v175
        %v184 = vstv %s150
        %v185 = vmul.f32 %v184, %v146
        %v186 = vstv %s151
        %v187 = vmul.f32 %v186, %v135
        %v188 = vmul.f32 %v186, %v136
        %v189 = vmul.f32 %v186, %v137
        %v190 = vmul.f32 %v186, %v138
        %v191 = vmul.f32 %v186, %v139
        %v192 = vmul.f32 %v186, %v140
        %v193 = vmul.f32 %v186, %v141
        %v194 = vmul.f32 %v186, %v142
        %v195 = vadd.f32 %v185, %v187
        %v196 = vadd.f32 %v185, %v188
        %v197 = vadd.f32 %v185, %v189
        %v198 = vadd.f32 %v185, %v190
        %v199 = vadd.f32 %v185, %v191
        %v200 = vadd.f32 %v185, %v192
        %v201 = vadd.f32 %v185, %v193
        %v202 = vadd.f32 %v185, %v194
        %v203 = vstv %s152
        %v204 = vadd.f32 %v195, %v203
        %v205 = vadd.f32 %v196, %v203
        %v206 = vadd.f32 %v197, %v203
        %v207 = vadd.f32 %v198, %v203
        %v208 = vadd.f32 %v199, %v203
        %v209 = vadd.f32 %v200, %v203
        %v210 = vadd.f32 %v201, %v203
        %v211 = vadd.f32 %v202, %v203
        %v212 = vstv %s153
        %v213 = vmul.f32 %v212, %v146
        %v214 = vstv %s154
        %v215 = vmul.f32 %v214, %v135
        %v216 = vmul.f32 %v214, %v136
        %v217 = vmul.f32 %v214, %v137
        %v218 = vmul.f32 %v214, %v138
        %v219 = vmul.f32 %v214, %v139
        %v220 = vmul.f32 %v214, %v140
        %v221 = vmul.f32 %v214, %v141
        %v222 = vmul.f32 %v214, %v142
        %v223 = vadd.f32 %v213, %v215
        %v224 = vadd.f32 %v213, %v216
        %v225 = vadd.f32 %v213, %v217
        %v226 = vadd.f32 %v213, %v218
        %v227 = vadd.f32 %v213, %v219
        %v228 = vadd.f32 %v213, %v220
        %v229 = vadd.f32 %v213, %v221
        %v230 = vadd.f32 %v213, %v222
        %v231 = vstv %s155
        %v232 = vadd.f32 %v223, %v231
        %v233 = vadd.f32 %v224, %v231
        %v234 = vadd.f32 %v225, %v231
        %v235 = vadd.f32 %v226, %v231
        %v236 = vadd.f32 %v227, %v231
        %v237 = vadd.f32 %v228, %v231
        %v238 = vadd.f32 %v229, %v231
        %v239 = vadd.f32 %v230, %v231
        %vm240 = vcmp.ge.f32.partialorder %v176, 0.0
        %vm241 = vcmp.ge.f32.partialorder %v177, 0.0
        %vm242 = vcmp.ge.f32.partialorder %v178, 0.0
        %vm243 = vcmp.ge.f32.partialorder %v179, 0.0
        %vm244 = vcmp.ge.f32.partialorder %v180, 0.0
        %vm245 = vcmp.ge.f32.partialorder %v181, 0.0
        %vm246 = vcmp.ge.f32.partialorder %v182, 0.0
        %vm247 = vcmp.ge.f32.partialorder %v183, 0.0
        %vm248 = vcmp.ge.f32.partialorder %v204, 0.0
        %vm249 = vcmp.ge.f32.partialorder %v205, 0.0
        %vm250 = vcmp.ge.f32.partialorder %v206, 0.0
        %vm251 = vcmp.ge.f32.partialorder %v207, 0.0
        %vm252 = vcmp.ge.f32.partialorder %v208, 0.0
        %vm253 = vcmp.ge.f32.partialorder %v209, 0.0
        %vm254 = vcmp.ge.f32.partialorder %v210, 0.0
        %vm255 = vcmp.ge.f32.partialorder %v211, 0.0
        %vm256 = vmand %vm240, %vm248
        %vm257 = vmand %vm241, %vm249
        %vm258 = vmand %vm242, %vm250
        %vm259 = vmand %vm243, %vm251
        %vm260 = vmand %vm244, %vm252
        %vm261 = vmand %vm245, %vm253
        %vm262 = vmand %vm246, %vm254
        %vm263 = vmand %vm247, %vm255
        %vm264 = vcmp.ge.f32.partialorder %v232, 0.0
        %vm265 = vcmp.ge.f32.partialorder %v233, 0.0
        %vm266 = vcmp.ge.f32.partialorder %v234, 0.0
        %vm267 = vcmp.ge.f32.partialorder %v235, 0.0
        %vm268 = vcmp.ge.f32.partialorder %v236, 0.0
        %vm269 = vcmp.ge.f32.partialorder %v237, 0.0
        %vm270 = vcmp.ge.f32.partialorder %v238, 0.0
        %vm271 = vcmp.ge.f32.partialorder %v239, 0.0
        %vm272 = vmand %vm256, %vm264
        %vm273 = vmand %vm257, %vm265
        %vm274 = vmand %vm258, %vm266
        %vm275 = vmand %vm259, %vm267
        %vm276 = vmand %vm260, %vm268
        %vm277 = vmand %vm261, %vm269
        %vm278 = vmand %vm262, %vm270
        %vm279 = vmand %vm263, %vm271
        %vm280 = vcmp.le.f32.partialorder %v176, 0.0
        %vm281 = vcmp.le.f32.partialorder %v177, 0.0
        %vm282 = vcmp.le.f32.partialorder %v178, 0.0
        %vm283 = vcmp.le.f32.partialorder %v179, 0.0
        %vm284 = vcmp.le.f32.partialorder %v180, 0.0
        %vm285 = vcmp.le.f32.partialorder %v181, 0.0
        %vm286 = vcmp.le.f32.partialorder %v182, 0.0
        %vm287 = vcmp.le.f32.partialorder %v183, 0.0
        %vm288 = vcmp.le.f32.partialorder %v204, 0.0
        %vm289 = vcmp.le.f32.partialorder %v205, 0.0
        %vm290 = vcmp.le.f32.partialorder %v206, 0.0
        %vm291 = vcmp.le.f32.partialorder %v207, 0.0
        %vm292 = vcmp.le.f32.partialorder %v208, 0.0
        %vm293 = vcmp.le.f32.partialorder %v209, 0.0
        %vm294 = vcmp.le.f32.partialorder %v210, 0.0
        %vm295 = vcmp.le.f32.partialorder %v211, 0.0
        %vm296 = vmand %vm280, %vm288
        %vm297 = vmand %vm281, %vm289
        %vm298 = vmand %vm282, %vm290
        %vm299 = vmand %vm283, %vm291
        %vm300 = vmand %vm284, %vm292
        %vm301 = vmand %vm285, %vm293
        %vm302 = vmand %vm286, %vm294
        %vm303 = vmand %vm287, %vm295
        %vm304 = vcmp.le.f32.partialorder %v232, 0.0
        %vm305 = vcmp.le.f32.partialorder %v233, 0.0
        %vm306 = vcmp.le.f32.partialorder %v234, 0.0
        %vm307 = vcmp.le.f32.partialorder %v235, 0.0
        %vm308 = vcmp.le.f32.partialorder %v236, 0.0
        %vm309 = vcmp.le.f32.partialorder %v237, 0.0
        %vm310 = vcmp.le.f32.partialorder %v238, 0.0
        %vm311 = vcmp.le.f32.partialorder %v239, 0.0
        %vm312 = vmand %vm296, %vm304
        %vm313 = vmand %vm297, %vm305
        %vm314 = vmand %vm298, %vm306
        %vm315 = vmand %vm299, %vm307
        %vm316 = vmand %vm300, %vm308
        %vm317 = vmand %vm301, %vm309
        %vm318 = vmand %vm302, %vm310
        %vm319 = vmand %vm303, %vm311
        %vm320 = vmor %vm272, %vm312
        %vm321 = vmor %vm273, %vm313
        %vm322 = vmor %vm274, %vm314
        %vm323 = vmor %vm275, %vm315
        %vm324 = vmor %vm276, %vm316
        %vm325 = vmor %vm277, %vm317
        %vm326 = vmor %vm278, %vm318
        %vm327 = vmor %vm279, %vm319
        %s328 = sld [smem:[#allocation2 + $0x9]]
        %s329 = sld [smem:[#allocation2 + $0xa]]
        %s330 = sld [smem:[#allocation2 + $0xb]]
        %s331 = sld [smem:[#allocation2 + $0xc]]
        %s332 = sld [smem:[#allocation2 + $0xd]]
        %s333 = sld [smem:[#allocation2 + $0xe]]
        %s334 = sld [smem:[#allocation2 + $0xf]]
        %s335 = sld [smem:[#allocation2 + $0x10]]
        %s336 = sld [smem:[#allocation2 + $0x11]]
        %v337 = vstv %s328
        %v338 = vmul.f32 %v337, %v146
        %v339 = vstv %s329
        %v340 = vmul.f32 %v339, %v135
        %v341 = vmul.f32 %v339, %v136
        %v342 = vmul.f32 %v339, %v137
        %v343 = vmul.f32 %v339, %v138
        %v344 = vmul.f32 %v339, %v139
        %v345 = vmul.f32 %v339, %v140
        %v346 = vmul.f32 %v339, %v141
        %v347 = vmul.f32 %v339, %v142
        %v348 = vadd.f32 %v338, %v340
        %v349 = vadd.f32 %v338, %v341
        %v350 = vadd.f32 %v338, %v342
        %v351 = vadd.f32 %v338, %v343
        %v352 = vadd.f32 %v338, %v344
        %v353 = vadd.f32 %v338, %v345
        %v354 = vadd.f32 %v338, %v346
        %v355 = vadd.f32 %v338, %v347
        %v356 = vstv %s330
        %v357 = vadd.f32 %v348, %v356
        %v358 = vadd.f32 %v349, %v356
        %v359 = vadd.f32 %v350, %v356
        %v360 = vadd.f32 %v351, %v356
        %v361 = vadd.f32 %v352, %v356
        %v362 = vadd.f32 %v353, %v356
        %v363 = vadd.f32 %v354, %v356
        %v364 = vadd.f32 %v355, %v356
        %v365 = vstv %s331
        %v366 = vmul.f32 %v365, %v146
        %v367 = vstv %s332
        %v368 = vmul.f32 %v367, %v135
        %v369 = vmul.f32 %v367, %v136
        %v370 = vmul.f32 %v367, %v137
        %v371 = vmul.f32 %v367, %v138
        %v372 = vmul.f32 %v367, %v139
        %v373 = vmul.f32 %v367, %v140
        %v374 = vmul.f32 %v367, %v141
        %v375 = vmul.f32 %v367, %v142
        %v376 = vadd.f32 %v366, %v368
        %v377 = vadd.f32 %v366, %v369
        %v378 = vadd.f32 %v366, %v370
        %v379 = vadd.f32 %v366, %v371
        %v380 = vadd.f32 %v366, %v372
        %v381 = vadd.f32 %v366, %v373
        %v382 = vadd.f32 %v366, %v374
        %v383 = vadd.f32 %v366, %v375
        %v384 = vstv %s333
        %v385 = vadd.f32 %v376, %v384
        %v386 = vadd.f32 %v377, %v384
        %v387 = vadd.f32 %v378, %v384
        %v388 = vadd.f32 %v379, %v384
        %v389 = vadd.f32 %v380, %v384
        %v390 = vadd.f32 %v381, %v384
        %v391 = vadd.f32 %v382, %v384
        %v392 = vadd.f32 %v383, %v384
        %v393 = vstv %s334
        %v394 = vmul.f32 %v393, %v146
        %v395 = vstv %s335
        %v396 = vmul.f32 %v395, %v135
        %v397 = vmul.f32 %v395, %v136
        %v398 = vmul.f32 %v395, %v137
        %v399 = vmul.f32 %v395, %v138
        %v400 = vmul.f32 %v395, %v139
        %v401 = vmul.f32 %v395, %v140
        %v402 = vmul.f32 %v395, %v141
        %v403 = vmul.f32 %v395, %v142
        %v404 = vadd.f32 %v394, %v396
        %v405 = vadd.f32 %v394, %v397
        %v406 = vadd.f32 %v394, %v398
        %v407 = vadd.f32 %v394, %v399
        %v408 = vadd.f32 %v394, %v400
        %v409 = vadd.f32 %v394, %v401
        %v410 = vadd.f32 %v394, %v402
        %v411 = vadd.f32 %v394, %v403
        %v412 = vstv %s336
        %v413 = vadd.f32 %v404, %v412
        %v414 = vadd.f32 %v405, %v412
        %v415 = vadd.f32 %v406, %v412
        %v416 = vadd.f32 %v407, %v412
        %v417 = vadd.f32 %v408, %v412
        %v418 = vadd.f32 %v409, %v412
        %v419 = vadd.f32 %v410, %v412
        %v420 = vadd.f32 %v411, %v412
        %vm421 = vcmp.ge.f32.partialorder %v357, 0.0
        %vm422 = vcmp.ge.f32.partialorder %v358, 0.0
        %vm423 = vcmp.ge.f32.partialorder %v359, 0.0
        %vm424 = vcmp.ge.f32.partialorder %v360, 0.0
        %vm425 = vcmp.ge.f32.partialorder %v361, 0.0
        %vm426 = vcmp.ge.f32.partialorder %v362, 0.0
        %vm427 = vcmp.ge.f32.partialorder %v363, 0.0
        %vm428 = vcmp.ge.f32.partialorder %v364, 0.0
        %vm429 = vcmp.ge.f32.partialorder %v385, 0.0
        %vm430 = vcmp.ge.f32.partialorder %v386, 0.0
        %vm431 = vcmp.ge.f32.partialorder %v387, 0.0
        %vm432 = vcmp.ge.f32.partialorder %v388, 0.0
        %vm433 = vcmp.ge.f32.partialorder %v389, 0.0
        %vm434 = vcmp.ge.f32.partialorder %v390, 0.0
        %vm435 = vcmp.ge.f32.partialorder %v391, 0.0
        %vm436 = vcmp.ge.f32.partialorder %v392, 0.0
        %vm437 = vmand %vm421, %vm429
        %vm438 = vmand %vm422, %vm430
        %vm439 = vmand %vm423, %vm431
        %vm440 = vmand %vm424, %vm432
        %vm441 = vmand %vm425, %vm433
        %vm442 = vmand %vm426, %vm434
        %vm443 = vmand %vm427, %vm435
        %vm444 = vmand %vm428, %vm436
        %vm445 = vcmp.ge.f32.partialorder %v413, 0.0
        %vm446 = vcmp.ge.f32.partialorder %v414, 0.0
        %vm447 = vcmp.ge.f32.partialorder %v415, 0.0
        %vm448 = vcmp.ge.f32.partialorder %v416, 0.0
        %vm449 = vcmp.ge.f32.partialorder %v417, 0.0
        %vm450 = vcmp.ge.f32.partialorder %v418, 0.0
        %vm451 = vcmp.ge.f32.partialorder %v419, 0.0
        %vm452 = vcmp.ge.f32.partialorder %v420, 0.0
        %vm453 = vmand %vm437, %vm445
        %vm454 = vmand %vm438, %vm446
        %vm455 = vmand %vm439, %vm447
        %vm456 = vmand %vm440, %vm448
        %vm457 = vmand %vm441, %vm449
        %vm458 = vmand %vm442, %vm450
        %vm459 = vmand %vm443, %vm451
        %vm460 = vmand %vm444, %vm452
        %vm461 = vcmp.le.f32.partialorder %v357, 0.0
        %vm462 = vcmp.le.f32.partialorder %v358, 0.0
        %vm463 = vcmp.le.f32.partialorder %v359, 0.0
        %vm464 = vcmp.le.f32.partialorder %v360, 0.0
        %vm465 = vcmp.le.f32.partialorder %v361, 0.0
        %vm466 = vcmp.le.f32.partialorder %v362, 0.0
        %vm467 = vcmp.le.f32.partialorder %v363, 0.0
        %vm468 = vcmp.le.f32.partialorder %v364, 0.0
        %vm469 = vcmp.le.f32.partialorder %v385, 0.0
        %vm470 = vcmp.le.f32.partialorder %v386, 0.0
        %vm471 = vcmp.le.f32.partialorder %v387, 0.0
        %vm472 = vcmp.le.f32.partialorder %v388, 0.0
        %vm473 = vcmp.le.f32.partialorder %v389, 0.0
        %vm474 = vcmp.le.f32.partialorder %v390, 0.0
        %vm475 = vcmp.le.f32.partialorder %v391, 0.0
        %vm476 = vcmp.le.f32.partialorder %v392, 0.0
        %vm477 = vmand %vm461, %vm469
        %vm478 = vmand %vm462, %vm470
        %vm479 = vmand %vm463, %vm471
        %vm480 = vmand %vm464, %vm472
        %vm481 = vmand %vm465, %vm473
        %vm482 = vmand %vm466, %vm474
        %vm483 = vmand %vm467, %vm475
        %vm484 = vmand %vm468, %vm476
        %vm485 = vcmp.le.f32.partialorder %v413, 0.0
        %vm486 = vcmp.le.f32.partialorder %v414, 0.0
        %vm487 = vcmp.le.f32.partialorder %v415, 0.0
        %vm488 = vcmp.le.f32.partialorder %v416, 0.0
        %vm489 = vcmp.le.f32.partialorder %v417, 0.0
        %vm490 = vcmp.le.f32.partialorder %v418, 0.0
        %vm491 = vcmp.le.f32.partialorder %v419, 0.0
        %vm492 = vcmp.le.f32.partialorder %v420, 0.0
        %vm493 = vmand %vm477, %vm485
        %vm494 = vmand %vm478, %vm486
        %vm495 = vmand %vm479, %vm487
        %vm496 = vmand %vm480, %vm488
        %vm497 = vmand %vm481, %vm489
        %vm498 = vmand %vm482, %vm490
        %vm499 = vmand %vm483, %vm491
        %vm500 = vmand %vm484, %vm492
        %vm501 = vmor %vm320, %vm453
        %vm502 = vmor %vm321, %vm454
        %vm503 = vmor %vm322, %vm455
        %vm504 = vmor %vm323, %vm456
        %vm505 = vmor %vm324, %vm457
        %vm506 = vmor %vm325, %vm458
        %vm507 = vmor %vm326, %vm459
        %vm508 = vmor %vm327, %vm460
        %vm509 = vmor %vm501, %vm493
        %vm510 = vmor %vm502, %vm494
        %vm511 = vmor %vm503, %vm495
        %vm512 = vmor %vm504, %vm496
        %vm513 = vmor %vm505, %vm497
        %vm514 = vmor %vm506, %vm498
        %vm515 = vmor %vm507, %vm499
        %vm516 = vmor %vm508, %vm500
        %s517 = sld [smem:[#allocation2 + $0x12]]
        %s518 = sld [smem:[#allocation2 + $0x13]]
        %s519 = sld [smem:[#allocation2 + $0x14]]
        %s520 = sld [smem:[#allocation2 + $0x15]]
        %s521 = sld [smem:[#allocation2 + $0x16]]
        %s522 = sld [smem:[#allocation2 + $0x17]]
        %s523 = sld [smem:[#allocation2 + $0x18]]
        %s524 = sld [smem:[#allocation2 + $0x19]]
        %s525 = sld [smem:[#allocation2 + $0x1a]]
        %v526 = vstv %s517
        %v527 = vmul.f32 %v526, %v146
        %v528 = vstv %s518
        %v529 = vmul.f32 %v528, %v135
        %v530 = vmul.f32 %v528, %v136
        %v531 = vmul.f32 %v528, %v137
        %v532 = vmul.f32 %v528, %v138
        %v533 = vmul.f32 %v528, %v139
        %v534 = vmul.f32 %v528, %v140
        %v535 = vmul.f32 %v528, %v141
        %v536 = vmul.f32 %v528, %v142
        %v537 = vadd.f32 %v527, %v529
        %v538 = vadd.f32 %v527, %v530
        %v539 = vadd.f32 %v527, %v531
        %v540 = vadd.f32 %v527, %v532
        %v541 = vadd.f32 %v527, %v533
        %v542 = vadd.f32 %v527, %v534
        %v543 = vadd.f32 %v527, %v535
        %v544 = vadd.f32 %v527, %v536
        %v545 = vstv %s519
        %v546 = vadd.f32 %v537, %v545
        %v547 = vadd.f32 %v538, %v545
        %v548 = vadd.f32 %v539, %v545
        %v549 = vadd.f32 %v540, %v545
        %v550 = vadd.f32 %v541, %v545
        %v551 = vadd.f32 %v542, %v545
        %v552 = vadd.f32 %v543, %v545
        %v553 = vadd.f32 %v544, %v545
        %v554 = vstv %s520
        %v555 = vmul.f32 %v554, %v146
        %v556 = vstv %s521
        %v557 = vmul.f32 %v556, %v135
        %v558 = vmul.f32 %v556, %v136
        %v559 = vmul.f32 %v556, %v137
        %v560 = vmul.f32 %v556, %v138
        %v561 = vmul.f32 %v556, %v139
        %v562 = vmul.f32 %v556, %v140
        %v563 = vmul.f32 %v556, %v141
        %v564 = vmul.f32 %v556, %v142
        %v565 = vadd.f32 %v555, %v557
        %v566 = vadd.f32 %v555, %v558
        %v567 = vadd.f32 %v555, %v559
        %v568 = vadd.f32 %v555, %v560
        %v569 = vadd.f32 %v555, %v561
        %v570 = vadd.f32 %v555, %v562
        %v571 = vadd.f32 %v555, %v563
        %v572 = vadd.f32 %v555, %v564
        %v573 = vstv %s522
        %v574 = vadd.f32 %v565, %v573
        %v575 = vadd.f32 %v566, %v573
        %v576 = vadd.f32 %v567, %v573
        %v577 = vadd.f32 %v568, %v573
        %v578 = vadd.f32 %v569, %v573
        %v579 = vadd.f32 %v570, %v573
        %v580 = vadd.f32 %v571, %v573
        %v581 = vadd.f32 %v572, %v573
        %v582 = vstv %s523
        %v583 = vmul.f32 %v582, %v146
        %v584 = vstv %s524
        %v585 = vmul.f32 %v584, %v135
        %v586 = vmul.f32 %v584, %v136
        %v587 = vmul.f32 %v584, %v137
        %v588 = vmul.f32 %v584, %v138
        %v589 = vmul.f32 %v584, %v139
        %v590 = vmul.f32 %v584, %v140
        %v591 = vmul.f32 %v584, %v141
        %v592 = vmul.f32 %v584, %v142
        %v593 = vadd.f32 %v583, %v585
        %v594 = vadd.f32 %v583, %v586
        %v595 = vadd.f32 %v583, %v587
        %v596 = vadd.f32 %v583, %v588
        %v597 = vadd.f32 %v583, %v589
        %v598 = vadd.f32 %v583, %v590
        %v599 = vadd.f32 %v583, %v591
        %v600 = vadd.f32 %v583, %v592
        %v601 = vstv %s525
        %v602 = vadd.f32 %v593, %v601
        %v603 = vadd.f32 %v594, %v601
        %v604 = vadd.f32 %v595, %v601
        %v605 = vadd.f32 %v596, %v601
        %v606 = vadd.f32 %v597, %v601
        %v607 = vadd.f32 %v598, %v601
        %v608 = vadd.f32 %v599, %v601
        %v609 = vadd.f32 %v600, %v601
        %vm610 = vcmp.ge.f32.partialorder %v546, 0.0
        %vm611 = vcmp.ge.f32.partialorder %v547, 0.0
        %vm612 = vcmp.ge.f32.partialorder %v548, 0.0
        %vm613 = vcmp.ge.f32.partialorder %v549, 0.0
        %vm614 = vcmp.ge.f32.partialorder %v550, 0.0
        %vm615 = vcmp.ge.f32.partialorder %v551, 0.0
        %vm616 = vcmp.ge.f32.partialorder %v552, 0.0
        %vm617 = vcmp.ge.f32.partialorder %v553, 0.0
        %vm618 = vcmp.ge.f32.partialorder %v574, 0.0
        %vm619 = vcmp.ge.f32.partialorder %v575, 0.0
        %vm620 = vcmp.ge.f32.partialorder %v576, 0.0
        %vm621 = vcmp.ge.f32.partialorder %v577, 0.0
        %vm622 = vcmp.ge.f32.partialorder %v578, 0.0
        %vm623 = vcmp.ge.f32.partialorder %v579, 0.0
        %vm624 = vcmp.ge.f32.partialorder %v580, 0.0
        %vm625 = vcmp.ge.f32.partialorder %v581, 0.0
        %vm626 = vmand %vm610, %vm618
        %vm627 = vmand %vm611, %vm619
        %vm628 = vmand %vm612, %vm620
        %vm629 = vmand %vm613, %vm621
        %vm630 = vmand %vm614, %vm622
        %vm631 = vmand %vm615, %vm623
        %vm632 = vmand %vm616, %vm624
        %vm633 = vmand %vm617, %vm625
        %vm634 = vcmp.ge.f32.partialorder %v602, 0.0
        %vm635 = vcmp.ge.f32.partialorder %v603, 0.0
        %vm636 = vcmp.ge.f32.partialorder %v604, 0.0
        %vm637 = vcmp.ge.f32.partialorder %v605, 0.0
        %vm638 = vcmp.ge.f32.partialorder %v606, 0.0
        %vm639 = vcmp.ge.f32.partialorder %v607, 0.0
        %vm640 = vcmp.ge.f32.partialorder %v608, 0.0
        %vm641 = vcmp.ge.f32.partialorder %v609, 0.0
        %vm642 = vmand %vm626, %vm634
        %vm643 = vmand %vm627, %vm635
        %vm644 = vmand %vm628, %vm636
        %vm645 = vmand %vm629, %vm637
        %vm646 = vmand %vm630, %vm638
        %vm647 = vmand %vm631, %vm639
        %vm648 = vmand %vm632, %vm640
        %vm649 = vmand %vm633, %vm641
        %vm650 = vcmp.le.f32.partialorder %v546, 0.0
        %vm651 = vcmp.le.f32.partialorder %v547, 0.0
        %vm652 = vcmp.le.f32.partialorder %v548, 0.0
        %vm653 = vcmp.le.f32.partialorder %v549, 0.0
        %vm654 = vcmp.le.f32.partialorder %v550, 0.0
        %vm655 = vcmp.le.f32.partialorder %v551, 0.0
        %vm656 = vcmp.le.f32.partialorder %v552, 0.0
        %vm657 = vcmp.le.f32.partialorder %v553, 0.0
        %vm658 = vcmp.le.f32.partialorder %v574, 0.0
        %vm659 = vcmp.le.f32.partialorder %v575, 0.0
        %vm660 = vcmp.le.f32.partialorder %v576, 0.0
        %vm661 = vcmp.le.f32.partialorder %v577, 0.0
        %vm662 = vcmp.le.f32.partialorder %v578, 0.0
        %vm663 = vcmp.le.f32.partialorder %v579, 0.0
        %vm664 = vcmp.le.f32.partialorder %v580, 0.0
        %vm665 = vcmp.le.f32.partialorder %v581, 0.0
        %vm666 = vmand %vm650, %vm658
        %vm667 = vmand %vm651, %vm659
        %vm668 = vmand %vm652, %vm660
        %vm669 = vmand %vm653, %vm661
        %vm670 = vmand %vm654, %vm662
        %vm671 = vmand %vm655, %vm663
        %vm672 = vmand %vm656, %vm664
        %vm673 = vmand %vm657, %vm665
        %vm674 = vcmp.le.f32.partialorder %v602, 0.0
        %vm675 = vcmp.le.f32.partialorder %v603, 0.0
        %vm676 = vcmp.le.f32.partialorder %v604, 0.0
        %vm677 = vcmp.le.f32.partialorder %v605, 0.0
        %vm678 = vcmp.le.f32.partialorder %v606, 0.0
        %vm679 = vcmp.le.f32.partialorder %v607, 0.0
        %vm680 = vcmp.le.f32.partialorder %v608, 0.0
        %vm681 = vcmp.le.f32.partialorder %v609, 0.0
        %vm682 = vmand %vm666, %vm674
        %vm683 = vmand %vm667, %vm675
        %vm684 = vmand %vm668, %vm676
        %vm685 = vmand %vm669, %vm677
        %vm686 = vmand %vm670, %vm678
        %vm687 = vmand %vm671, %vm679
        %vm688 = vmand %vm672, %vm680
        %vm689 = vmand %vm673, %vm681
        %vm690 = vmor %vm509, %vm642
        %vm691 = vmor %vm510, %vm643
        %vm692 = vmor %vm511, %vm644
        %vm693 = vmor %vm512, %vm645
        %vm694 = vmor %vm513, %vm646
        %vm695 = vmor %vm514, %vm647
        %vm696 = vmor %vm515, %vm648
        %vm697 = vmor %vm516, %vm649
        %vm698 = vmor %vm690, %vm682
        %vm699 = vmor %vm691, %vm683
        %vm700 = vmor %vm692, %vm684
        %vm701 = vmor %vm693, %vm685
        %vm702 = vmor %vm694, %vm686
        %vm703 = vmor %vm695, %vm687
        %vm704 = vmor %vm696, %vm688
        %vm705 = vmor %vm697, %vm689
        %s706 = sld [smem:[#allocation2 + $0x1b]]
        %s707 = sld [smem:[#allocation2 + $0x1c]]
        %s708 = sld [smem:[#allocation2 + $0x1d]]
        %s709 = sld [smem:[#allocation2 + $0x1e]]
        %s710 = sld [smem:[#allocation2 + $0x1f]]
        %s711 = sld [smem:[#allocation2 + $0x20]]
        %s712 = sld [smem:[#allocation2 + $0x21]]
        %s713 = sld [smem:[#allocation2 + $0x22]]
        %s714 = sld [smem:[#allocation2 + $0x23]]
        %v715 = vstv %s706
        %v716 = vmul.f32 %v715, %v146
        %v717 = vstv %s707
        %v718 = vmul.f32 %v717, %v135
        %v719 = vmul.f32 %v717, %v136
        %v720 = vmul.f32 %v717, %v137
        %v721 = vmul.f32 %v717, %v138
        %v722 = vmul.f32 %v717, %v139
        %v723 = vmul.f32 %v717, %v140
        %v724 = vmul.f32 %v717, %v141
        %v725 = vmul.f32 %v717, %v142
        %v726 = vadd.f32 %v716, %v718
        %v727 = vadd.f32 %v716, %v719
        %v728 = vadd.f32 %v716, %v720
        %v729 = vadd.f32 %v716, %v721
        %v730 = vadd.f32 %v716, %v722
        %v731 = vadd.f32 %v716, %v723
        %v732 = vadd.f32 %v716, %v724
        %v733 = vadd.f32 %v716, %v725
        %v734 = vstv %s708
        %v735 = vadd.f32 %v726, %v734
        %v736 = vadd.f32 %v727, %v734
        %v737 = vadd.f32 %v728, %v734
        %v738 = vadd.f32 %v729, %v734
        %v739 = vadd.f32 %v730, %v734
        %v740 = vadd.f32 %v731, %v734
        %v741 = vadd.f32 %v732, %v734
        %v742 = vadd.f32 %v733, %v734
        %v743 = vstv %s709
        %v744 = vmul.f32 %v743, %v146
        %v745 = vstv %s710
        %v746 = vmul.f32 %v745, %v135
        %v747 = vmul.f32 %v745, %v136
        %v748 = vmul.f32 %v745, %v137
        %v749 = vmul.f32 %v745, %v138
        %v750 = vmul.f32 %v745, %v139
        %v751 = vmul.f32 %v745, %v140
        %v752 = vmul.f32 %v745, %v141
        %v753 = vmul.f32 %v745, %v142
        %v754 = vadd.f32 %v744, %v746
        %v755 = vadd.f32 %v744, %v747
        %v756 = vadd.f32 %v744, %v748
        %v757 = vadd.f32 %v744, %v749
        %v758 = vadd.f32 %v744, %v750
        %v759 = vadd.f32 %v744, %v751
        %v760 = vadd.f32 %v744, %v752
        %v761 = vadd.f32 %v744, %v753
        %v762 = vstv %s711
        %v763 = vadd.f32 %v754, %v762
        %v764 = vadd.f32 %v755, %v762
        %v765 = vadd.f32 %v756, %v762
        %v766 = vadd.f32 %v757, %v762
        %v767 = vadd.f32 %v758, %v762
        %v768 = vadd.f32 %v759, %v762
        %v769 = vadd.f32 %v760, %v762
        %v770 = vadd.f32 %v761, %v762
        %v771 = vstv %s712
        %v772 = vmul.f32 %v771, %v146
        %v773 = vstv %s713
        %v774 = vmul.f32 %v773, %v135
        %v775 = vmul.f32 %v773, %v136
        %v776 = vmul.f32 %v773, %v137
        %v777 = vmul.f32 %v773, %v138
        %v778 = vmul.f32 %v773, %v139
        %v779 = vmul.f32 %v773, %v140
        %v780 = vmul.f32 %v773, %v141
        %v781 = vmul.f32 %v773, %v142
        %v782 = vadd.f32 %v772, %v774
        %v783 = vadd.f32 %v772, %v775
        %v784 = vadd.f32 %v772, %v776
        %v785 = vadd.f32 %v772, %v777
        %v786 = vadd.f32 %v772, %v778
        %v787 = vadd.f32 %v772, %v779
        %v788 = vadd.f32 %v772, %v780
        %v789 = vadd.f32 %v772, %v781
        %v790 = vstv %s714
        %v791 = vadd.f32 %v782, %v790
        %v792 = vadd.f32 %v783, %v790
        %v793 = vadd.f32 %v784, %v790
        %v794 = vadd.f32 %v785, %v790
        %v795 = vadd.f32 %v786, %v790
        %v796 = vadd.f32 %v787, %v790
        %v797 = vadd.f32 %v788, %v790
        %v798 = vadd.f32 %v789, %v790
        %vm799 = vcmp.ge.f32.partialorder %v735, 0.0
        %vm800 = vcmp.ge.f32.partialorder %v736, 0.0
        %vm801 = vcmp.ge.f32.partialorder %v737, 0.0
        %vm802 = vcmp.ge.f32.partialorder %v738, 0.0
        %vm803 = vcmp.ge.f32.partialorder %v739, 0.0
        %vm804 = vcmp.ge.f32.partialorder %v740, 0.0
        %vm805 = vcmp.ge.f32.partialorder %v741, 0.0
        %vm806 = vcmp.ge.f32.partialorder %v742, 0.0
        %vm807 = vcmp.ge.f32.partialorder %v763, 0.0
        %vm808 = vcmp.ge.f32.partialorder %v764, 0.0
        %vm809 = vcmp.ge.f32.partialorder %v765, 0.0
        %vm810 = vcmp.ge.f32.partialorder %v766, 0.0
        %vm811 = vcmp.ge.f32.partialorder %v767, 0.0
        %vm812 = vcmp.ge.f32.partialorder %v768, 0.0
        %vm813 = vcmp.ge.f32.partialorder %v769, 0.0
        %vm814 = vcmp.ge.f32.partialorder %v770, 0.0
        %vm815 = vmand %vm799, %vm807
        %vm816 = vmand %vm800, %vm808
        %vm817 = vmand %vm801, %vm809
        %vm818 = vmand %vm802, %vm810
        %vm819 = vmand %vm803, %vm811
        %vm820 = vmand %vm804, %vm812
        %vm821 = vmand %vm805, %vm813
        %vm822 = vmand %vm806, %vm814
        %vm823 = vcmp.ge.f32.partialorder %v791, 0.0
        %vm824 = vcmp.ge.f32.partialorder %v792, 0.0
        %vm825 = vcmp.ge.f32.partialorder %v793, 0.0
        %vm826 = vcmp.ge.f32.partialorder %v794, 0.0
        %vm827 = vcmp.ge.f32.partialorder %v795, 0.0
        %vm828 = vcmp.ge.f32.partialorder %v796, 0.0
        %vm829 = vcmp.ge.f32.partialorder %v797, 0.0
        %vm830 = vcmp.ge.f32.partialorder %v798, 0.0
        %vm831 = vmand %vm815, %vm823
        %vm832 = vmand %vm816, %vm824
        %vm833 = vmand %vm817, %vm825
        %vm834 = vmand %vm818, %vm826
        %vm835 = vmand %vm819, %vm827
        %vm836 = vmand %vm820, %vm828
        %vm837 = vmand %vm821, %vm829
        %vm838 = vmand %vm822, %vm830
        %vm839 = vcmp.le.f32.partialorder %v735, 0.0
        %vm840 = vcmp.le.f32.partialorder %v736, 0.0
        %vm841 = vcmp.le.f32.partialorder %v737, 0.0
        %vm842 = vcmp.le.f32.partialorder %v738, 0.0
        %vm843 = vcmp.le.f32.partialorder %v739, 0.0
        %vm844 = vcmp.le.f32.partialorder %v740, 0.0
        %vm845 = vcmp.le.f32.partialorder %v741, 0.0
        %vm846 = vcmp.le.f32.partialorder %v742, 0.0
        %vm847 = vcmp.le.f32.partialorder %v763, 0.0
        %vm848 = vcmp.le.f32.partialorder %v764, 0.0
        %vm849 = vcmp.le.f32.partialorder %v765, 0.0
        %vm850 = vcmp.le.f32.partialorder %v766, 0.0
        %vm851 = vcmp.le.f32.partialorder %v767, 0.0
        %vm852 = vcmp.le.f32.partialorder %v768, 0.0
        %vm853 = vcmp.le.f32.partialorder %v769, 0.0
        %vm854 = vcmp.le.f32.partialorder %v770, 0.0
        %vm855 = vmand %vm839, %vm847
        %vm856 = vmand %vm840, %vm848
        %vm857 = vmand %vm841, %vm849
        %vm858 = vmand %vm842, %vm850
        %vm859 = vmand %vm843, %vm851
        %vm860 = vmand %vm844, %vm852
        %vm861 = vmand %vm845, %vm853
        %vm862 = vmand %vm846, %vm854
        %vm863 = vcmp.le.f32.partialorder %v791, 0.0
        %vm864 = vcmp.le.f32.partialorder %v792, 0.0
        %vm865 = vcmp.le.f32.partialorder %v793, 0.0
        %vm866 = vcmp.le.f32.partialorder %v794, 0.0
        %vm867 = vcmp.le.f32.partialorder %v795, 0.0
        %vm868 = vcmp.le.f32.partialorder %v796, 0.0
        %vm869 = vcmp.le.f32.partialorder %v797, 0.0
        %vm870 = vcmp.le.f32.partialorder %v798, 0.0
        %vm871 = vmand %vm855, %vm863
        %vm872 = vmand %vm856, %vm864
        %vm873 = vmand %vm857, %vm865
        %vm874 = vmand %vm858, %vm866
        %vm875 = vmand %vm859, %vm867
        %vm876 = vmand %vm860, %vm868
        %vm877 = vmand %vm861, %vm869
        %vm878 = vmand %vm862, %vm870
        %vm879 = vmor %vm698, %vm831
        %vm880 = vmor %vm699, %vm832
        %vm881 = vmor %vm700, %vm833
        %vm882 = vmor %vm701, %vm834
        %vm883 = vmor %vm702, %vm835
        %vm884 = vmor %vm703, %vm836
        %vm885 = vmor %vm704, %vm837
        %vm886 = vmor %vm705, %vm838
        %vm887 = vmor %vm879, %vm871
        %vm888 = vmor %vm880, %vm872
        %vm889 = vmor %vm881, %vm873
        %vm890 = vmor %vm882, %vm874
        %vm891 = vmor %vm883, %vm875
        %vm892 = vmor %vm884, %vm876
        %vm893 = vmor %vm885, %vm877
        %vm894 = vmor %vm886, %vm878
        %s895 = sld [smem:[#allocation2 + $0x24]]
        %s896 = sld [smem:[#allocation2 + $0x25]]
        %s897 = sld [smem:[#allocation2 + $0x26]]
        %s898 = sld [smem:[#allocation2 + $0x27]]
        %s899 = sld [smem:[#allocation2 + $0x28]]
        %s900 = sld [smem:[#allocation2 + $0x29]]
        %s901 = sld [smem:[#allocation2 + $0x2a]]
        %s902 = sld [smem:[#allocation2 + $0x2b]]
        %s903 = sld [smem:[#allocation2 + $0x2c]]
        %v904 = vstv %s895
        %v905 = vmul.f32 %v904, %v146
        %v906 = vstv %s896
        %v907 = vmul.f32 %v906, %v135
        %v908 = vmul.f32 %v906, %v136
        %v909 = vmul.f32 %v906, %v137
        %v910 = vmul.f32 %v906, %v138
        %v911 = vmul.f32 %v906, %v139
        %v912 = vmul.f32 %v906, %v140
        %v913 = vmul.f32 %v906, %v141
        %v914 = vmul.f32 %v906, %v142
        %v915 = vadd.f32 %v905, %v907
        %v916 = vadd.f32 %v905, %v908
        %v917 = vadd.f32 %v905, %v909
        %v918 = vadd.f32 %v905, %v910
        %v919 = vadd.f32 %v905, %v911
        %v920 = vadd.f32 %v905, %v912
        %v921 = vadd.f32 %v905, %v913
        %v922 = vadd.f32 %v905, %v914
        %v923 = vstv %s897
        %v924 = vadd.f32 %v915, %v923
        %v925 = vadd.f32 %v916, %v923
        %v926 = vadd.f32 %v917, %v923
        %v927 = vadd.f32 %v918, %v923
        %v928 = vadd.f32 %v919, %v923
        %v929 = vadd.f32 %v920, %v923
        %v930 = vadd.f32 %v921, %v923
        %v931 = vadd.f32 %v922, %v923
        %v932 = vstv %s898
        %v933 = vmul.f32 %v932, %v146
        %v934 = vstv %s899
        %v935 = vmul.f32 %v934, %v135
        %v936 = vmul.f32 %v934, %v136
        %v937 = vmul.f32 %v934, %v137
        %v938 = vmul.f32 %v934, %v138
        %v939 = vmul.f32 %v934, %v139
        %v940 = vmul.f32 %v934, %v140
        %v941 = vmul.f32 %v934, %v141
        %v942 = vmul.f32 %v934, %v142
        %v943 = vadd.f32 %v933, %v935
        %v944 = vadd.f32 %v933, %v936
        %v945 = vadd.f32 %v933, %v937
        %v946 = vadd.f32 %v933, %v938
        %v947 = vadd.f32 %v933, %v939
        %v948 = vadd.f32 %v933, %v940
        %v949 = vadd.f32 %v933, %v941
        %v950 = vadd.f32 %v933, %v942
        %v951 = vstv %s900
        %v952 = vadd.f32 %v943, %v951
        %v953 = vadd.f32 %v944, %v951
        %v954 = vadd.f32 %v945, %v951
        %v955 = vadd.f32 %v946, %v951
        %v956 = vadd.f32 %v947, %v951
        %v957 = vadd.f32 %v948, %v951
        %v958 = vadd.f32 %v949, %v951
        %v959 = vadd.f32 %v950, %v951
        %v960 = vstv %s901
        %v961 = vmul.f32 %v960, %v146
        %v962 = vstv %s902
        %v963 = vmul.f32 %v962, %v135
        %v964 = vmul.f32 %v962, %v136
        %v965 = vmul.f32 %v962, %v137
        %v966 = vmul.f32 %v962, %v138
        %v967 = vmul.f32 %v962, %v139
        %v968 = vmul.f32 %v962, %v140
        %v969 = vmul.f32 %v962, %v141
        %v970 = vmul.f32 %v962, %v142
        %v971 = vadd.f32 %v961, %v963
        %v972 = vadd.f32 %v961, %v964
        %v973 = vadd.f32 %v961, %v965
        %v974 = vadd.f32 %v961, %v966
        %v975 = vadd.f32 %v961, %v967
        %v976 = vadd.f32 %v961, %v968
        %v977 = vadd.f32 %v961, %v969
        %v978 = vadd.f32 %v961, %v970
        %v979 = vstv %s903
        %v980 = vadd.f32 %v971, %v979
        %v981 = vadd.f32 %v972, %v979
        %v982 = vadd.f32 %v973, %v979
        %v983 = vadd.f32 %v974, %v979
        %v984 = vadd.f32 %v975, %v979
        %v985 = vadd.f32 %v976, %v979
        %v986 = vadd.f32 %v977, %v979
        %v987 = vadd.f32 %v978, %v979
        %vm988 = vcmp.ge.f32.partialorder %v924, 0.0
        %vm989 = vcmp.ge.f32.partialorder %v925, 0.0
        %vm990 = vcmp.ge.f32.partialorder %v926, 0.0
        %vm991 = vcmp.ge.f32.partialorder %v927, 0.0
        %vm992 = vcmp.ge.f32.partialorder %v928, 0.0
        %vm993 = vcmp.ge.f32.partialorder %v929, 0.0
        %vm994 = vcmp.ge.f32.partialorder %v930, 0.0
        %vm995 = vcmp.ge.f32.partialorder %v931, 0.0
        %vm996 = vcmp.ge.f32.partialorder %v952, 0.0
        %vm997 = vcmp.ge.f32.partialorder %v953, 0.0
        %vm998 = vcmp.ge.f32.partialorder %v954, 0.0
        %vm999 = vcmp.ge.f32.partialorder %v955, 0.0
        %vm1000 = vcmp.ge.f32.partialorder %v956, 0.0
        %vm1001 = vcmp.ge.f32.partialorder %v957, 0.0
        %vm1002 = vcmp.ge.f32.partialorder %v958, 0.0
        %vm1003 = vcmp.ge.f32.partialorder %v959, 0.0
        %vm1004 = vmand %vm988, %vm996
        %vm1005 = vmand %vm989, %vm997
        %vm1006 = vmand %vm990, %vm998
        %vm1007 = vmand %vm991, %vm999
        %vm1008 = vmand %vm992, %vm1000
        %vm1009 = vmand %vm993, %vm1001
        %vm1010 = vmand %vm994, %vm1002
        %vm1011 = vmand %vm995, %vm1003
        %vm1012 = vcmp.ge.f32.partialorder %v980, 0.0
        %vm1013 = vcmp.ge.f32.partialorder %v981, 0.0
        %vm1014 = vcmp.ge.f32.partialorder %v982, 0.0
        %vm1015 = vcmp.ge.f32.partialorder %v983, 0.0
        %vm1016 = vcmp.ge.f32.partialorder %v984, 0.0
        %vm1017 = vcmp.ge.f32.partialorder %v985, 0.0
        %vm1018 = vcmp.ge.f32.partialorder %v986, 0.0
        %vm1019 = vcmp.ge.f32.partialorder %v987, 0.0
        %vm1020 = vmand %vm1004, %vm1012
        %vm1021 = vmand %vm1005, %vm1013
        %vm1022 = vmand %vm1006, %vm1014
        %vm1023 = vmand %vm1007, %vm1015
        %vm1024 = vmand %vm1008, %vm1016
        %vm1025 = vmand %vm1009, %vm1017
        %vm1026 = vmand %vm1010, %vm1018
        %vm1027 = vmand %vm1011, %vm1019
        %vm1028 = vcmp.le.f32.partialorder %v924, 0.0
        %vm1029 = vcmp.le.f32.partialorder %v925, 0.0
        %vm1030 = vcmp.le.f32.partialorder %v926, 0.0
        %vm1031 = vcmp.le.f32.partialorder %v927, 0.0
        %vm1032 = vcmp.le.f32.partialorder %v928, 0.0
        %vm1033 = vcmp.le.f32.partialorder %v929, 0.0
        %vm1034 = vcmp.le.f32.partialorder %v930, 0.0
        %vm1035 = vcmp.le.f32.partialorder %v931, 0.0
        %vm1036 = vcmp.le.f32.partialorder %v952, 0.0
        %vm1037 = vcmp.le.f32.partialorder %v953, 0.0
        %vm1038 = vcmp.le.f32.partialorder %v954, 0.0
        %vm1039 = vcmp.le.f32.partialorder %v955, 0.0
        %vm1040 = vcmp.le.f32.partialorder %v956, 0.0
        %vm1041 = vcmp.le.f32.partialorder %v957, 0.0
        %vm1042 = vcmp.le.f32.partialorder %v958, 0.0
        %vm1043 = vcmp.le.f32.partialorder %v959, 0.0
        %vm1044 = vmand %vm1028, %vm1036
        %vm1045 = vmand %vm1029, %vm1037
        %vm1046 = vmand %vm1030, %vm1038
        %vm1047 = vmand %vm1031, %vm1039
        %vm1048 = vmand %vm1032, %vm1040
        %vm1049 = vmand %vm1033, %vm1041
        %vm1050 = vmand %vm1034, %vm1042
        %vm1051 = vmand %vm1035, %vm1043
        %vm1052 = vcmp.le.f32.partialorder %v980, 0.0
        %vm1053 = vcmp.le.f32.partialorder %v981, 0.0
        %vm1054 = vcmp.le.f32.partialorder %v982, 0.0
        %vm1055 = vcmp.le.f32.partialorder %v983, 0.0
        %vm1056 = vcmp.le.f32.partialorder %v984, 0.0
        %vm1057 = vcmp.le.f32.partialorder %v985, 0.0
        %vm1058 = vcmp.le.f32.partialorder %v986, 0.0
        %vm1059 = vcmp.le.f32.partialorder %v987, 0.0
        %vm1060 = vmand %vm1044, %vm1052
        %vm1061 = vmand %vm1045, %vm1053
        %vm1062 = vmand %vm1046, %vm1054
        %vm1063 = vmand %vm1047, %vm1055
        %vm1064 = vmand %vm1048, %vm1056
        %vm1065 = vmand %vm1049, %vm1057
        %vm1066 = vmand %vm1050, %vm1058
        %vm1067 = vmand %vm1051, %vm1059
        %vm1068 = vmor %vm887, %vm1020
        %vm1069 = vmor %vm888, %vm1021
        %vm1070 = vmor %vm889, %vm1022
        %vm1071 = vmor %vm890, %vm1023
        %vm1072 = vmor %vm891, %vm1024
        %vm1073 = vmor %vm892, %vm1025
        %vm1074 = vmor %vm893, %vm1026
        %vm1075 = vmor %vm894, %vm1027
        %vm1076 = vmor %vm1068, %vm1060
        %vm1077 = vmor %vm1069, %vm1061
        %vm1078 = vmor %vm1070, %vm1062
        %vm1079 = vmor %vm1071, %vm1063
        %vm1080 = vmor %vm1072, %vm1064
        %vm1081 = vmor %vm1073, %vm1065
        %vm1082 = vmor %vm1074, %vm1066
        %vm1083 = vmor %vm1075, %vm1067
        %s1084 = sld [smem:[#allocation2 + $0x2d]]
        %s1085 = sld [smem:[#allocation2 + $0x2e]]
        %s1086 = sld [smem:[#allocation2 + $0x2f]]
        %s1087 = sld [smem:[#allocation2 + $0x30]]
        %s1088 = sld [smem:[#allocation2 + $0x31]]
        %s1089 = sld [smem:[#allocation2 + $0x32]]
        %s1090 = sld [smem:[#allocation2 + $0x33]]
        %s1091 = sld [smem:[#allocation2 + $0x34]]
        %s1092 = sld [smem:[#allocation2 + $0x35]]
        %v1093 = vstv %s1084
        %v1094 = vmul.f32 %v1093, %v146
        %v1095 = vstv %s1085
        %v1096 = vmul.f32 %v1095, %v135
        %v1097 = vmul.f32 %v1095, %v136
        %v1098 = vmul.f32 %v1095, %v137
        %v1099 = vmul.f32 %v1095, %v138
        %v1100 = vmul.f32 %v1095, %v139
        %v1101 = vmul.f32 %v1095, %v140
        %v1102 = vmul.f32 %v1095, %v141
        %v1103 = vmul.f32 %v1095, %v142
        %v1104 = vadd.f32 %v1094, %v1096
        %v1105 = vadd.f32 %v1094, %v1097
        %v1106 = vadd.f32 %v1094, %v1098
        %v1107 = vadd.f32 %v1094, %v1099
        %v1108 = vadd.f32 %v1094, %v1100
        %v1109 = vadd.f32 %v1094, %v1101
        %v1110 = vadd.f32 %v1094, %v1102
        %v1111 = vadd.f32 %v1094, %v1103
        %v1112 = vstv %s1086
        %v1113 = vadd.f32 %v1104, %v1112
        %v1114 = vadd.f32 %v1105, %v1112
        %v1115 = vadd.f32 %v1106, %v1112
        %v1116 = vadd.f32 %v1107, %v1112
        %v1117 = vadd.f32 %v1108, %v1112
        %v1118 = vadd.f32 %v1109, %v1112
        %v1119 = vadd.f32 %v1110, %v1112
        %v1120 = vadd.f32 %v1111, %v1112
        %v1121 = vstv %s1087
        %v1122 = vmul.f32 %v1121, %v146
        %v1123 = vstv %s1088
        %v1124 = vmul.f32 %v1123, %v135
        %v1125 = vmul.f32 %v1123, %v136
        %v1126 = vmul.f32 %v1123, %v137
        %v1127 = vmul.f32 %v1123, %v138
        %v1128 = vmul.f32 %v1123, %v139
        %v1129 = vmul.f32 %v1123, %v140
        %v1130 = vmul.f32 %v1123, %v141
        %v1131 = vmul.f32 %v1123, %v142
        %v1132 = vadd.f32 %v1122, %v1124
        %v1133 = vadd.f32 %v1122, %v1125
        %v1134 = vadd.f32 %v1122, %v1126
        %v1135 = vadd.f32 %v1122, %v1127
        %v1136 = vadd.f32 %v1122, %v1128
        %v1137 = vadd.f32 %v1122, %v1129
        %v1138 = vadd.f32 %v1122, %v1130
        %v1139 = vadd.f32 %v1122, %v1131
        %v1140 = vstv %s1089
        %v1141 = vadd.f32 %v1132, %v1140
        %v1142 = vadd.f32 %v1133, %v1140
        %v1143 = vadd.f32 %v1134, %v1140
        %v1144 = vadd.f32 %v1135, %v1140
        %v1145 = vadd.f32 %v1136, %v1140
        %v1146 = vadd.f32 %v1137, %v1140
        %v1147 = vadd.f32 %v1138, %v1140
        %v1148 = vadd.f32 %v1139, %v1140
        %v1149 = vstv %s1090
        %v1150 = vmul.f32 %v1149, %v146
        %v1151 = vstv %s1091
        %v1152 = vmul.f32 %v1151, %v135
        %v1153 = vmul.f32 %v1151, %v136
        %v1154 = vmul.f32 %v1151, %v137
        %v1155 = vmul.f32 %v1151, %v138
        %v1156 = vmul.f32 %v1151, %v139
        %v1157 = vmul.f32 %v1151, %v140
        %v1158 = vmul.f32 %v1151, %v141
        %v1159 = vmul.f32 %v1151, %v142
        %v1160 = vadd.f32 %v1150, %v1152
        %v1161 = vadd.f32 %v1150, %v1153
        %v1162 = vadd.f32 %v1150, %v1154
        %v1163 = vadd.f32 %v1150, %v1155
        %v1164 = vadd.f32 %v1150, %v1156
        %v1165 = vadd.f32 %v1150, %v1157
        %v1166 = vadd.f32 %v1150, %v1158
        %v1167 = vadd.f32 %v1150, %v1159
        %v1168 = vstv %s1092
        %v1169 = vadd.f32 %v1160, %v1168
        %v1170 = vadd.f32 %v1161, %v1168
        %v1171 = vadd.f32 %v1162, %v1168
        %v1172 = vadd.f32 %v1163, %v1168
        %v1173 = vadd.f32 %v1164, %v1168
        %v1174 = vadd.f32 %v1165, %v1168
        %v1175 = vadd.f32 %v1166, %v1168
        %v1176 = vadd.f32 %v1167, %v1168
        %vm1177 = vcmp.ge.f32.partialorder %v1113, 0.0
        %vm1178 = vcmp.ge.f32.partialorder %v1114, 0.0
        %vm1179 = vcmp.ge.f32.partialorder %v1115, 0.0
        %vm1180 = vcmp.ge.f32.partialorder %v1116, 0.0
        %vm1181 = vcmp.ge.f32.partialorder %v1117, 0.0
        %vm1182 = vcmp.ge.f32.partialorder %v1118, 0.0
        %vm1183 = vcmp.ge.f32.partialorder %v1119, 0.0
        %vm1184 = vcmp.ge.f32.partialorder %v1120, 0.0
        %vm1185 = vcmp.ge.f32.partialorder %v1141, 0.0
        %vm1186 = vcmp.ge.f32.partialorder %v1142, 0.0
        %vm1187 = vcmp.ge.f32.partialorder %v1143, 0.0
        %vm1188 = vcmp.ge.f32.partialorder %v1144, 0.0
        %vm1189 = vcmp.ge.f32.partialorder %v1145, 0.0
        %vm1190 = vcmp.ge.f32.partialorder %v1146, 0.0
        %vm1191 = vcmp.ge.f32.partialorder %v1147, 0.0
        %vm1192 = vcmp.ge.f32.partialorder %v1148, 0.0
        %vm1193 = vmand %vm1177, %vm1185
        %vm1194 = vmand %vm1178, %vm1186
        %vm1195 = vmand %vm1179, %vm1187
        %vm1196 = vmand %vm1180, %vm1188
        %vm1197 = vmand %vm1181, %vm1189
        %vm1198 = vmand %vm1182, %vm1190
        %vm1199 = vmand %vm1183, %vm1191
        %vm1200 = vmand %vm1184, %vm1192
        %vm1201 = vcmp.ge.f32.partialorder %v1169, 0.0
        %vm1202 = vcmp.ge.f32.partialorder %v1170, 0.0
        %vm1203 = vcmp.ge.f32.partialorder %v1171, 0.0
        %vm1204 = vcmp.ge.f32.partialorder %v1172, 0.0
        %vm1205 = vcmp.ge.f32.partialorder %v1173, 0.0
        %vm1206 = vcmp.ge.f32.partialorder %v1174, 0.0
        %vm1207 = vcmp.ge.f32.partialorder %v1175, 0.0
        %vm1208 = vcmp.ge.f32.partialorder %v1176, 0.0
        %vm1209 = vmand %vm1193, %vm1201
        %vm1210 = vmand %vm1194, %vm1202
        %vm1211 = vmand %vm1195, %vm1203
        %vm1212 = vmand %vm1196, %vm1204
        %vm1213 = vmand %vm1197, %vm1205
        %vm1214 = vmand %vm1198, %vm1206
        %vm1215 = vmand %vm1199, %vm1207
        %vm1216 = vmand %vm1200, %vm1208
        %vm1217 = vcmp.le.f32.partialorder %v1113, 0.0
        %vm1218 = vcmp.le.f32.partialorder %v1114, 0.0
        %vm1219 = vcmp.le.f32.partialorder %v1115, 0.0
        %vm1220 = vcmp.le.f32.partialorder %v1116, 0.0
        %vm1221 = vcmp.le.f32.partialorder %v1117, 0.0
        %vm1222 = vcmp.le.f32.partialorder %v1118, 0.0
        %vm1223 = vcmp.le.f32.partialorder %v1119, 0.0
        %vm1224 = vcmp.le.f32.partialorder %v1120, 0.0
        %vm1225 = vcmp.le.f32.partialorder %v1141, 0.0
        %vm1226 = vcmp.le.f32.partialorder %v1142, 0.0
        %vm1227 = vcmp.le.f32.partialorder %v1143, 0.0
        %vm1228 = vcmp.le.f32.partialorder %v1144, 0.0
        %vm1229 = vcmp.le.f32.partialorder %v1145, 0.0
        %vm1230 = vcmp.le.f32.partialorder %v1146, 0.0
        %vm1231 = vcmp.le.f32.partialorder %v1147, 0.0
        %vm1232 = vcmp.le.f32.partialorder %v1148, 0.0
        %vm1233 = vmand %vm1217, %vm1225
        %vm1234 = vmand %vm1218, %vm1226
        %vm1235 = vmand %vm1219, %vm1227
        %vm1236 = vmand %vm1220, %vm1228
        %vm1237 = vmand %vm1221, %vm1229
        %vm1238 = vmand %vm1222, %vm1230
        %vm1239 = vmand %vm1223, %vm1231
        %vm1240 = vmand %vm1224, %vm1232
        %vm1241 = vcmp.le.f32.partialorder %v1169, 0.0
        %vm1242 = vcmp.le.f32.partialorder %v1170, 0.0
        %vm1243 = vcmp.le.f32.partialorder %v1171, 0.0
        %vm1244 = vcmp.le.f32.partialorder %v1172, 0.0
        %vm1245 = vcmp.le.f32.partialorder %v1173, 0.0
        %vm1246 = vcmp.le.f32.partialorder %v1174, 0.0
        %vm1247 = vcmp.le.f32.partialorder %v1175, 0.0
        %vm1248 = vcmp.le.f32.partialorder %v1176, 0.0
        %vm1249 = vmand %vm1233, %vm1241
        %vm1250 = vmand %vm1234, %vm1242
        %vm1251 = vmand %vm1235, %vm1243
        %vm1252 = vmand %vm1236, %vm1244
        %vm1253 = vmand %vm1237, %vm1245
        %vm1254 = vmand %vm1238, %vm1246
        %vm1255 = vmand %vm1239, %vm1247
        %vm1256 = vmand %vm1240, %vm1248
        %vm1257 = vmor %vm1076, %vm1209
        %vm1258 = vmor %vm1077, %vm1210
        %vm1259 = vmor %vm1078, %vm1211
        %vm1260 = vmor %vm1079, %vm1212
        %vm1261 = vmor %vm1080, %vm1213
        %vm1262 = vmor %vm1081, %vm1214
        %vm1263 = vmor %vm1082, %vm1215
        %vm1264 = vmor %vm1083, %vm1216
        %vm1265 = vmor %vm1257, %vm1249
        %vm1266 = vmor %vm1258, %vm1250
        %vm1267 = vmor %vm1259, %vm1251
        %vm1268 = vmor %vm1260, %vm1252
        %vm1269 = vmor %vm1261, %vm1253
        %vm1270 = vmor %vm1262, %vm1254
        %vm1271 = vmor %vm1263, %vm1255
        %vm1272 = vmor %vm1264, %vm1256
        %s1273 = sld [smem:[#allocation2 + $0x36]]
        %s1274 = sld [smem:[#allocation2 + $0x37]]
        %s1275 = sld [smem:[#allocation2 + $0x38]]
        %s1276 = sld [smem:[#allocation2 + $0x39]]
        %s1277 = sld [smem:[#allocation2 + $0x3a]]
        %s1278 = sld [smem:[#allocation2 + $0x3b]]
        %s1279 = sld [smem:[#allocation2 + $0x3c]]
        %s1280 = sld [smem:[#allocation2 + $0x3d]]
        %s1281 = sld [smem:[#allocation2 + $0x3e]]
        %v1282 = vstv %s1273
        %v1283 = vmul.f32 %v1282, %v146
        %v1284 = vstv %s1274
        %v1285 = vmul.f32 %v1284, %v135
        %v1286 = vmul.f32 %v1284, %v136
        %v1287 = vmul.f32 %v1284, %v137
        %v1288 = vmul.f32 %v1284, %v138
        %v1289 = vmul.f32 %v1284, %v139
        %v1290 = vmul.f32 %v1284, %v140
        %v1291 = vmul.f32 %v1284, %v141
        %v1292 = vmul.f32 %v1284, %v142
        %v1293 = vadd.f32 %v1283, %v1285
        %v1294 = vadd.f32 %v1283, %v1286
        %v1295 = vadd.f32 %v1283, %v1287
        %v1296 = vadd.f32 %v1283, %v1288
        %v1297 = vadd.f32 %v1283, %v1289
        %v1298 = vadd.f32 %v1283, %v1290
        %v1299 = vadd.f32 %v1283, %v1291
        %v1300 = vadd.f32 %v1283, %v1292
        %v1301 = vstv %s1275
        %v1302 = vadd.f32 %v1293, %v1301
        %v1303 = vadd.f32 %v1294, %v1301
        %v1304 = vadd.f32 %v1295, %v1301
        %v1305 = vadd.f32 %v1296, %v1301
        %v1306 = vadd.f32 %v1297, %v1301
        %v1307 = vadd.f32 %v1298, %v1301
        %v1308 = vadd.f32 %v1299, %v1301
        %v1309 = vadd.f32 %v1300, %v1301
        %v1310 = vstv %s1276
        %v1311 = vmul.f32 %v1310, %v146
        %v1312 = vstv %s1277
        %v1313 = vmul.f32 %v1312, %v135
        %v1314 = vmul.f32 %v1312, %v136
        %v1315 = vmul.f32 %v1312, %v137
        %v1316 = vmul.f32 %v1312, %v138
        %v1317 = vmul.f32 %v1312, %v139
        %v1318 = vmul.f32 %v1312, %v140
        %v1319 = vmul.f32 %v1312, %v141
        %v1320 = vmul.f32 %v1312, %v142
        %v1321 = vadd.f32 %v1311, %v1313
        %v1322 = vadd.f32 %v1311, %v1314
        %v1323 = vadd.f32 %v1311, %v1315
        %v1324 = vadd.f32 %v1311, %v1316
        %v1325 = vadd.f32 %v1311, %v1317
        %v1326 = vadd.f32 %v1311, %v1318
        %v1327 = vadd.f32 %v1311, %v1319
        %v1328 = vadd.f32 %v1311, %v1320
        %v1329 = vstv %s1278
        %v1330 = vadd.f32 %v1321, %v1329
        %v1331 = vadd.f32 %v1322, %v1329
        %v1332 = vadd.f32 %v1323, %v1329
        %v1333 = vadd.f32 %v1324, %v1329
        %v1334 = vadd.f32 %v1325, %v1329
        %v1335 = vadd.f32 %v1326, %v1329
        %v1336 = vadd.f32 %v1327, %v1329
        %v1337 = vadd.f32 %v1328, %v1329
        %v1338 = vstv %s1279
        %v1339 = vmul.f32 %v1338, %v146
        %v1340 = vstv %s1280
        %v1341 = vmul.f32 %v1340, %v135
        %v1342 = vmul.f32 %v1340, %v136
        %v1343 = vmul.f32 %v1340, %v137
        %v1344 = vmul.f32 %v1340, %v138
        %v1345 = vmul.f32 %v1340, %v139
        %v1346 = vmul.f32 %v1340, %v140
        %v1347 = vmul.f32 %v1340, %v141
        %v1348 = vmul.f32 %v1340, %v142
        %v1349 = vadd.f32 %v1339, %v1341
        %v1350 = vadd.f32 %v1339, %v1342
        %v1351 = vadd.f32 %v1339, %v1343
        %v1352 = vadd.f32 %v1339, %v1344
        %v1353 = vadd.f32 %v1339, %v1345
        %v1354 = vadd.f32 %v1339, %v1346
        %v1355 = vadd.f32 %v1339, %v1347
        %v1356 = vadd.f32 %v1339, %v1348
        %v1357 = vstv %s1281
        %v1358 = vadd.f32 %v1349, %v1357
        %v1359 = vadd.f32 %v1350, %v1357
        %v1360 = vadd.f32 %v1351, %v1357
        %v1361 = vadd.f32 %v1352, %v1357
        %v1362 = vadd.f32 %v1353, %v1357
        %v1363 = vadd.f32 %v1354, %v1357
        %v1364 = vadd.f32 %v1355, %v1357
        %v1365 = vadd.f32 %v1356, %v1357
        %vm1366 = vcmp.ge.f32.partialorder %v1302, 0.0
        %vm1367 = vcmp.ge.f32.partialorder %v1303, 0.0
        %vm1368 = vcmp.ge.f32.partialorder %v1304, 0.0
        %vm1369 = vcmp.ge.f32.partialorder %v1305, 0.0
        %vm1370 = vcmp.ge.f32.partialorder %v1306, 0.0
        %vm1371 = vcmp.ge.f32.partialorder %v1307, 0.0
        %vm1372 = vcmp.ge.f32.partialorder %v1308, 0.0
        %vm1373 = vcmp.ge.f32.partialorder %v1309, 0.0
        %vm1374 = vcmp.ge.f32.partialorder %v1330, 0.0
        %vm1375 = vcmp.ge.f32.partialorder %v1331, 0.0
        %vm1376 = vcmp.ge.f32.partialorder %v1332, 0.0
        %vm1377 = vcmp.ge.f32.partialorder %v1333, 0.0
        %vm1378 = vcmp.ge.f32.partialorder %v1334, 0.0
        %vm1379 = vcmp.ge.f32.partialorder %v1335, 0.0
        %vm1380 = vcmp.ge.f32.partialorder %v1336, 0.0
        %vm1381 = vcmp.ge.f32.partialorder %v1337, 0.0
        %vm1382 = vmand %vm1366, %vm1374
        %vm1383 = vmand %vm1367, %vm1375
        %vm1384 = vmand %vm1368, %vm1376
        %vm1385 = vmand %vm1369, %vm1377
        %vm1386 = vmand %vm1370, %vm1378
        %vm1387 = vmand %vm1371, %vm1379
        %vm1388 = vmand %vm1372, %vm1380
        %vm1389 = vmand %vm1373, %vm1381
        %vm1390 = vcmp.ge.f32.partialorder %v1358, 0.0
        %vm1391 = vcmp.ge.f32.partialorder %v1359, 0.0
        %vm1392 = vcmp.ge.f32.partialorder %v1360, 0.0
        %vm1393 = vcmp.ge.f32.partialorder %v1361, 0.0
        %vm1394 = vcmp.ge.f32.partialorder %v1362, 0.0
        %vm1395 = vcmp.ge.f32.partialorder %v1363, 0.0
        %vm1396 = vcmp.ge.f32.partialorder %v1364, 0.0
        %vm1397 = vcmp.ge.f32.partialorder %v1365, 0.0
        %vm1398 = vmand %vm1382, %vm1390
        %vm1399 = vmand %vm1383, %vm1391
        %vm1400 = vmand %vm1384, %vm1392
        %vm1401 = vmand %vm1385, %vm1393
        %vm1402 = vmand %vm1386, %vm1394
        %vm1403 = vmand %vm1387, %vm1395
        %vm1404 = vmand %vm1388, %vm1396
        %vm1405 = vmand %vm1389, %vm1397
        %vm1406 = vcmp.le.f32.partialorder %v1302, 0.0
        %vm1407 = vcmp.le.f32.partialorder %v1303, 0.0
        %vm1408 = vcmp.le.f32.partialorder %v1304, 0.0
        %vm1409 = vcmp.le.f32.partialorder %v1305, 0.0
        %vm1410 = vcmp.le.f32.partialorder %v1306, 0.0
        %vm1411 = vcmp.le.f32.partialorder %v1307, 0.0
        %vm1412 = vcmp.le.f32.partialorder %v1308, 0.0
        %vm1413 = vcmp.le.f32.partialorder %v1309, 0.0
        %vm1414 = vcmp.le.f32.partialorder %v1330, 0.0
        %vm1415 = vcmp.le.f32.partialorder %v1331, 0.0
        %vm1416 = vcmp.le.f32.partialorder %v1332, 0.0
        %vm1417 = vcmp.le.f32.partialorder %v1333, 0.0
        %vm1418 = vcmp.le.f32.partialorder %v1334, 0.0
        %vm1419 = vcmp.le.f32.partialorder %v1335, 0.0
        %vm1420 = vcmp.le.f32.partialorder %v1336, 0.0
        %vm1421 = vcmp.le.f32.partialorder %v1337, 0.0
        %vm1422 = vmand %vm1406, %vm1414
        %vm1423 = vmand %vm1407, %vm1415
        %vm1424 = vmand %vm1408, %vm1416
        %vm1425 = vmand %vm1409, %vm1417
        %vm1426 = vmand %vm1410, %vm1418
        %vm1427 = vmand %vm1411, %vm1419
        %vm1428 = vmand %vm1412, %vm1420
        %vm1429 = vmand %vm1413, %vm1421
        %vm1430 = vcmp.le.f32.partialorder %v1358, 0.0
        %vm1431 = vcmp.le.f32.partialorder %v1359, 0.0
        %vm1432 = vcmp.le.f32.partialorder %v1360, 0.0
        %vm1433 = vcmp.le.f32.partialorder %v1361, 0.0
        %vm1434 = vcmp.le.f32.partialorder %v1362, 0.0
        %vm1435 = vcmp.le.f32.partialorder %v1363, 0.0
        %vm1436 = vcmp.le.f32.partialorder %v1364, 0.0
        %vm1437 = vcmp.le.f32.partialorder %v1365, 0.0
        %vm1438 = vmand %vm1422, %vm1430
        %vm1439 = vmand %vm1423, %vm1431
        %vm1440 = vmand %vm1424, %vm1432
        %vm1441 = vmand %vm1425, %vm1433
        %vm1442 = vmand %vm1426, %vm1434
        %vm1443 = vmand %vm1427, %vm1435
        %vm1444 = vmand %vm1428, %vm1436
        %vm1445 = vmand %vm1429, %vm1437
        %vm1446 = vmor %vm1265, %vm1398
        %vm1447 = vmor %vm1266, %vm1399
        %vm1448 = vmor %vm1267, %vm1400
        %vm1449 = vmor %vm1268, %vm1401
        %vm1450 = vmor %vm1269, %vm1402
        %vm1451 = vmor %vm1270, %vm1403
        %vm1452 = vmor %vm1271, %vm1404
        %vm1453 = vmor %vm1272, %vm1405
        %vm1454 = vmor %vm1446, %vm1438
        %vm1455 = vmor %vm1447, %vm1439
        %vm1456 = vmor %vm1448, %vm1440
        %vm1457 = vmor %vm1449, %vm1441
        %vm1458 = vmor %vm1450, %vm1442
        %vm1459 = vmor %vm1451, %vm1443
        %vm1460 = vmor %vm1452, %vm1444
        %vm1461 = vmor %vm1453, %vm1445
        %s1462 = sld [smem:[#allocation2 + $0x3f]]
        %s1463 = sld [smem:[#allocation2 + $0x40]]
        %s1464 = sld [smem:[#allocation2 + $0x41]]
        %s1465 = sld [smem:[#allocation2 + $0x42]]
        %s1466 = sld [smem:[#allocation2 + $0x43]]
        %s1467 = sld [smem:[#allocation2 + $0x44]]
        %s1468 = sld [smem:[#allocation2 + $0x45]]
        %s1469 = sld [smem:[#allocation2 + $0x46]]
        %s1470 = sld [smem:[#allocation2 + $0x47]]
        %v1471 = vstv %s1462
        %v1472 = vmul.f32 %v1471, %v146
        %v1473 = vstv %s1463
        %v1474 = vmul.f32 %v1473, %v135
        %v1475 = vmul.f32 %v1473, %v136
        %v1476 = vmul.f32 %v1473, %v137
        %v1477 = vmul.f32 %v1473, %v138
        %v1478 = vmul.f32 %v1473, %v139
        %v1479 = vmul.f32 %v1473, %v140
        %v1480 = vmul.f32 %v1473, %v141
        %v1481 = vmul.f32 %v1473, %v142
        %v1482 = vadd.f32 %v1472, %v1474
        %v1483 = vadd.f32 %v1472, %v1475
        %v1484 = vadd.f32 %v1472, %v1476
        %v1485 = vadd.f32 %v1472, %v1477
        %v1486 = vadd.f32 %v1472, %v1478
        %v1487 = vadd.f32 %v1472, %v1479
        %v1488 = vadd.f32 %v1472, %v1480
        %v1489 = vadd.f32 %v1472, %v1481
        %v1490 = vstv %s1464
        %v1491 = vadd.f32 %v1482, %v1490
        %v1492 = vadd.f32 %v1483, %v1490
        %v1493 = vadd.f32 %v1484, %v1490
        %v1494 = vadd.f32 %v1485, %v1490
        %v1495 = vadd.f32 %v1486, %v1490
        %v1496 = vadd.f32 %v1487, %v1490
        %v1497 = vadd.f32 %v1488, %v1490
        %v1498 = vadd.f32 %v1489, %v1490
        %v1499 = vstv %s1465
        %v1500 = vmul.f32 %v1499, %v146
        %v1501 = vstv %s1466
        %v1502 = vmul.f32 %v1501, %v135
        %v1503 = vmul.f32 %v1501, %v136
        %v1504 = vmul.f32 %v1501, %v137
        %v1505 = vmul.f32 %v1501, %v138
        %v1506 = vmul.f32 %v1501, %v139
        %v1507 = vmul.f32 %v1501, %v140
        %v1508 = vmul.f32 %v1501, %v141
        %v1509 = vmul.f32 %v1501, %v142
        %v1510 = vadd.f32 %v1500, %v1502
        %v1511 = vadd.f32 %v1500, %v1503
        %v1512 = vadd.f32 %v1500, %v1504
        %v1513 = vadd.f32 %v1500, %v1505
        %v1514 = vadd.f32 %v1500, %v1506
        %v1515 = vadd.f32 %v1500, %v1507
        %v1516 = vadd.f32 %v1500, %v1508
        %v1517 = vadd.f32 %v1500, %v1509
        %v1518 = vstv %s1467
        %v1519 = vadd.f32 %v1510, %v1518
        %v1520 = vadd.f32 %v1511, %v1518
        %v1521 = vadd.f32 %v1512, %v1518
        %v1522 = vadd.f32 %v1513, %v1518
        %v1523 = vadd.f32 %v1514, %v1518
        %v1524 = vadd.f32 %v1515, %v1518
        %v1525 = vadd.f32 %v1516, %v1518
        %v1526 = vadd.f32 %v1517, %v1518
        %v1527 = vstv %s1468
        %v1528 = vmul.f32 %v1527, %v146
        %v1529 = vstv %s1469
        %v1530 = vmul.f32 %v1529, %v135
        %v1531 = vmul.f32 %v1529, %v136
        %v1532 = vmul.f32 %v1529, %v137
        %v1533 = vmul.f32 %v1529, %v138
        %v1534 = vmul.f32 %v1529, %v139
        %v1535 = vmul.f32 %v1529, %v140
        %v1536 = vmul.f32 %v1529, %v141
        %v1537 = vmul.f32 %v1529, %v142
        %v1538 = vadd.f32 %v1528, %v1530
        %v1539 = vadd.f32 %v1528, %v1531
        %v1540 = vadd.f32 %v1528, %v1532
        %v1541 = vadd.f32 %v1528, %v1533
        %v1542 = vadd.f32 %v1528, %v1534
        %v1543 = vadd.f32 %v1528, %v1535
        %v1544 = vadd.f32 %v1528, %v1536
        %v1545 = vadd.f32 %v1528, %v1537
        %v1546 = vstv %s1470
        %v1547 = vadd.f32 %v1538, %v1546
        %v1548 = vadd.f32 %v1539, %v1546
        %v1549 = vadd.f32 %v1540, %v1546
        %v1550 = vadd.f32 %v1541, %v1546
        %v1551 = vadd.f32 %v1542, %v1546
        %v1552 = vadd.f32 %v1543, %v1546
        %v1553 = vadd.f32 %v1544, %v1546
        %v1554 = vadd.f32 %v1545, %v1546
        %vm1555 = vcmp.ge.f32.partialorder %v1491, 0.0
        %vm1556 = vcmp.ge.f32.partialorder %v1492, 0.0
        %vm1557 = vcmp.ge.f32.partialorder %v1493, 0.0
        %vm1558 = vcmp.ge.f32.partialorder %v1494, 0.0
        %vm1559 = vcmp.ge.f32.partialorder %v1495, 0.0
        %vm1560 = vcmp.ge.f32.partialorder %v1496, 0.0
        %vm1561 = vcmp.ge.f32.partialorder %v1497, 0.0
        %vm1562 = vcmp.ge.f32.partialorder %v1498, 0.0
        %vm1563 = vcmp.ge.f32.partialorder %v1519, 0.0
        %vm1564 = vcmp.ge.f32.partialorder %v1520, 0.0
        %vm1565 = vcmp.ge.f32.partialorder %v1521, 0.0
        %vm1566 = vcmp.ge.f32.partialorder %v1522, 0.0
        %vm1567 = vcmp.ge.f32.partialorder %v1523, 0.0
        %vm1568 = vcmp.ge.f32.partialorder %v1524, 0.0
        %vm1569 = vcmp.ge.f32.partialorder %v1525, 0.0
        %vm1570 = vcmp.ge.f32.partialorder %v1526, 0.0
        %vm1571 = vmand %vm1555, %vm1563
        %vm1572 = vmand %vm1556, %vm1564
        %vm1573 = vmand %vm1557, %vm1565
        %vm1574 = vmand %vm1558, %vm1566
        %vm1575 = vmand %vm1559, %vm1567
        %vm1576 = vmand %vm1560, %vm1568
        %vm1577 = vmand %vm1561, %vm1569
        %vm1578 = vmand %vm1562, %vm1570
        %vm1579 = vcmp.ge.f32.partialorder %v1547, 0.0
        %vm1580 = vcmp.ge.f32.partialorder %v1548, 0.0
        %vm1581 = vcmp.ge.f32.partialorder %v1549, 0.0
        %vm1582 = vcmp.ge.f32.partialorder %v1550, 0.0
        %vm1583 = vcmp.ge.f32.partialorder %v1551, 0.0
        %vm1584 = vcmp.ge.f32.partialorder %v1552, 0.0
        %vm1585 = vcmp.ge.f32.partialorder %v1553, 0.0
        %vm1586 = vcmp.ge.f32.partialorder %v1554, 0.0
        %vm1587 = vmand %vm1571, %vm1579
        %vm1588 = vmand %vm1572, %vm1580
        %vm1589 = vmand %vm1573, %vm1581
        %vm1590 = vmand %vm1574, %vm1582
        %vm1591 = vmand %vm1575, %vm1583
        %vm1592 = vmand %vm1576, %vm1584
        %vm1593 = vmand %vm1577, %vm1585
        %vm1594 = vmand %vm1578, %vm1586
        %vm1595 = vcmp.le.f32.partialorder %v1491, 0.0
        %vm1596 = vcmp.le.f32.partialorder %v1492, 0.0
        %vm1597 = vcmp.le.f32.partialorder %v1493, 0.0
        %vm1598 = vcmp.le.f32.partialorder %v1494, 0.0
        %vm1599 = vcmp.le.f32.partialorder %v1495, 0.0
        %vm1600 = vcmp.le.f32.partialorder %v1496, 0.0
        %vm1601 = vcmp.le.f32.partialorder %v1497, 0.0
        %vm1602 = vcmp.le.f32.partialorder %v1498, 0.0
        %vm1603 = vcmp.le.f32.partialorder %v1519, 0.0
        %vm1604 = vcmp.le.f32.partialorder %v1520, 0.0
        %vm1605 = vcmp.le.f32.partialorder %v1521, 0.0
        %vm1606 = vcmp.le.f32.partialorder %v1522, 0.0
        %vm1607 = vcmp.le.f32.partialorder %v1523, 0.0
        %vm1608 = vcmp.le.f32.partialorder %v1524, 0.0
        %vm1609 = vcmp.le.f32.partialorder %v1525, 0.0
        %vm1610 = vcmp.le.f32.partialorder %v1526, 0.0
        %vm1611 = vmand %vm1595, %vm1603
        %vm1612 = vmand %vm1596, %vm1604
        %vm1613 = vmand %vm1597, %vm1605
        %vm1614 = vmand %vm1598, %vm1606
        %vm1615 = vmand %vm1599, %vm1607
        %vm1616 = vmand %vm1600, %vm1608
        %vm1617 = vmand %vm1601, %vm1609
        %vm1618 = vmand %vm1602, %vm1610
        %vm1619 = vcmp.le.f32.partialorder %v1547, 0.0
        %vm1620 = vcmp.le.f32.partialorder %v1548, 0.0
        %vm1621 = vcmp.le.f32.partialorder %v1549, 0.0
        %vm1622 = vcmp.le.f32.partialorder %v1550, 0.0
        %vm1623 = vcmp.le.f32.partialorder %v1551, 0.0
        %vm1624 = vcmp.le.f32.partialorder %v1552, 0.0
        %vm1625 = vcmp.le.f32.partialorder %v1553, 0.0
        %vm1626 = vcmp.le.f32.partialorder %v1554, 0.0
        %vm1627 = vmand %vm1611, %vm1619
        %vm1628 = vmand %vm1612, %vm1620
        %vm1629 = vmand %vm1613, %vm1621
        %vm1630 = vmand %vm1614, %vm1622
        %vm1631 = vmand %vm1615, %vm1623
        %vm1632 = vmand %vm1616, %vm1624
        %vm1633 = vmand %vm1617, %vm1625
        %vm1634 = vmand %vm1618, %vm1626
        %vm1635 = vmor %vm1454, %vm1587
        %vm1636 = vmor %vm1455, %vm1588
        %vm1637 = vmor %vm1456, %vm1589
        %vm1638 = vmor %vm1457, %vm1590
        %vm1639 = vmor %vm1458, %vm1591
        %vm1640 = vmor %vm1459, %vm1592
        %vm1641 = vmor %vm1460, %vm1593
        %vm1642 = vmor %vm1461, %vm1594
        %vm1643 = vmor %vm1635, %vm1627
        %vm1644 = vmor %vm1636, %vm1628
        %vm1645 = vmor %vm1637, %vm1629
        %vm1646 = vmor %vm1638, %vm1630
        %vm1647 = vmor %vm1639, %vm1631
        %vm1648 = vmor %vm1640, %vm1632
        %vm1649 = vmor %vm1641, %vm1633
        %vm1650 = vmor %vm1642, %vm1634
        %s1651 = sld [smem:[#allocation2 + $0x48]]
        %s1652 = sld [smem:[#allocation2 + $0x49]]
        %s1653 = sld [smem:[#allocation2 + $0x4a]]
        %s1654 = sld [smem:[#allocation2 + $0x4b]]
        %s1655 = sld [smem:[#allocation2 + $0x4c]]
        %s1656 = sld [smem:[#allocation2 + $0x4d]]
        %s1657 = sld [smem:[#allocation2 + $0x4e]]
        %s1658 = sld [smem:[#allocation2 + $0x4f]]
        %s1659 = sld [smem:[#allocation2 + $0x50]]
        %v1660 = vstv %s1651
        %v1661 = vmul.f32 %v1660, %v146
        %v1662 = vstv %s1652
        %v1663 = vmul.f32 %v1662, %v135
        %v1664 = vmul.f32 %v1662, %v136
        %v1665 = vmul.f32 %v1662, %v137
        %v1666 = vmul.f32 %v1662, %v138
        %v1667 = vmul.f32 %v1662, %v139
        %v1668 = vmul.f32 %v1662, %v140
        %v1669 = vmul.f32 %v1662, %v141
        %v1670 = vmul.f32 %v1662, %v142
        %v1671 = vadd.f32 %v1661, %v1663
        %v1672 = vadd.f32 %v1661, %v1664
        %v1673 = vadd.f32 %v1661, %v1665
        %v1674 = vadd.f32 %v1661, %v1666
        %v1675 = vadd.f32 %v1661, %v1667
        %v1676 = vadd.f32 %v1661, %v1668
        %v1677 = vadd.f32 %v1661, %v1669
        %v1678 = vadd.f32 %v1661, %v1670
        %v1679 = vstv %s1653
        %v1680 = vadd.f32 %v1671, %v1679
        %v1681 = vadd.f32 %v1672, %v1679
        %v1682 = vadd.f32 %v1673, %v1679
        %v1683 = vadd.f32 %v1674, %v1679
        %v1684 = vadd.f32 %v1675, %v1679
        %v1685 = vadd.f32 %v1676, %v1679
        %v1686 = vadd.f32 %v1677, %v1679
        %v1687 = vadd.f32 %v1678, %v1679
        %v1688 = vstv %s1654
        %v1689 = vmul.f32 %v1688, %v146
        %v1690 = vstv %s1655
        %v1691 = vmul.f32 %v1690, %v135
        %v1692 = vmul.f32 %v1690, %v136
        %v1693 = vmul.f32 %v1690, %v137
        %v1694 = vmul.f32 %v1690, %v138
        %v1695 = vmul.f32 %v1690, %v139
        %v1696 = vmul.f32 %v1690, %v140
        %v1697 = vmul.f32 %v1690, %v141
        %v1698 = vmul.f32 %v1690, %v142
        %v1699 = vadd.f32 %v1689, %v1691
        %v1700 = vadd.f32 %v1689, %v1692
        %v1701 = vadd.f32 %v1689, %v1693
        %v1702 = vadd.f32 %v1689, %v1694
        %v1703 = vadd.f32 %v1689, %v1695
        %v1704 = vadd.f32 %v1689, %v1696
        %v1705 = vadd.f32 %v1689, %v1697
        %v1706 = vadd.f32 %v1689, %v1698
        %v1707 = vstv %s1656
        %v1708 = vadd.f32 %v1699, %v1707
        %v1709 = vadd.f32 %v1700, %v1707
        %v1710 = vadd.f32 %v1701, %v1707
        %v1711 = vadd.f32 %v1702, %v1707
        %v1712 = vadd.f32 %v1703, %v1707
        %v1713 = vadd.f32 %v1704, %v1707
        %v1714 = vadd.f32 %v1705, %v1707
        %v1715 = vadd.f32 %v1706, %v1707
        %v1716 = vstv %s1657
        %v1717 = vmul.f32 %v1716, %v146
        %v1718 = vstv %s1658
        %v1719 = vmul.f32 %v1718, %v135
        %v1720 = vmul.f32 %v1718, %v136
        %v1721 = vmul.f32 %v1718, %v137
        %v1722 = vmul.f32 %v1718, %v138
        %v1723 = vmul.f32 %v1718, %v139
        %v1724 = vmul.f32 %v1718, %v140
        %v1725 = vmul.f32 %v1718, %v141
        %v1726 = vmul.f32 %v1718, %v142
        %v1727 = vadd.f32 %v1717, %v1719
        %v1728 = vadd.f32 %v1717, %v1720
        %v1729 = vadd.f32 %v1717, %v1721
        %v1730 = vadd.f32 %v1717, %v1722
        %v1731 = vadd.f32 %v1717, %v1723
        %v1732 = vadd.f32 %v1717, %v1724
        %v1733 = vadd.f32 %v1717, %v1725
        %v1734 = vadd.f32 %v1717, %v1726
        %v1735 = vstv %s1659
        %v1736 = vadd.f32 %v1727, %v1735
        %v1737 = vadd.f32 %v1728, %v1735
        %v1738 = vadd.f32 %v1729, %v1735
        %v1739 = vadd.f32 %v1730, %v1735
        %v1740 = vadd.f32 %v1731, %v1735
        %v1741 = vadd.f32 %v1732, %v1735
        %v1742 = vadd.f32 %v1733, %v1735
        %v1743 = vadd.f32 %v1734, %v1735
        %vm1744 = vcmp.ge.f32.partialorder %v1680, 0.0
        %vm1745 = vcmp.ge.f32.partialorder %v1681, 0.0
        %vm1746 = vcmp.ge.f32.partialorder %v1682, 0.0
        %vm1747 = vcmp.ge.f32.partialorder %v1683, 0.0
        %vm1748 = vcmp.ge.f32.partialorder %v1684, 0.0
        %vm1749 = vcmp.ge.f32.partialorder %v1685, 0.0
        %vm1750 = vcmp.ge.f32.partialorder %v1686, 0.0
        %vm1751 = vcmp.ge.f32.partialorder %v1687, 0.0
        %vm1752 = vcmp.ge.f32.partialorder %v1708, 0.0
        %vm1753 = vcmp.ge.f32.partialorder %v1709, 0.0
        %vm1754 = vcmp.ge.f32.partialorder %v1710, 0.0
        %vm1755 = vcmp.ge.f32.partialorder %v1711, 0.0
        %vm1756 = vcmp.ge.f32.partialorder %v1712, 0.0
        %vm1757 = vcmp.ge.f32.partialorder %v1713, 0.0
        %vm1758 = vcmp.ge.f32.partialorder %v1714, 0.0
        %vm1759 = vcmp.ge.f32.partialorder %v1715, 0.0
        %vm1760 = vmand %vm1744, %vm1752
        %vm1761 = vmand %vm1745, %vm1753
        %vm1762 = vmand %vm1746, %vm1754
        %vm1763 = vmand %vm1747, %vm1755
        %vm1764 = vmand %vm1748, %vm1756
        %vm1765 = vmand %vm1749, %vm1757
        %vm1766 = vmand %vm1750, %vm1758
        %vm1767 = vmand %vm1751, %vm1759
        %vm1768 = vcmp.ge.f32.partialorder %v1736, 0.0
        %vm1769 = vcmp.ge.f32.partialorder %v1737, 0.0
        %vm1770 = vcmp.ge.f32.partialorder %v1738, 0.0
        %vm1771 = vcmp.ge.f32.partialorder %v1739, 0.0
        %vm1772 = vcmp.ge.f32.partialorder %v1740, 0.0
        %vm1773 = vcmp.ge.f32.partialorder %v1741, 0.0
        %vm1774 = vcmp.ge.f32.partialorder %v1742, 0.0
        %vm1775 = vcmp.ge.f32.partialorder %v1743, 0.0
        %vm1776 = vmand %vm1760, %vm1768
        %vm1777 = vmand %vm1761, %vm1769
        %vm1778 = vmand %vm1762, %vm1770
        %vm1779 = vmand %vm1763, %vm1771
        %vm1780 = vmand %vm1764, %vm1772
        %vm1781 = vmand %vm1765, %vm1773
        %vm1782 = vmand %vm1766, %vm1774
        %vm1783 = vmand %vm1767, %vm1775
        %vm1784 = vcmp.le.f32.partialorder %v1680, 0.0
        %vm1785 = vcmp.le.f32.partialorder %v1681, 0.0
        %vm1786 = vcmp.le.f32.partialorder %v1682, 0.0
        %vm1787 = vcmp.le.f32.partialorder %v1683, 0.0
        %vm1788 = vcmp.le.f32.partialorder %v1684, 0.0
        %vm1789 = vcmp.le.f32.partialorder %v1685, 0.0
        %vm1790 = vcmp.le.f32.partialorder %v1686, 0.0
        %vm1791 = vcmp.le.f32.partialorder %v1687, 0.0
        %vm1792 = vcmp.le.f32.partialorder %v1708, 0.0
        %vm1793 = vcmp.le.f32.partialorder %v1709, 0.0
        %vm1794 = vcmp.le.f32.partialorder %v1710, 0.0
        %vm1795 = vcmp.le.f32.partialorder %v1711, 0.0
        %vm1796 = vcmp.le.f32.partialorder %v1712, 0.0
        %vm1797 = vcmp.le.f32.partialorder %v1713, 0.0
        %vm1798 = vcmp.le.f32.partialorder %v1714, 0.0
        %vm1799 = vcmp.le.f32.partialorder %v1715, 0.0
        %vm1800 = vmand %vm1784, %vm1792
        %vm1801 = vmand %vm1785, %vm1793
        %vm1802 = vmand %vm1786, %vm1794
        %vm1803 = vmand %vm1787, %vm1795
        %vm1804 = vmand %vm1788, %vm1796
        %vm1805 = vmand %vm1789, %vm1797
        %vm1806 = vmand %vm1790, %vm1798
        %vm1807 = vmand %vm1791, %vm1799
        %vm1808 = vcmp.le.f32.partialorder %v1736, 0.0
        %vm1809 = vcmp.le.f32.partialorder %v1737, 0.0
        %vm1810 = vcmp.le.f32.partialorder %v1738, 0.0
        %vm1811 = vcmp.le.f32.partialorder %v1739, 0.0
        %vm1812 = vcmp.le.f32.partialorder %v1740, 0.0
        %vm1813 = vcmp.le.f32.partialorder %v1741, 0.0
        %vm1814 = vcmp.le.f32.partialorder %v1742, 0.0
        %vm1815 = vcmp.le.f32.partialorder %v1743, 0.0
        %vm1816 = vmand %vm1800, %vm1808
        %vm1817 = vmand %vm1801, %vm1809
        %vm1818 = vmand %vm1802, %vm1810
        %vm1819 = vmand %vm1803, %vm1811
        %vm1820 = vmand %vm1804, %vm1812
        %vm1821 = vmand %vm1805, %vm1813
        %vm1822 = vmand %vm1806, %vm1814
        %vm1823 = vmand %vm1807, %vm1815
        %vm1824 = vmor %vm1643, %vm1776
        %vm1825 = vmor %vm1644, %vm1777
        %vm1826 = vmor %vm1645, %vm1778
        %vm1827 = vmor %vm1646, %vm1779
        %vm1828 = vmor %vm1647, %vm1780
        %vm1829 = vmor %vm1648, %vm1781
        %vm1830 = vmor %vm1649, %vm1782
        %vm1831 = vmor %vm1650, %vm1783
        %vm1832 = vmor %vm1824, %vm1816
        %vm1833 = vmor %vm1825, %vm1817
        %vm1834 = vmor %vm1826, %vm1818
        %vm1835 = vmor %vm1827, %vm1819
        %vm1836 = vmor %vm1828, %vm1820
        %vm1837 = vmor %vm1829, %vm1821
        %vm1838 = vmor %vm1830, %vm1822
        %vm1839 = vmor %vm1831, %vm1823
        %s1840 = sld [smem:[#allocation2 + $0x51]]
        %s1841 = sld [smem:[#allocation2 + $0x52]]
        %s1842 = sld [smem:[#allocation2 + $0x53]]
        %s1843 = sld [smem:[#allocation2 + $0x54]]
        %s1844 = sld [smem:[#allocation2 + $0x55]]
        %s1845 = sld [smem:[#allocation2 + $0x56]]
        %s1846 = sld [smem:[#allocation2 + $0x57]]
        %s1847 = sld [smem:[#allocation2 + $0x58]]
        %s1848 = sld [smem:[#allocation2 + $0x59]]
        %v1849 = vstv %s1840
        %v1850 = vmul.f32 %v1849, %v146
        %v1851 = vstv %s1841
        %v1852 = vmul.f32 %v1851, %v135
        %v1853 = vmul.f32 %v1851, %v136
        %v1854 = vmul.f32 %v1851, %v137
        %v1855 = vmul.f32 %v1851, %v138
        %v1856 = vmul.f32 %v1851, %v139
        %v1857 = vmul.f32 %v1851, %v140
        %v1858 = vmul.f32 %v1851, %v141
        %v1859 = vmul.f32 %v1851, %v142
        %v1860 = vadd.f32 %v1850, %v1852
        %v1861 = vadd.f32 %v1850, %v1853
        %v1862 = vadd.f32 %v1850, %v1854
        %v1863 = vadd.f32 %v1850, %v1855
        %v1864 = vadd.f32 %v1850, %v1856
        %v1865 = vadd.f32 %v1850, %v1857
        %v1866 = vadd.f32 %v1850, %v1858
        %v1867 = vadd.f32 %v1850, %v1859
        %v1868 = vstv %s1842
        %v1869 = vadd.f32 %v1860, %v1868
        %v1870 = vadd.f32 %v1861, %v1868
        %v1871 = vadd.f32 %v1862, %v1868
        %v1872 = vadd.f32 %v1863, %v1868
        %v1873 = vadd.f32 %v1864, %v1868
        %v1874 = vadd.f32 %v1865, %v1868
        %v1875 = vadd.f32 %v1866, %v1868
        %v1876 = vadd.f32 %v1867, %v1868
        %v1877 = vstv %s1843
        %v1878 = vmul.f32 %v1877, %v146
        %v1879 = vstv %s1844
        %v1880 = vmul.f32 %v1879, %v135
        %v1881 = vmul.f32 %v1879, %v136
        %v1882 = vmul.f32 %v1879, %v137
        %v1883 = vmul.f32 %v1879, %v138
        %v1884 = vmul.f32 %v1879, %v139
        %v1885 = vmul.f32 %v1879, %v140
        %v1886 = vmul.f32 %v1879, %v141
        %v1887 = vmul.f32 %v1879, %v142
        %v1888 = vadd.f32 %v1878, %v1880
        %v1889 = vadd.f32 %v1878, %v1881
        %v1890 = vadd.f32 %v1878, %v1882
        %v1891 = vadd.f32 %v1878, %v1883
        %v1892 = vadd.f32 %v1878, %v1884
        %v1893 = vadd.f32 %v1878, %v1885
        %v1894 = vadd.f32 %v1878, %v1886
        %v1895 = vadd.f32 %v1878, %v1887
        %v1896 = vstv %s1845
        %v1897 = vadd.f32 %v1888, %v1896
        %v1898 = vadd.f32 %v1889, %v1896
        %v1899 = vadd.f32 %v1890, %v1896
        %v1900 = vadd.f32 %v1891, %v1896
        %v1901 = vadd.f32 %v1892, %v1896
        %v1902 = vadd.f32 %v1893, %v1896
        %v1903 = vadd.f32 %v1894, %v1896
        %v1904 = vadd.f32 %v1895, %v1896
        %v1905 = vstv %s1846
        %v1906 = vmul.f32 %v1905, %v146
        %v1907 = vstv %s1847
        %v1908 = vmul.f32 %v1907, %v135
        %v1909 = vmul.f32 %v1907, %v136
        %v1910 = vmul.f32 %v1907, %v137
        %v1911 = vmul.f32 %v1907, %v138
        %v1912 = vmul.f32 %v1907, %v139
        %v1913 = vmul.f32 %v1907, %v140
        %v1914 = vmul.f32 %v1907, %v141
        %v1915 = vmul.f32 %v1907, %v142
        %v1916 = vadd.f32 %v1906, %v1908
        %v1917 = vadd.f32 %v1906, %v1909
        %v1918 = vadd.f32 %v1906, %v1910
        %v1919 = vadd.f32 %v1906, %v1911
        %v1920 = vadd.f32 %v1906, %v1912
        %v1921 = vadd.f32 %v1906, %v1913
        %v1922 = vadd.f32 %v1906, %v1914
        %v1923 = vadd.f32 %v1906, %v1915
        %v1924 = vstv %s1848
        %v1925 = vadd.f32 %v1916, %v1924
        %v1926 = vadd.f32 %v1917, %v1924
        %v1927 = vadd.f32 %v1918, %v1924
        %v1928 = vadd.f32 %v1919, %v1924
        %v1929 = vadd.f32 %v1920, %v1924
        %v1930 = vadd.f32 %v1921, %v1924
        %v1931 = vadd.f32 %v1922, %v1924
        %v1932 = vadd.f32 %v1923, %v1924
        %vm1933 = vcmp.ge.f32.partialorder %v1869, 0.0
        %vm1934 = vcmp.ge.f32.partialorder %v1870, 0.0
        %vm1935 = vcmp.ge.f32.partialorder %v1871, 0.0
        %vm1936 = vcmp.ge.f32.partialorder %v1872, 0.0
        %vm1937 = vcmp.ge.f32.partialorder %v1873, 0.0
        %vm1938 = vcmp.ge.f32.partialorder %v1874, 0.0
        %vm1939 = vcmp.ge.f32.partialorder %v1875, 0.0
        %vm1940 = vcmp.ge.f32.partialorder %v1876, 0.0
        %vm1941 = vcmp.ge.f32.partialorder %v1897, 0.0
        %vm1942 = vcmp.ge.f32.partialorder %v1898, 0.0
        %vm1943 = vcmp.ge.f32.partialorder %v1899, 0.0
        %vm1944 = vcmp.ge.f32.partialorder %v1900, 0.0
        %vm1945 = vcmp.ge.f32.partialorder %v1901, 0.0
        %vm1946 = vcmp.ge.f32.partialorder %v1902, 0.0
        %vm1947 = vcmp.ge.f32.partialorder %v1903, 0.0
        %vm1948 = vcmp.ge.f32.partialorder %v1904, 0.0
        %vm1949 = vmand %vm1933, %vm1941
        %vm1950 = vmand %vm1934, %vm1942
        %vm1951 = vmand %vm1935, %vm1943
        %vm1952 = vmand %vm1936, %vm1944
        %vm1953 = vmand %vm1937, %vm1945
        %vm1954 = vmand %vm1938, %vm1946
        %vm1955 = vmand %vm1939, %vm1947
        %vm1956 = vmand %vm1940, %vm1948
        %vm1957 = vcmp.ge.f32.partialorder %v1925, 0.0
        %vm1958 = vcmp.ge.f32.partialorder %v1926, 0.0
        %vm1959 = vcmp.ge.f32.partialorder %v1927, 0.0
        %vm1960 = vcmp.ge.f32.partialorder %v1928, 0.0
        %vm1961 = vcmp.ge.f32.partialorder %v1929, 0.0
        %vm1962 = vcmp.ge.f32.partialorder %v1930, 0.0
        %vm1963 = vcmp.ge.f32.partialorder %v1931, 0.0
        %vm1964 = vcmp.ge.f32.partialorder %v1932, 0.0
        %vm1965 = vmand %vm1949, %vm1957
        %vm1966 = vmand %vm1950, %vm1958
        %vm1967 = vmand %vm1951, %vm1959
        %vm1968 = vmand %vm1952, %vm1960
        %vm1969 = vmand %vm1953, %vm1961
        %vm1970 = vmand %vm1954, %vm1962
        %vm1971 = vmand %vm1955, %vm1963
        %vm1972 = vmand %vm1956, %vm1964
        %vm1973 = vcmp.le.f32.partialorder %v1869, 0.0
        %vm1974 = vcmp.le.f32.partialorder %v1870, 0.0
        %vm1975 = vcmp.le.f32.partialorder %v1871, 0.0
        %vm1976 = vcmp.le.f32.partialorder %v1872, 0.0
        %vm1977 = vcmp.le.f32.partialorder %v1873, 0.0
        %vm1978 = vcmp.le.f32.partialorder %v1874, 0.0
        %vm1979 = vcmp.le.f32.partialorder %v1875, 0.0
        %vm1980 = vcmp.le.f32.partialorder %v1876, 0.0
        %vm1981 = vcmp.le.f32.partialorder %v1897, 0.0
        %vm1982 = vcmp.le.f32.partialorder %v1898, 0.0
        %vm1983 = vcmp.le.f32.partialorder %v1899, 0.0
        %vm1984 = vcmp.le.f32.partialorder %v1900, 0.0
        %vm1985 = vcmp.le.f32.partialorder %v1901, 0.0
        %vm1986 = vcmp.le.f32.partialorder %v1902, 0.0
        %vm1987 = vcmp.le.f32.partialorder %v1903, 0.0
        %vm1988 = vcmp.le.f32.partialorder %v1904, 0.0
        %vm1989 = vmand %vm1973, %vm1981
        %vm1990 = vmand %vm1974, %vm1982
        %vm1991 = vmand %vm1975, %vm1983
        %vm1992 = vmand %vm1976, %vm1984
        %vm1993 = vmand %vm1977, %vm1985
        %vm1994 = vmand %vm1978, %vm1986
        %vm1995 = vmand %vm1979, %vm1987
        %vm1996 = vmand %vm1980, %vm1988
        %vm1997 = vcmp.le.f32.partialorder %v1925, 0.0
        %vm1998 = vcmp.le.f32.partialorder %v1926, 0.0
        %vm1999 = vcmp.le.f32.partialorder %v1927, 0.0
        %vm2000 = vcmp.le.f32.partialorder %v1928, 0.0
        %vm2001 = vcmp.le.f32.partialorder %v1929, 0.0
        %vm2002 = vcmp.le.f32.partialorder %v1930, 0.0
        %vm2003 = vcmp.le.f32.partialorder %v1931, 0.0
        %vm2004 = vcmp.le.f32.partialorder %v1932, 0.0
        %vm2005 = vmand %vm1989, %vm1997
        %vm2006 = vmand %vm1990, %vm1998
        %vm2007 = vmand %vm1991, %vm1999
        %vm2008 = vmand %vm1992, %vm2000
        %vm2009 = vmand %vm1993, %vm2001
        %vm2010 = vmand %vm1994, %vm2002
        %vm2011 = vmand %vm1995, %vm2003
        %vm2012 = vmand %vm1996, %vm2004
        %vm2013 = vmor %vm1832, %vm1965
        %vm2014 = vmor %vm1833, %vm1966
        %vm2015 = vmor %vm1834, %vm1967
        %vm2016 = vmor %vm1835, %vm1968
        %vm2017 = vmor %vm1836, %vm1969
        %vm2018 = vmor %vm1837, %vm1970
        %vm2019 = vmor %vm1838, %vm1971
        %vm2020 = vmor %vm1839, %vm1972
        %vm2021 = vmor %vm2013, %vm2005
        %vm2022 = vmor %vm2014, %vm2006
        %vm2023 = vmor %vm2015, %vm2007
        %vm2024 = vmor %vm2016, %vm2008
        %vm2025 = vmor %vm2017, %vm2009
        %vm2026 = vmor %vm2018, %vm2010
        %vm2027 = vmor %vm2019, %vm2011
        %vm2028 = vmor %vm2020, %vm2012
        %s2029 = sld [smem:[#allocation2 + $0x5a]]
        %s2030 = sld [smem:[#allocation2 + $0x5b]]
        %s2031 = sld [smem:[#allocation2 + $0x5c]]
        %s2032 = sld [smem:[#allocation2 + $0x5d]]
        %s2033 = sld [smem:[#allocation2 + $0x5e]]
        %s2034 = sld [smem:[#allocation2 + $0x5f]]
        %s2035 = sld [smem:[#allocation2 + $0x60]]
        %s2036 = sld [smem:[#allocation2 + $0x61]]
        %s2037 = sld [smem:[#allocation2 + $0x62]]
        %v2038 = vstv %s2029
        %v2039 = vmul.f32 %v2038, %v146
        %v2040 = vstv %s2030
        %v2041 = vmul.f32 %v2040, %v135
        %v2042 = vmul.f32 %v2040, %v136
        %v2043 = vmul.f32 %v2040, %v137
        %v2044 = vmul.f32 %v2040, %v138
        %v2045 = vmul.f32 %v2040, %v139
        %v2046 = vmul.f32 %v2040, %v140
        %v2047 = vmul.f32 %v2040, %v141
        %v2048 = vmul.f32 %v2040, %v142
        %v2049 = vadd.f32 %v2039, %v2041
        %v2050 = vadd.f32 %v2039, %v2042
        %v2051 = vadd.f32 %v2039, %v2043
        %v2052 = vadd.f32 %v2039, %v2044
        %v2053 = vadd.f32 %v2039, %v2045
        %v2054 = vadd.f32 %v2039, %v2046
        %v2055 = vadd.f32 %v2039, %v2047
        %v2056 = vadd.f32 %v2039, %v2048
        %v2057 = vstv %s2031
        %v2058 = vadd.f32 %v2049, %v2057
        %v2059 = vadd.f32 %v2050, %v2057
        %v2060 = vadd.f32 %v2051, %v2057
        %v2061 = vadd.f32 %v2052, %v2057
        %v2062 = vadd.f32 %v2053, %v2057
        %v2063 = vadd.f32 %v2054, %v2057
        %v2064 = vadd.f32 %v2055, %v2057
        %v2065 = vadd.f32 %v2056, %v2057
        %v2066 = vstv %s2032
        %v2067 = vmul.f32 %v2066, %v146
        %v2068 = vstv %s2033
        %v2069 = vmul.f32 %v2068, %v135
        %v2070 = vmul.f32 %v2068, %v136
        %v2071 = vmul.f32 %v2068, %v137
        %v2072 = vmul.f32 %v2068, %v138
        %v2073 = vmul.f32 %v2068, %v139
        %v2074 = vmul.f32 %v2068, %v140
        %v2075 = vmul.f32 %v2068, %v141
        %v2076 = vmul.f32 %v2068, %v142
        %v2077 = vadd.f32 %v2067, %v2069
        %v2078 = vadd.f32 %v2067, %v2070
        %v2079 = vadd.f32 %v2067, %v2071
        %v2080 = vadd.f32 %v2067, %v2072
        %v2081 = vadd.f32 %v2067, %v2073
        %v2082 = vadd.f32 %v2067, %v2074
        %v2083 = vadd.f32 %v2067, %v2075
        %v2084 = vadd.f32 %v2067, %v2076
        %v2085 = vstv %s2034
        %v2086 = vadd.f32 %v2077, %v2085
        %v2087 = vadd.f32 %v2078, %v2085
        %v2088 = vadd.f32 %v2079, %v2085
        %v2089 = vadd.f32 %v2080, %v2085
        %v2090 = vadd.f32 %v2081, %v2085
        %v2091 = vadd.f32 %v2082, %v2085
        %v2092 = vadd.f32 %v2083, %v2085
        %v2093 = vadd.f32 %v2084, %v2085
        %v2094 = vstv %s2035
        %v2095 = vmul.f32 %v2094, %v146
        %v2096 = vstv %s2036
        %v2097 = vmul.f32 %v2096, %v135
        %v2098 = vmul.f32 %v2096, %v136
        %v2099 = vmul.f32 %v2096, %v137
        %v2100 = vmul.f32 %v2096, %v138
        %v2101 = vmul.f32 %v2096, %v139
        %v2102 = vmul.f32 %v2096, %v140
        %v2103 = vmul.f32 %v2096, %v141
        %v2104 = vmul.f32 %v2096, %v142
        %v2105 = vadd.f32 %v2095, %v2097
        %v2106 = vadd.f32 %v2095, %v2098
        %v2107 = vadd.f32 %v2095, %v2099
        %v2108 = vadd.f32 %v2095, %v2100
        %v2109 = vadd.f32 %v2095, %v2101
        %v2110 = vadd.f32 %v2095, %v2102
        %v2111 = vadd.f32 %v2095, %v2103
        %v2112 = vadd.f32 %v2095, %v2104
        %v2113 = vstv %s2037
        %v2114 = vadd.f32 %v2105, %v2113
        %v2115 = vadd.f32 %v2106, %v2113
        %v2116 = vadd.f32 %v2107, %v2113
        %v2117 = vadd.f32 %v2108, %v2113
        %v2118 = vadd.f32 %v2109, %v2113
        %v2119 = vadd.f32 %v2110, %v2113
        %v2120 = vadd.f32 %v2111, %v2113
        %v2121 = vadd.f32 %v2112, %v2113
        %vm2122 = vcmp.ge.f32.partialorder %v2058, 0.0
        %vm2123 = vcmp.ge.f32.partialorder %v2059, 0.0
        %vm2124 = vcmp.ge.f32.partialorder %v2060, 0.0
        %vm2125 = vcmp.ge.f32.partialorder %v2061, 0.0
        %vm2126 = vcmp.ge.f32.partialorder %v2062, 0.0
        %vm2127 = vcmp.ge.f32.partialorder %v2063, 0.0
        %vm2128 = vcmp.ge.f32.partialorder %v2064, 0.0
        %vm2129 = vcmp.ge.f32.partialorder %v2065, 0.0
        %vm2130 = vcmp.ge.f32.partialorder %v2086, 0.0
        %vm2131 = vcmp.ge.f32.partialorder %v2087, 0.0
        %vm2132 = vcmp.ge.f32.partialorder %v2088, 0.0
        %vm2133 = vcmp.ge.f32.partialorder %v2089, 0.0
        %vm2134 = vcmp.ge.f32.partialorder %v2090, 0.0
        %vm2135 = vcmp.ge.f32.partialorder %v2091, 0.0
        %vm2136 = vcmp.ge.f32.partialorder %v2092, 0.0
        %vm2137 = vcmp.ge.f32.partialorder %v2093, 0.0
        %vm2138 = vmand %vm2122, %vm2130
        %vm2139 = vmand %vm2123, %vm2131
        %vm2140 = vmand %vm2124, %vm2132
        %vm2141 = vmand %vm2125, %vm2133
        %vm2142 = vmand %vm2126, %vm2134
        %vm2143 = vmand %vm2127, %vm2135
        %vm2144 = vmand %vm2128, %vm2136
        %vm2145 = vmand %vm2129, %vm2137
        %vm2146 = vcmp.ge.f32.partialorder %v2114, 0.0
        %vm2147 = vcmp.ge.f32.partialorder %v2115, 0.0
        %vm2148 = vcmp.ge.f32.partialorder %v2116, 0.0
        %vm2149 = vcmp.ge.f32.partialorder %v2117, 0.0
        %vm2150 = vcmp.ge.f32.partialorder %v2118, 0.0
        %vm2151 = vcmp.ge.f32.partialorder %v2119, 0.0
        %vm2152 = vcmp.ge.f32.partialorder %v2120, 0.0
        %vm2153 = vcmp.ge.f32.partialorder %v2121, 0.0
        %vm2154 = vmand %vm2138, %vm2146
        %vm2155 = vmand %vm2139, %vm2147
        %vm2156 = vmand %vm2140, %vm2148
        %vm2157 = vmand %vm2141, %vm2149
        %vm2158 = vmand %vm2142, %vm2150
        %vm2159 = vmand %vm2143, %vm2151
        %vm2160 = vmand %vm2144, %vm2152
        %vm2161 = vmand %vm2145, %vm2153
        %vm2162 = vcmp.le.f32.partialorder %v2058, 0.0
        %vm2163 = vcmp.le.f32.partialorder %v2059, 0.0
        %vm2164 = vcmp.le.f32.partialorder %v2060, 0.0
        %vm2165 = vcmp.le.f32.partialorder %v2061, 0.0
        %vm2166 = vcmp.le.f32.partialorder %v2062, 0.0
        %vm2167 = vcmp.le.f32.partialorder %v2063, 0.0
        %vm2168 = vcmp.le.f32.partialorder %v2064, 0.0
        %vm2169 = vcmp.le.f32.partialorder %v2065, 0.0
        %vm2170 = vcmp.le.f32.partialorder %v2086, 0.0
        %vm2171 = vcmp.le.f32.partialorder %v2087, 0.0
        %vm2172 = vcmp.le.f32.partialorder %v2088, 0.0
        %vm2173 = vcmp.le.f32.partialorder %v2089, 0.0
        %vm2174 = vcmp.le.f32.partialorder %v2090, 0.0
        %vm2175 = vcmp.le.f32.partialorder %v2091, 0.0
        %vm2176 = vcmp.le.f32.partialorder %v2092, 0.0
        %vm2177 = vcmp.le.f32.partialorder %v2093, 0.0
        %vm2178 = vmand %vm2162, %vm2170
        %vm2179 = vmand %vm2163, %vm2171
        %vm2180 = vmand %vm2164, %vm2172
        %vm2181 = vmand %vm2165, %vm2173
        %vm2182 = vmand %vm2166, %vm2174
        %vm2183 = vmand %vm2167, %vm2175
        %vm2184 = vmand %vm2168, %vm2176
        %vm2185 = vmand %vm2169, %vm2177
        %vm2186 = vcmp.le.f32.partialorder %v2114, 0.0
        %vm2187 = vcmp.le.f32.partialorder %v2115, 0.0
        %vm2188 = vcmp.le.f32.partialorder %v2116, 0.0
        %vm2189 = vcmp.le.f32.partialorder %v2117, 0.0
        %vm2190 = vcmp.le.f32.partialorder %v2118, 0.0
        %vm2191 = vcmp.le.f32.partialorder %v2119, 0.0
        %vm2192 = vcmp.le.f32.partialorder %v2120, 0.0
        %vm2193 = vcmp.le.f32.partialorder %v2121, 0.0
        %vm2194 = vmand %vm2178, %vm2186
        %vm2195 = vmand %vm2179, %vm2187
        %vm2196 = vmand %vm2180, %vm2188
        %vm2197 = vmand %vm2181, %vm2189
        %vm2198 = vmand %vm2182, %vm2190
        %vm2199 = vmand %vm2183, %vm2191
        %vm2200 = vmand %vm2184, %vm2192
        %vm2201 = vmand %vm2185, %vm2193
        %vm2202 = vmor %vm2021, %vm2154
        %vm2203 = vmor %vm2022, %vm2155
        %vm2204 = vmor %vm2023, %vm2156
        %vm2205 = vmor %vm2024, %vm2157
        %vm2206 = vmor %vm2025, %vm2158
        %vm2207 = vmor %vm2026, %vm2159
        %vm2208 = vmor %vm2027, %vm2160
        %vm2209 = vmor %vm2028, %vm2161
        %vm2210 = vmor %vm2202, %vm2194
        %vm2211 = vmor %vm2203, %vm2195
        %vm2212 = vmor %vm2204, %vm2196
        %vm2213 = vmor %vm2205, %vm2197
        %vm2214 = vmor %vm2206, %vm2198
        %vm2215 = vmor %vm2207, %vm2199
        %vm2216 = vmor %vm2208, %vm2200
        %vm2217 = vmor %vm2209, %vm2201
        %s2218 = sld [smem:[#allocation2 + $0x63]]
        %s2219 = sld [smem:[#allocation2 + $0x64]]
        %s2220 = sld [smem:[#allocation2 + $0x65]]
        %s2221 = sld [smem:[#allocation2 + $0x66]]
        %s2222 = sld [smem:[#allocation2 + $0x67]]
        %s2223 = sld [smem:[#allocation2 + $0x68]]
        %s2224 = sld [smem:[#allocation2 + $0x69]]
        %s2225 = sld [smem:[#allocation2 + $0x6a]]
        %s2226 = sld [smem:[#allocation2 + $0x6b]]
        %v2227 = vstv %s2218
        %v2228 = vmul.f32 %v2227, %v146
        %v2229 = vstv %s2219
        %v2230 = vmul.f32 %v2229, %v135
        %v2231 = vmul.f32 %v2229, %v136
        %v2232 = vmul.f32 %v2229, %v137
        %v2233 = vmul.f32 %v2229, %v138
        %v2234 = vmul.f32 %v2229, %v139
        %v2235 = vmul.f32 %v2229, %v140
        %v2236 = vmul.f32 %v2229, %v141
        %v2237 = vmul.f32 %v2229, %v142
        %v2238 = vadd.f32 %v2228, %v2230
        %v2239 = vadd.f32 %v2228, %v2231
        %v2240 = vadd.f32 %v2228, %v2232
        %v2241 = vadd.f32 %v2228, %v2233
        %v2242 = vadd.f32 %v2228, %v2234
        %v2243 = vadd.f32 %v2228, %v2235
        %v2244 = vadd.f32 %v2228, %v2236
        %v2245 = vadd.f32 %v2228, %v2237
        %v2246 = vstv %s2220
        %v2247 = vadd.f32 %v2238, %v2246
        %v2248 = vadd.f32 %v2239, %v2246
        %v2249 = vadd.f32 %v2240, %v2246
        %v2250 = vadd.f32 %v2241, %v2246
        %v2251 = vadd.f32 %v2242, %v2246
        %v2252 = vadd.f32 %v2243, %v2246
        %v2253 = vadd.f32 %v2244, %v2246
        %v2254 = vadd.f32 %v2245, %v2246
        %v2255 = vstv %s2221
        %v2256 = vmul.f32 %v2255, %v146
        %v2257 = vstv %s2222
        %v2258 = vmul.f32 %v2257, %v135
        %v2259 = vmul.f32 %v2257, %v136
        %v2260 = vmul.f32 %v2257, %v137
        %v2261 = vmul.f32 %v2257, %v138
        %v2262 = vmul.f32 %v2257, %v139
        %v2263 = vmul.f32 %v2257, %v140
        %v2264 = vmul.f32 %v2257, %v141
        %v2265 = vmul.f32 %v2257, %v142
        %v2266 = vadd.f32 %v2256, %v2258
        %v2267 = vadd.f32 %v2256, %v2259
        %v2268 = vadd.f32 %v2256, %v2260
        %v2269 = vadd.f32 %v2256, %v2261
        %v2270 = vadd.f32 %v2256, %v2262
        %v2271 = vadd.f32 %v2256, %v2263
        %v2272 = vadd.f32 %v2256, %v2264
        %v2273 = vadd.f32 %v2256, %v2265
        %v2274 = vstv %s2223
        %v2275 = vadd.f32 %v2266, %v2274
        %v2276 = vadd.f32 %v2267, %v2274
        %v2277 = vadd.f32 %v2268, %v2274
        %v2278 = vadd.f32 %v2269, %v2274
        %v2279 = vadd.f32 %v2270, %v2274
        %v2280 = vadd.f32 %v2271, %v2274
        %v2281 = vadd.f32 %v2272, %v2274
        %v2282 = vadd.f32 %v2273, %v2274
        %v2283 = vstv %s2224
        %v2284 = vmul.f32 %v2283, %v146
        %v2285 = vstv %s2225
        %v2286 = vmul.f32 %v2285, %v135
        %v2287 = vmul.f32 %v2285, %v136
        %v2288 = vmul.f32 %v2285, %v137
        %v2289 = vmul.f32 %v2285, %v138
        %v2290 = vmul.f32 %v2285, %v139
        %v2291 = vmul.f32 %v2285, %v140
        %v2292 = vmul.f32 %v2285, %v141
        %v2293 = vmul.f32 %v2285, %v142
        %v2294 = vadd.f32 %v2284, %v2286
        %v2295 = vadd.f32 %v2284, %v2287
        %v2296 = vadd.f32 %v2284, %v2288
        %v2297 = vadd.f32 %v2284, %v2289
        %v2298 = vadd.f32 %v2284, %v2290
        %v2299 = vadd.f32 %v2284, %v2291
        %v2300 = vadd.f32 %v2284, %v2292
        %v2301 = vadd.f32 %v2284, %v2293
        %v2302 = vstv %s2226
        %v2303 = vadd.f32 %v2294, %v2302
        %v2304 = vadd.f32 %v2295, %v2302
        %v2305 = vadd.f32 %v2296, %v2302
        %v2306 = vadd.f32 %v2297, %v2302
        %v2307 = vadd.f32 %v2298, %v2302
        %v2308 = vadd.f32 %v2299, %v2302
        %v2309 = vadd.f32 %v2300, %v2302
        %v2310 = vadd.f32 %v2301, %v2302
        %vm2311 = vcmp.ge.f32.partialorder %v2247, 0.0
        %vm2312 = vcmp.ge.f32.partialorder %v2248, 0.0
        %vm2313 = vcmp.ge.f32.partialorder %v2249, 0.0
        %vm2314 = vcmp.ge.f32.partialorder %v2250, 0.0
        %vm2315 = vcmp.ge.f32.partialorder %v2251, 0.0
        %vm2316 = vcmp.ge.f32.partialorder %v2252, 0.0
        %vm2317 = vcmp.ge.f32.partialorder %v2253, 0.0
        %vm2318 = vcmp.ge.f32.partialorder %v2254, 0.0
        %vm2319 = vcmp.ge.f32.partialorder %v2275, 0.0
        %vm2320 = vcmp.ge.f32.partialorder %v2276, 0.0
        %vm2321 = vcmp.ge.f32.partialorder %v2277, 0.0
        %vm2322 = vcmp.ge.f32.partialorder %v2278, 0.0
        %vm2323 = vcmp.ge.f32.partialorder %v2279, 0.0
        %vm2324 = vcmp.ge.f32.partialorder %v2280, 0.0
        %vm2325 = vcmp.ge.f32.partialorder %v2281, 0.0
        %vm2326 = vcmp.ge.f32.partialorder %v2282, 0.0
        %vm2327 = vmand %vm2311, %vm2319
        %vm2328 = vmand %vm2312, %vm2320
        %vm2329 = vmand %vm2313, %vm2321
        %vm2330 = vmand %vm2314, %vm2322
        %vm2331 = vmand %vm2315, %vm2323
        %vm2332 = vmand %vm2316, %vm2324
        %vm2333 = vmand %vm2317, %vm2325
        %vm2334 = vmand %vm2318, %vm2326
        %vm2335 = vcmp.ge.f32.partialorder %v2303, 0.0
        %vm2336 = vcmp.ge.f32.partialorder %v2304, 0.0
        %vm2337 = vcmp.ge.f32.partialorder %v2305, 0.0
        %vm2338 = vcmp.ge.f32.partialorder %v2306, 0.0
        %vm2339 = vcmp.ge.f32.partialorder %v2307, 0.0
        %vm2340 = vcmp.ge.f32.partialorder %v2308, 0.0
        %vm2341 = vcmp.ge.f32.partialorder %v2309, 0.0
        %vm2342 = vcmp.ge.f32.partialorder %v2310, 0.0
        %vm2343 = vmand %vm2327, %vm2335
        %vm2344 = vmand %vm2328, %vm2336
        %vm2345 = vmand %vm2329, %vm2337
        %vm2346 = vmand %vm2330, %vm2338
        %vm2347 = vmand %vm2331, %vm2339
        %vm2348 = vmand %vm2332, %vm2340
        %vm2349 = vmand %vm2333, %vm2341
        %vm2350 = vmand %vm2334, %vm2342
        %vm2351 = vcmp.le.f32.partialorder %v2247, 0.0
        %vm2352 = vcmp.le.f32.partialorder %v2248, 0.0
        %vm2353 = vcmp.le.f32.partialorder %v2249, 0.0
        %vm2354 = vcmp.le.f32.partialorder %v2250, 0.0
        %vm2355 = vcmp.le.f32.partialorder %v2251, 0.0
        %vm2356 = vcmp.le.f32.partialorder %v2252, 0.0
        %vm2357 = vcmp.le.f32.partialorder %v2253, 0.0
        %vm2358 = vcmp.le.f32.partialorder %v2254, 0.0
        %vm2359 = vcmp.le.f32.partialorder %v2275, 0.0
        %vm2360 = vcmp.le.f32.partialorder %v2276, 0.0
        %vm2361 = vcmp.le.f32.partialorder %v2277, 0.0
        %vm2362 = vcmp.le.f32.partialorder %v2278, 0.0
        %vm2363 = vcmp.le.f32.partialorder %v2279, 0.0
        %vm2364 = vcmp.le.f32.partialorder %v2280, 0.0
        %vm2365 = vcmp.le.f32.partialorder %v2281, 0.0
        %vm2366 = vcmp.le.f32.partialorder %v2282, 0.0
        %vm2367 = vmand %vm2351, %vm2359
        %vm2368 = vmand %vm2352, %vm2360
        %vm2369 = vmand %vm2353, %vm2361
        %vm2370 = vmand %vm2354, %vm2362
        %vm2371 = vmand %vm2355, %vm2363
        %vm2372 = vmand %vm2356, %vm2364
        %vm2373 = vmand %vm2357, %vm2365
        %vm2374 = vmand %vm2358, %vm2366
        %vm2375 = vcmp.le.f32.partialorder %v2303, 0.0
        %vm2376 = vcmp.le.f32.partialorder %v2304, 0.0
        %vm2377 = vcmp.le.f32.partialorder %v2305, 0.0
        %vm2378 = vcmp.le.f32.partialorder %v2306, 0.0
        %vm2379 = vcmp.le.f32.partialorder %v2307, 0.0
        %vm2380 = vcmp.le.f32.partialorder %v2308, 0.0
        %vm2381 = vcmp.le.f32.partialorder %v2309, 0.0
        %vm2382 = vcmp.le.f32.partialorder %v2310, 0.0
        %vm2383 = vmand %vm2367, %vm2375
        %vm2384 = vmand %vm2368, %vm2376
        %vm2385 = vmand %vm2369, %vm2377
        %vm2386 = vmand %vm2370, %vm2378
        %vm2387 = vmand %vm2371, %vm2379
        %vm2388 = vmand %vm2372, %vm2380
        %vm2389 = vmand %vm2373, %vm2381
        %vm2390 = vmand %vm2374, %vm2382
        %vm2391 = vmor %vm2210, %vm2343
        %vm2392 = vmor %vm2211, %vm2344
        %vm2393 = vmor %vm2212, %vm2345
        %vm2394 = vmor %vm2213, %vm2346
        %vm2395 = vmor %vm2214, %vm2347
        %vm2396 = vmor %vm2215, %vm2348
        %vm2397 = vmor %vm2216, %vm2349
        %vm2398 = vmor %vm2217, %vm2350
        %vm2399 = vmor %vm2391, %vm2383
        %vm2400 = vmor %vm2392, %vm2384
        %vm2401 = vmor %vm2393, %vm2385
        %vm2402 = vmor %vm2394, %vm2386
        %vm2403 = vmor %vm2395, %vm2387
        %vm2404 = vmor %vm2396, %vm2388
        %vm2405 = vmor %vm2397, %vm2389
        %vm2406 = vmor %vm2398, %vm2390
        %v2407 = vsel %vm2399, 1, 0
        %v2408 = vsel %vm2400, 1, 0
        %v2409 = vsel %vm2401, 1, 0
        %v2410 = vsel %vm2402, 1, 0
        %v2411 = vsel %vm2403, 1, 0
        %v2412 = vsel %vm2404, 1, 0
        %v2413 = vsel %vm2405, 1, 0
        %v2414 = vsel %vm2406, 1, 0
        %v2415 = vcvt.s32.f32 %v2407
        %v2416 = vcvt.s32.f32 %v2408
        %v2417 = vcvt.s32.f32 %v2409
        %v2418 = vcvt.s32.f32 %v2410
        %v2419 = vcvt.s32.f32 %v2411
        %v2420 = vcvt.s32.f32 %v2412
        %v2421 = vcvt.s32.f32 %v2413
        %v2422 = vcvt.s32.f32 %v2414
        %2423 = vst [vmem:[%s106] sm:$0xff] %v2415
        %2424 = vst [vmem:[%s106 + $0x8] sm:$0xff] %v2416
        %2425 = vst [vmem:[%s106 + $0x10] sm:$0xff] %v2417
        %2426 = vst [vmem:[%s106 + $0x18] sm:$0xff] %v2418
        %2427 = vst [vmem:[%s106 + $0x20] sm:$0xff] %v2419
        %2428 = vst [vmem:[%s106 + $0x28] sm:$0xff] %v2420
        %2429 = vst [vmem:[%s106 + $0x30] sm:$0xff] %v2421
        %2430 = vst [vmem:[%s106 + $0x38] sm:$0xff] %v2422
        %s2431 = sand.u32 %s45, 1
        %s2432 = scalar_lea.sflag [#allocation3], %s2431
        %s2433 = sand.u32 %s45, 1
        %s2434 = smul.addr %s2433, 64
        %s2435 = scalar_lea.vmem [#allocation5], %s2434
        // Predicated region
        $region29: #{tpu_custom_call.1} parent=23 // pred_check
          %p2436 = pneg %p55
        $region30: #{tpu_custom_call.1} parent=23 // pred_check_branch
          %2438 = sbr.rel (%p2436) target = $region32
        $region31: #{tpu_custom_call.1} parent=23 // pred_region
          %s2439 = smul.u32 8, %s16
          %s2441 = ssub.s32 1024, 1024
          %2442 = vsyncadd %s2432, %s2441
          %s2443 = smul.addr %s2439, 128
          %s2444 = scalar_lea.hbm %s1, %s2443
          %s2445 = sshll.u32 %s2435, 4
          %s2446 = int_to_ptr.vmem [resolvable:$true] %s2445
          %2451 = dma.vmem_to_hbm [thread:$0]  %s2446, 1024, %s2444, %s2432, 128, 128, 8
        $region32: #{tpu_custom_call.1} parent=23 // pred_fallthru
          _
      $region24: #{tpu_custom_call.1} parent=5 // pred_fallthru
        _
      %p2452 = scmp.le.s32.totalorder 2, %s11
      // Predicated region
      $region33: #{tpu_custom_call.1} parent=5 // pred_check
        %p2453 = pneg %p2452
      $region34: #{tpu_custom_call.1} parent=5 // pred_check_branch
        %2455 = sbr.rel (%p2453) target = $region36
      $region35: #{tpu_custom_call.1} parent=5 // pred_region
        %s2456 = ssub.s32 %s11, 2
        // Predicated region
        $region37: #{tpu_custom_call.1} parent=35 // pred_check
          %p2457 = pneg %p61
        $region38: #{tpu_custom_call.1} parent=35 // pred_check_branch
          %2459 = sbr.rel (%p2457) target = $region40
        $region39: #{tpu_custom_call.1} parent=35 // pred_region
          %s2460 = sand.u32 %s46, 1
          %s2461 = scalar_lea.sflag [#allocation3], %s2460
          %s2462 = sand.u32 %s46, 1
          %s2463 = smul.addr %s2462, 64
          %s2464 = scalar_lea.vmem [#allocation5], %s2463
          %2465 = dma.done %s2461, 1024
        $region40: #{tpu_custom_call.1} parent=35 // pred_fallthru
          _
      $region36: #{tpu_custom_call.1} parent=5 // pred_fallthru
        _
    $region6: #{tpu_custom_call.1} parent=1 // loop_footer
      %s15 = sadd.s32 1, %s11
    $region7: #{tpu_custom_call.1} parent=1 // loop_footer_branch
      %10 = sbr.rel target = $region3
    $region8: #{tpu_custom_call.1} parent=1 // loop_exit
      _
    %2466 = vsyncpa [#allocation3], 1
    %s2467 = scalar_lea.sflag [#allocation3], 1
    %2468 = vsyncpa %s2467, 1
    %2469 = vsyncpa [#allocation4], 1
    %s2470 = scalar_lea.sflag [#allocation4], 1
    %2471 = vsyncpa %s2470, 1

</llo_original>
